<compile_context>
chip_gen: v7x
topology: tpu7x:2x2x1
jax: 0.10.0
libtpu: 0.0.40
codegen_flags: <defaults>
</compile_context>

<pallas_src>
import numpy as np
import jax
import jax.numpy as jnp
from jax.experimental import pallas as pl
from jax.experimental.pallas import tpu as pltpu

BN_EPS = 1e-5


def residual_block_forward(x_nchw, params):
    """x_nchw: (N, C, H, W) float32 (PyTorch layout). Returns (N, C, H, W)."""
    w1, b1, g1, be1, w2, b2, g2, be2 = params
    del b1, b2  # cancelled exactly by training-mode BatchNorm (see header)
    N, C, H, W = x_nchw.shape
    K = w1.shape[-1]
    P = K // 2
    NC = N * C
    KK = K * K
    Wp = W + 2 * P                   # per-row padded width (implicit conv zero pad)
    Li = H * Wp                      # interior (padded flat-spatial) length
    HALO = P * Wp + P                # max |flattened shift| of any tap
    TOP = 128                        # lane-aligned interior start; must be >= HALO
    BOT = ((HALO + 31) // 32) * 32   # must be >= HALO
    Lp = TOP + Li + BOT
    assert TOP >= HALO and BOT >= HALO, "conv halo does not fit the padding"

    taps = [(di, dj) for di in range(-P, P + 1) for dj in range(-P, P + 1)]
    shifts = [di * Wp + dj for (di, dj) in taps]
    inv_count = 1.0 / float(N * H * W)

    # ---- wrapper-side relayout / padding (pure reshape + pad, no transpose) ---
    x3 = jnp.reshape(x_nchw, (NC, H, W)).astype(jnp.float32)
    x3 = jnp.pad(x3, ((0, 0), (0, 0), (P, P)))                 # rows -> width Wp
    x_pad = jnp.pad(jnp.reshape(x3, (NC, Li)), ((0, 0), (TOP, BOT)))   # (NC, Lp)

    # 0/1 mask of real-data columns inside the interior (BN stats + re-zero y)
    colpos = np.arange(Li) % Wp
    mask_np = ((colpos >= P) & (colpos < P + W)).astype(np.float32)
    mask = jnp.asarray(np.tile(mask_np[None, :], (NC, 1)))     # (NC, Li)

    # weights as (C_out, C_in*K*K), tiled per batch on sublanes; col = ci*KK + t
    def wmat(w):
        return jnp.tile(jnp.reshape(w, (C, C * KK)).astype(jnp.float32), (N, 1))

    def colvec(v):
        return jnp.tile(jnp.reshape(v, (C, 1)).astype(jnp.float32), (N, 1))

    # ---- kernel ---------------------------------------------------------------
    def kernel(x_ref, mask_ref, w1_ref, g1_ref, be1_ref,
               w2_ref, g2_ref, be2_ref, o_ref, rep_ref):
        msk = mask_ref[...]                                     # (NC, Li)

        def fill_rep_from(rows, lo, hi):
            # rep[ci, n*C + co, lo:hi] = rows[n*C + ci, :]  (channel-replicated)
            for ci in range(C):
                for n in range(N):
                    rep_ref[ci, n * C:(n + 1) * C, lo:hi] = jnp.broadcast_to(
                        rows[n * C + ci:n * C + ci + 1, :], (C, hi - lo))

        def conv(w_ref):
            # 3x3 "same" conv: 9*C_in unaligned full-sublane window loads +
            # per-output-channel broadcast FMAs, accumulated in place.
            # (If a bundle dump shows Mosaic materializing shifted copies for
            # the unaligned lane starts, switch to one aligned load per ci and
            # realign with pltpu.roll — the XLU slot is idle here.)
            acc = None
            for ci in range(C):
                for t in range(KK):
                    win = rep_ref[ci, :, pl.ds(TOP + shifts[t], Li)]    # (NC, Li)
                    wcol = w_ref[:, ci * KK + t:ci * KK + t + 1]        # (NC, 1)
                    term = wcol * win
                    acc = term if acc is None else acc + term
            return acc

        def cross_batch(col_sums):
            # (NC,1) per-row sums -> per-channel sums replicated to all N rows
            total = col_sums
            for k in range(1, N):
                total = total + pltpu.roll(col_sums, shift=k * C, axis=0)
            return total

        def batch_norm(z, g_col, b_col):
            # training-mode BN over (batch, H, W); centered variance; the
            # per-row pad columns are excluded from the stats via `msk`.
            mean = cross_batch(jnp.sum(z * msk, axis=1, keepdims=True)) * inv_count
            zc = (z - mean) * msk
            var = cross_batch(jnp.sum(zc * zc, axis=1, keepdims=True)) * inv_count
            return zc * (jax.lax.rsqrt(var + BN_EPS) * g_col) + b_col

        # stage x into the channel-replicated buffer (halos are already zero)
        xv = x_ref[...]                                         # (NC, Lp)
        fill_rep_from(xv, 0, Lp)

        # branch 1: conv1 -> BN1 -> swish, re-zeroed at pad columns for conv2
        y = batch_norm(conv(w1_ref), g1_ref[...], be1_ref[...])
        y = (y * jax.nn.sigmoid(y)) * msk

        # restage the interior with y (halos outside [TOP, TOP+Li) stay zero)
        fill_rep_from(y, TOP, TOP + Li)

        # branch 2: conv2 -> BN2, then residual add (lane-aligned x slice)
        z = batch_norm(conv(w2_ref), g2_ref[...], be2_ref[...])
        o_ref[...] = xv[:, TOP:TOP + Li] + z

    vmem = pl.BlockSpec(memory_space=pltpu.MemorySpace.VMEM)
    # NOTE: at this toy shape everything fits in VMEM, so the kernel is a single
    # grid-less program (a grid would only add per-step overhead here).  For
    # realistic N/H/W/C:
    #   * add a grid over batch/row tiles (512-1024 lanes per step), mark the
    #     tile axis "parallel" (uses both v7x TensorCores) and the BN stat axis
    #     "arbitrary" with pl.when init/finalize accumulators (two-pass stats),
    #   * re-derive the tile budget for v7x's 64 MiB VMEM and set
    #     vmem_limit_bytes in pltpu.CompilerParams,
    #   * at C >= 64 replace the VPU conv with an MXU im2col matmul
    #     (C_out, C_in*9) @ (C_in*9, L_tile), preferred_element_type=float32.
    out_flat = pl.pallas_call(
        kernel,
        out_shape=jax.ShapeDtypeStruct((NC, Li), jnp.float32),
        in_specs=[vmem] * 8,
        out_specs=vmem,
        scratch_shapes=[pltpu.VMEM((C, NC, Lp), jnp.float32)],  # replicated pad buffer
    )(x_pad, mask, wmat(w1), colvec(g1), colvec(be1),
      wmat(w2), colvec(g2), colvec(be2))

    # interior -> (N, C, H, W): drop the per-row pad columns (reshape + slice)
    return jnp.reshape(out_flat, (N, C, H, Wp))[:, :, :, P:P + W]


def _reference(x_nchw, params):
    """Pure-JAX reference matching the PyTorch forward (training-mode BN)."""
    w1, b1, g1, be1, w2, b2, g2, be2 = params

    def conv(x, w, b):
        p = w.shape[-1] // 2
        y = jax.lax.conv_general_dilated(
            x, w, window_strides=(1, 1), padding=[(p, p), (p, p)],
            dimension_numbers=('NCHW', 'OIHW', 'NCHW'))
        return y + b[None, :, None, None]

    def bn(z, g, b):
        mean = jnp.mean(z, axis=(0, 2, 3), keepdims=True)
        var = jnp.var(z, axis=(0, 2, 3), keepdims=True)
        return ((z - mean) / jnp.sqrt(var + BN_EPS)
                * g[None, :, None, None] + b[None, :, None, None])

    y = conv(x_nchw, w1, b1)
    y = bn(y, g1, be1)
    y = y * jax.nn.sigmoid(y)
    z = bn(conv(y, w2, b2), g2, be2)
    return x_nchw + z


if __name__ == "__main__":
    N, C, H, W, K = 2, 4, 16, 16, 3  # num_channel=4, kernels=3, strides=1
    key = jax.random.PRNGKey(0)
    k1, k2, k3, k4, k5 = jax.random.split(key, 5)

    x = jax.random.normal(k1, (N, C, H, W), jnp.float32)
    # Conv2d params (OIHW + bias), deterministic synthetic init.
    w1 = 0.1 * jax.random.normal(k2, (C, C, K, K), jnp.float32)
    b1 = 0.05 * jax.random.normal(k3, (C,), jnp.float32)
    w2 = 0.1 * jax.random.normal(k4, (C, C, K, K), jnp.float32)
    b2 = 0.05 * jax.random.normal(k5, (C,), jnp.float32)
    # BatchNorm2d default init: gamma=1, beta=0.
    g1, be1 = jnp.ones((C,), jnp.float32), jnp.zeros((C,), jnp.float32)
    g2, be2 = jnp.ones((C,), jnp.float32), jnp.zeros((C,), jnp.float32)
    params = (w1, b1, g1, be1, w2, b2, g2, be2)

    out = residual_block_forward(x, params)
    jax.block_until_ready(out)

    ref = _reference(x, params)
    assert out.shape == x.shape
    max_err = float(jnp.max(jnp.abs(out - ref)))
    if max_err > 1e-3:
        raise AssertionError(f"mismatch vs reference, max abs err = {max_err}")
    print("KERNEL_OK")
</pallas_src>

<mosaic_0001>
module attributes {stable_mosaic.version = 11 : i64} {
  func.func @kernel(%arg0: memref<8x448xf32, #tpu.memory_space<vmem>>, %arg1: memref<8x288xf32, #tpu.memory_space<vmem>>, %arg2: memref<8x36xf32, #tpu.memory_space<vmem>>, %arg3: memref<8x1xf32, #tpu.memory_space<vmem>>, %arg4: memref<8x1xf32, #tpu.memory_space<vmem>>, %arg5: memref<8x36xf32, #tpu.memory_space<vmem>>, %arg6: memref<8x1xf32, #tpu.memory_space<vmem>>, %arg7: memref<8x1xf32, #tpu.memory_space<vmem>>, %arg8: memref<8x288xf32, #tpu.memory_space<vmem>>, %arg9: memref<4x8x448xf32, #tpu.memory_space<vmem>>) attributes {dimension_semantics = [], scalar_prefetch = 0 : i64, scratch_operands = 1 : i64, tpu.core_type = #tpu.core_type<tc>} {
    %c0 = arith.constant 0 : index
    %c0_0 = arith.constant 0 : index
    %0 = vector.load %arg1[%c0, %c0_0] : memref<8x288xf32, #tpu.memory_space<vmem>>, vector<8x288xf32>
    %c0_1 = arith.constant 0 : index
    %c0_2 = arith.constant 0 : index
    %1 = vector.load %arg0[%c0_1, %c0_2] : memref<8x448xf32, #tpu.memory_space<vmem>>, vector<8x448xf32>
    %2 = vector.extract_strided_slice %1 {offsets = [0, 0], sizes = [1, 448], strides = [1, 1]} : vector<8x448xf32> to vector<1x448xf32>
    %3 = vector.shape_cast %2 : vector<1x448xf32> to vector<1x448xf32>
    %4 = vector.broadcast %3 : vector<1x448xf32> to vector<4x448xf32>
    %c0_3 = arith.constant 0 : index
    %c0_4 = arith.constant 0 : index
    %c0_5 = arith.constant 0 : index
    %5 = vector.load %arg9[%c0_3, %c0_4, %c0_5] : memref<4x8x448xf32, #tpu.memory_space<vmem>>, vector<1x4x448xf32>
    %6 = vector.shape_cast %5 : vector<1x4x448xf32> to vector<4x448xf32>
    %7 = vector.shape_cast %4 : vector<4x448xf32> to vector<1x4x448xf32>
    tpu.vector_store %arg9[%c0_3, %c0_4, %c0_5], %7 {strides = array<i32>} : memref<4x8x448xf32, #tpu.memory_space<vmem>>, vector<1x4x448xf32>,
    %8 = vector.extract_strided_slice %1 {offsets = [4, 0], sizes = [1, 448], strides = [1, 1]} : vector<8x448xf32> to vector<1x448xf32>
    %9 = vector.shape_cast %8 : vector<1x448xf32> to vector<1x448xf32>
    %10 = vector.broadcast %9 : vector<1x448xf32> to vector<4x448xf32>
    %c0_6 = arith.constant 0 : index
    %c4 = arith.constant 4 : index
    %c0_7 = arith.constant 0 : index
    %11 = vector.load %arg9[%c0_6, %c4, %c0_7] : memref<4x8x448xf32, #tpu.memory_space<vmem>>, vector<1x4x448xf32>
    %12 = vector.shape_cast %11 : vector<1x4x448xf32> to vector<4x448xf32>
    %13 = vector.shape_cast %10 : vector<4x448xf32> to vector<1x4x448xf32>
    tpu.vector_store %arg9[%c0_6, %c4, %c0_7], %13 {strides = array<i32>} : memref<4x8x448xf32, #tpu.memory_space<vmem>>, vector<1x4x448xf32>,
    %14 = vector.extract_strided_slice %1 {offsets = [1, 0], sizes = [1, 448], strides = [1, 1]} : vector<8x448xf32> to vector<1x448xf32>
    %15 = vector.shape_cast %14 : vector<1x448xf32> to vector<1x448xf32>
    %16 = vector.broadcast %15 : vector<1x448xf32> to vector<4x448xf32>
    %c1 = arith.constant 1 : index
    %c0_8 = arith.constant 0 : index
    %c0_9 = arith.constant 0 : index
    %17 = vector.load %arg9[%c1, %c0_8, %c0_9] : memref<4x8x448xf32, #tpu.memory_space<vmem>>, vector<1x4x448xf32>
    %18 = vector.shape_cast %17 : vector<1x4x448xf32> to vector<4x448xf32>
    %19 = vector.shape_cast %16 : vector<4x448xf32> to vector<1x4x448xf32>
    tpu.vector_store %arg9[%c1, %c0_8, %c0_9], %19 {strides = array<i32>} : memref<4x8x448xf32, #tpu.memory_space<vmem>>, vector<1x4x448xf32>,
    %20 = vector.extract_strided_slice %1 {offsets = [5, 0], sizes = [1, 448], strides = [1, 1]} : vector<8x448xf32> to vector<1x448xf32>
    %21 = vector.shape_cast %20 : vector<1x448xf32> to vector<1x448xf32>
    %22 = vector.broadcast %21 : vector<1x448xf32> to vector<4x448xf32>
    %c1_10 = arith.constant 1 : index
    %c4_11 = arith.constant 4 : index
    %c0_12 = arith.constant 0 : index
    %23 = vector.load %arg9[%c1_10, %c4_11, %c0_12] : memref<4x8x448xf32, #tpu.memory_space<vmem>>, vector<1x4x448xf32>
    %24 = vector.shape_cast %23 : vector<1x4x448xf32> to vector<4x448xf32>
    %25 = vector.shape_cast %22 : vector<4x448xf32> to vector<1x4x448xf32>
    tpu.vector_store %arg9[%c1_10, %c4_11, %c0_12], %25 {strides = array<i32>} : memref<4x8x448xf32, #tpu.memory_space<vmem>>, vector<1x4x448xf32>,
    %26 = vector.extract_strided_slice %1 {offsets = [2, 0], sizes = [1, 448], strides = [1, 1]} : vector<8x448xf32> to vector<1x448xf32>
    %27 = vector.shape_cast %26 : vector<1x448xf32> to vector<1x448xf32>
    %28 = vector.broadcast %27 : vector<1x448xf32> to vector<4x448xf32>
    %c2 = arith.constant 2 : index
    %c0_13 = arith.constant 0 : index
    %c0_14 = arith.constant 0 : index
    %29 = vector.load %arg9[%c2, %c0_13, %c0_14] : memref<4x8x448xf32, #tpu.memory_space<vmem>>, vector<1x4x448xf32>
    %30 = vector.shape_cast %29 : vector<1x4x448xf32> to vector<4x448xf32>
    %31 = vector.shape_cast %28 : vector<4x448xf32> to vector<1x4x448xf32>
    tpu.vector_store %arg9[%c2, %c0_13, %c0_14], %31 {strides = array<i32>} : memref<4x8x448xf32, #tpu.memory_space<vmem>>, vector<1x4x448xf32>,
    %32 = vector.extract_strided_slice %1 {offsets = [6, 0], sizes = [1, 448], strides = [1, 1]} : vector<8x448xf32> to vector<1x448xf32>
    %33 = vector.shape_cast %32 : vector<1x448xf32> to vector<1x448xf32>
    %34 = vector.broadcast %33 : vector<1x448xf32> to vector<4x448xf32>
    %c2_15 = arith.constant 2 : index
    %c4_16 = arith.constant 4 : index
    %c0_17 = arith.constant 0 : index
    %35 = vector.load %arg9[%c2_15, %c4_16, %c0_17] : memref<4x8x448xf32, #tpu.memory_space<vmem>>, vector<1x4x448xf32>
    %36 = vector.shape_cast %35 : vector<1x4x448xf32> to vector<4x448xf32>
    %37 = vector.shape_cast %34 : vector<4x448xf32> to vector<1x4x448xf32>
    tpu.vector_store %arg9[%c2_15, %c4_16, %c0_17], %37 {strides = array<i32>} : memref<4x8x448xf32, #tpu.memory_space<vmem>>, vector<1x4x448xf32>,
    %38 = vector.extract_strided_slice %1 {offsets = [3, 0], sizes = [1, 448], strides = [1, 1]} : vector<8x448xf32> to vector<1x448xf32>
    %39 = vector.shape_cast %38 : vector<1x448xf32> to vector<1x448xf32>
    %40 = vector.broadcast %39 : vector<1x448xf32> to vector<4x448xf32>
    %c3 = arith.constant 3 : index
    %c0_18 = arith.constant 0 : index
    %c0_19 = arith.constant 0 : index
    %41 = vector.load %arg9[%c3, %c0_18, %c0_19] : memref<4x8x448xf32, #tpu.memory_space<vmem>>, vector<1x4x448xf32>
    %42 = vector.shape_cast %41 : vector<1x4x448xf32> to vector<4x448xf32>
    %43 = vector.shape_cast %40 : vector<4x448xf32> to vector<1x4x448xf32>
    tpu.vector_store %arg9[%c3, %c0_18, %c0_19], %43 {strides = array<i32>} : memref<4x8x448xf32, #tpu.memory_space<vmem>>, vector<1x4x448xf32>,
    %44 = vector.extract_strided_slice %1 {offsets = [7, 0], sizes = [1, 448], strides = [1, 1]} : vector<8x448xf32> to vector<1x448xf32>
    %45 = vector.shape_cast %44 : vector<1x448xf32> to vector<1x448xf32>
    %46 = vector.broadcast %45 : vector<1x448xf32> to vector<4x448xf32>
    %c3_20 = arith.constant 3 : index
    %c4_21 = arith.constant 4 : index
    %c0_22 = arith.constant 0 : index
    %47 = vector.load %arg9[%c3_20, %c4_21, %c0_22] : memref<4x8x448xf32, #tpu.memory_space<vmem>>, vector<1x4x448xf32>
    %48 = vector.shape_cast %47 : vector<1x4x448xf32> to vector<4x448xf32>
    %49 = vector.shape_cast %46 : vector<4x448xf32> to vector<1x4x448xf32>
    tpu.vector_store %arg9[%c3_20, %c4_21, %c0_22], %49 {strides = array<i32>} : memref<4x8x448xf32, #tpu.memory_space<vmem>>, vector<1x4x448xf32>,
    %c0_23 = arith.constant 0 : index
    %c0_24 = arith.constant 0 : index
    %c109 = arith.constant 109 : index
    %50 = vector.load %arg9[%c0_23, %c0_24, %c109] : memref<4x8x448xf32, #tpu.memory_space<vmem>>, vector<1x8x288xf32>
    %51 = vector.shape_cast %50 : vector<1x8x288xf32> to vector<8x288xf32>
    %c0_25 = arith.constant 0 : index
    %c0_26 = arith.constant 0 : index
    %52 = vector.load %arg2[%c0_25, %c0_26] : memref<8x36xf32, #tpu.memory_space<vmem>>, vector<8x1xf32>
    %53 = vector.broadcast %52 : vector<8x1xf32> to vector<8x288xf32>
    %54 = arith.mulf %53, %51 : vector<8x288xf32>
    %c0_27 = arith.constant 0 : index
    %c0_28 = arith.constant 0 : index
    %c110 = arith.constant 110 : index
    %55 = vector.load %arg9[%c0_27, %c0_28, %c110] : memref<4x8x448xf32, #tpu.memory_space<vmem>>, vector<1x8x288xf32>
    %56 = vector.shape_cast %55 : vector<1x8x288xf32> to vector<8x288xf32>
    %c0_29 = arith.constant 0 : index
    %c1_30 = arith.constant 1 : index
    %57 = vector.load %arg2[%c0_29, %c1_30] : memref<8x36xf32, #tpu.memory_space<vmem>>, vector<8x1xf32>
    %58 = vector.broadcast %57 : vector<8x1xf32> to vector<8x288xf32>
    %59 = arith.mulf %58, %56 : vector<8x288xf32>
    %60 = arith.addf %54, %59 : vector<8x288xf32>
    %c0_31 = arith.constant 0 : index
    %c0_32 = arith.constant 0 : index
    %c111 = arith.constant 111 : index
    %61 = vector.load %arg9[%c0_31, %c0_32, %c111] : memref<4x8x448xf32, #tpu.memory_space<vmem>>, vector<1x8x288xf32>
    %62 = vector.shape_cast %61 : vector<1x8x288xf32> to vector<8x288xf32>
    %c0_33 = arith.constant 0 : index
    %c2_34 = arith.constant 2 : index
    %63 = vector.load %arg2[%c0_33, %c2_34] : memref<8x36xf32, #tpu.memory_space<vmem>>, vector<8x1xf32>
    %64 = vector.broadcast %63 : vector<8x1xf32> to vector<8x288xf32>
    %65 = arith.mulf %64, %62 : vector<8x288xf32>
    %66 = arith.addf %60, %65 : vector<8x288xf32>
    %c0_35 = arith.constant 0 : index
    %c0_36 = arith.constant 0 : index
    %c127 = arith.constant 127 : index
    %67 = vector.load %arg9[%c0_35, %c0_36, %c127] : memref<4x8x448xf32, #tpu.memory_space<vmem>>, vector<1x8x288xf32>
    %68 = vector.shape_cast %67 : vector<1x8x288xf32> to vector<8x288xf32>
    %c0_37 = arith.constant 0 : index
    %c3_38 = arith.constant 3 : index
    %69 = vector.load %arg2[%c0_37, %c3_38] : memref<8x36xf32, #tpu.memory_space<vmem>>, vector<8x1xf32>
    %70 = vector.broadcast %69 : vector<8x1xf32> to vector<8x288xf32>
    %71 = arith.mulf %70, %68 : vector<8x288xf32>
    %72 = arith.addf %66, %71 : vector<8x288xf32>
    %c0_39 = arith.constant 0 : index
    %c0_40 = arith.constant 0 : index
    %c128 = arith.constant 128 : index
    %73 = vector.load %arg9[%c0_39, %c0_40, %c128] : memref<4x8x448xf32, #tpu.memory_space<vmem>>, vector<1x8x288xf32>
    %74 = vector.shape_cast %73 : vector<1x8x288xf32> to vector<8x288xf32>
    %c0_41 = arith.constant 0 : index
    %c4_42 = arith.constant 4 : index
    %75 = vector.load %arg2[%c0_41, %c4_42] : memref<8x36xf32, #tpu.memory_space<vmem>>, vector<8x1xf32>
    %76 = vector.broadcast %75 : vector<8x1xf32> to vector<8x288xf32>
    %77 = arith.mulf %76, %74 : vector<8x288xf32>
    %78 = arith.addf %72, %77 : vector<8x288xf32>
    %c0_43 = arith.constant 0 : index
    %c0_44 = arith.constant 0 : index
    %c129 = arith.constant 129 : index
    %79 = vector.load %arg9[%c0_43, %c0_44, %c129] : memref<4x8x448xf32, #tpu.memory_space<vmem>>, vector<1x8x288xf32>
    %80 = vector.shape_cast %79 : vector<1x8x288xf32> to vector<8x288xf32>
    %c0_45 = arith.constant 0 : index
    %c5 = arith.constant 5 : index
    %81 = vector.load %arg2[%c0_45, %c5] : memref<8x36xf32, #tpu.memory_space<vmem>>, vector<8x1xf32>
    %82 = vector.broadcast %81 : vector<8x1xf32> to vector<8x288xf32>
    %83 = arith.mulf %82, %80 : vector<8x288xf32>
    %84 = arith.addf %78, %83 : vector<8x288xf32>
    %c0_46 = arith.constant 0 : index
    %c0_47 = arith.constant 0 : index
    %c145 = arith.constant 145 : index
    %85 = vector.load %arg9[%c0_46, %c0_47, %c145] : memref<4x8x448xf32, #tpu.memory_space<vmem>>, vector<1x8x288xf32>
    %86 = vector.shape_cast %85 : vector<1x8x288xf32> to vector<8x288xf32>
    %c0_48 = arith.constant 0 : index
    %c6 = arith.constant 6 : index
    %87 = vector.load %arg2[%c0_48, %c6] : memref<8x36xf32, #tpu.memory_space<vmem>>, vector<8x1xf32>
    %88 = vector.broadcast %87 : vector<8x1xf32> to vector<8x288xf32>
    %89 = arith.mulf %88, %86 : vector<8x288xf32>
    %90 = arith.addf %84, %89 : vector<8x288xf32>
    %c0_49 = arith.constant 0 : index
    %c0_50 = arith.constant 0 : index
    %c146 = arith.constant 146 : index
    %91 = vector.load %arg9[%c0_49, %c0_50, %c146] : memref<4x8x448xf32, #tpu.memory_space<vmem>>, vector<1x8x288xf32>
    %92 = vector.shape_cast %91 : vector<1x8x288xf32> to vector<8x288xf32>
    %c0_51 = arith.constant 0 : index
    %c7 = arith.constant 7 : index
    %93 = vector.load %arg2[%c0_51, %c7] : memref<8x36xf32, #tpu.memory_space<vmem>>, vector<8x1xf32>
    %94 = vector.broadcast %93 : vector<8x1xf32> to vector<8x288xf32>
    %95 = arith.mulf %94, %92 : vector<8x288xf32>
    %96 = arith.addf %90, %95 : vector<8x288xf32>
    %c0_52 = arith.constant 0 : index
    %c0_53 = arith.constant 0 : index
    %c147 = arith.constant 147 : index
    %97 = vector.load %arg9[%c0_52, %c0_53, %c147] : memref<4x8x448xf32, #tpu.memory_space<vmem>>, vector<1x8x288xf32>
    %98 = vector.shape_cast %97 : vector<1x8x288xf32> to vector<8x288xf32>
    %c0_54 = arith.constant 0 : index
    %c8 = arith.constant 8 : index
    %99 = vector.load %arg2[%c0_54, %c8] : memref<8x36xf32, #tpu.memory_space<vmem>>, vector<8x1xf32>
    %100 = vector.broadcast %99 : vector<8x1xf32> to vector<8x288xf32>
    %101 = arith.mulf %100, %98 : vector<8x288xf32>
    %102 = arith.addf %96, %101 : vector<8x288xf32>
    %c1_55 = arith.constant 1 : index
    %c0_56 = arith.constant 0 : index
    %c109_57 = arith.constant 109 : index
    %103 = vector.load %arg9[%c1_55, %c0_56, %c109_57] : memref<4x8x448xf32, #tpu.memory_space<vmem>>, vector<1x8x288xf32>
    %104 = vector.shape_cast %103 : vector<1x8x288xf32> to vector<8x288xf32>
    %c0_58 = arith.constant 0 : index
    %c9 = arith.constant 9 : index
    %105 = vector.load %arg2[%c0_58, %c9] : memref<8x36xf32, #tpu.memory_space<vmem>>, vector<8x1xf32>
    %106 = vector.broadcast %105 : vector<8x1xf32> to vector<8x288xf32>
    %107 = arith.mulf %106, %104 : vector<8x288xf32>
    %108 = arith.addf %102, %107 : vector<8x288xf32>
    %c1_59 = arith.constant 1 : index
    %c0_60 = arith.constant 0 : index
    %c110_61 = arith.constant 110 : index
    %109 = vector.load %arg9[%c1_59, %c0_60, %c110_61] : memref<4x8x448xf32, #tpu.memory_space<vmem>>, vector<1x8x288xf32>
    %110 = vector.shape_cast %109 : vector<1x8x288xf32> to vector<8x288xf32>
    %c0_62 = arith.constant 0 : index
    %c10 = arith.constant 10 : index
    %111 = vector.load %arg2[%c0_62, %c10] : memref<8x36xf32, #tpu.memory_space<vmem>>, vector<8x1xf32>
    %112 = vector.broadcast %111 : vector<8x1xf32> to vector<8x288xf32>
    %113 = arith.mulf %112, %110 : vector<8x288xf32>
    %114 = arith.addf %108, %113 : vector<8x288xf32>
    %c1_63 = arith.constant 1 : index
    %c0_64 = arith.constant 0 : index
    %c111_65 = arith.constant 111 : index
    %115 = vector.load %arg9[%c1_63, %c0_64, %c111_65] : memref<4x8x448xf32, #tpu.memory_space<vmem>>, vector<1x8x288xf32>
    %116 = vector.shape_cast %115 : vector<1x8x288xf32> to vector<8x288xf32>
    %c0_66 = arith.constant 0 : index
    %c11 = arith.constant 11 : index
    %117 = vector.load %arg2[%c0_66, %c11] : memref<8x36xf32, #tpu.memory_space<vmem>>, vector<8x1xf32>
    %118 = vector.broadcast %117 : vector<8x1xf32> to vector<8x288xf32>
    %119 = arith.mulf %118, %116 : vector<8x288xf32>
    %120 = arith.addf %114, %119 : vector<8x288xf32>
    %c1_67 = arith.constant 1 : index
    %c0_68 = arith.constant 0 : index
    %c127_69 = arith.constant 127 : index
    %121 = vector.load %arg9[%c1_67, %c0_68, %c127_69] : memref<4x8x448xf32, #tpu.memory_space<vmem>>, vector<1x8x288xf32>
    %122 = vector.shape_cast %121 : vector<1x8x288xf32> to vector<8x288xf32>
    %c0_70 = arith.constant 0 : index
    %c12 = arith.constant 12 : index
    %123 = vector.load %arg2[%c0_70, %c12] : memref<8x36xf32, #tpu.memory_space<vmem>>, vector<8x1xf32>
    %124 = vector.broadcast %123 : vector<8x1xf32> to vector<8x288xf32>
    %125 = arith.mulf %124, %122 : vector<8x288xf32>
    %126 = arith.addf %120, %125 : vector<8x288xf32>
    %c1_71 = arith.constant 1 : index
    %c0_72 = arith.constant 0 : index
    %c128_73 = arith.constant 128 : index
    %127 = vector.load %arg9[%c1_71, %c0_72, %c128_73] : memref<4x8x448xf32, #tpu.memory_space<vmem>>, vector<1x8x288xf32>
    %128 = vector.shape_cast %127 : vector<1x8x288xf32> to vector<8x288xf32>
    %c0_74 = arith.constant 0 : index
    %c13 = arith.constant 13 : index
    %129 = vector.load %arg2[%c0_74, %c13] : memref<8x36xf32, #tpu.memory_space<vmem>>, vector<8x1xf32>
    %130 = vector.broadcast %129 : vector<8x1xf32> to vector<8x288xf32>
    %131 = arith.mulf %130, %128 : vector<8x288xf32>
    %132 = arith.addf %126, %131 : vector<8x288xf32>
    %c1_75 = arith.constant 1 : index
    %c0_76 = arith.constant 0 : index
    %c129_77 = arith.constant 129 : index
    %133 = vector.load %arg9[%c1_75, %c0_76, %c129_77] : memref<4x8x448xf32, #tpu.memory_space<vmem>>, vector<1x8x288xf32>
    %134 = vector.shape_cast %133 : vector<1x8x288xf32> to vector<8x288xf32>
    %c0_78 = arith.constant 0 : index
    %c14 = arith.constant 14 : index
    %135 = vector.load %arg2[%c0_78, %c14] : memref<8x36xf32, #tpu.memory_space<vmem>>, vector<8x1xf32>
    %136 = vector.broadcast %135 : vector<8x1xf32> to vector<8x288xf32>
    %137 = arith.mulf %136, %134 : vector<8x288xf32>
    %138 = arith.addf %132, %137 : vector<8x288xf32>
    %c1_79 = arith.constant 1 : index
    %c0_80 = arith.constant 0 : index
    %c145_81 = arith.constant 145 : index
    %139 = vector.load %arg9[%c1_79, %c0_80, %c145_81] : memref<4x8x448xf32, #tpu.memory_space<vmem>>, vector<1x8x288xf32>
    %140 = vector.shape_cast %139 : vector<1x8x288xf32> to vector<8x288xf32>
    %c0_82 = arith.constant 0 : index
    %c15 = arith.constant 15 : index
    %141 = vector.load %arg2[%c0_82, %c15] : memref<8x36xf32, #tpu.memory_space<vmem>>, vector<8x1xf32>
    %142 = vector.broadcast %141 : vector<8x1xf32> to vector<8x288xf32>
    %143 = arith.mulf %142, %140 : vector<8x288xf32>
    %144 = arith.addf %138, %143 : vector<8x288xf32>
    %c1_83 = arith.constant 1 : index
    %c0_84 = arith.constant 0 : index
    %c146_85 = arith.constant 146 : index
    %145 = vector.load %arg9[%c1_83, %c0_84, %c146_85] : memref<4x8x448xf32, #tpu.memory_space<vmem>>, vector<1x8x288xf32>
    %146 = vector.shape_cast %145 : vector<1x8x288xf32> to vector<8x288xf32>
    %c0_86 = arith.constant 0 : index
    %c16 = arith.constant 16 : index
    %147 = vector.load %arg2[%c0_86, %c16] : memref<8x36xf32, #tpu.memory_space<vmem>>, vector<8x1xf32>
    %148 = vector.broadcast %147 : vector<8x1xf32> to vector<8x288xf32>
    %149 = arith.mulf %148, %146 : vector<8x288xf32>
    %150 = arith.addf %144, %149 : vector<8x288xf32>
    %c1_87 = arith.constant 1 : index
    %c0_88 = arith.constant 0 : index
    %c147_89 = arith.constant 147 : index
    %151 = vector.load %arg9[%c1_87, %c0_88, %c147_89] : memref<4x8x448xf32, #tpu.memory_space<vmem>>, vector<1x8x288xf32>
    %152 = vector.shape_cast %151 : vector<1x8x288xf32> to vector<8x288xf32>
    %c0_90 = arith.constant 0 : index
    %c17 = arith.constant 17 : index
    %153 = vector.load %arg2[%c0_90, %c17] : memref<8x36xf32, #tpu.memory_space<vmem>>, vector<8x1xf32>
    %154 = vector.broadcast %153 : vector<8x1xf32> to vector<8x288xf32>
    %155 = arith.mulf %154, %152 : vector<8x288xf32>
    %156 = arith.addf %150, %155 : vector<8x288xf32>
    %c2_91 = arith.constant 2 : index
    %c0_92 = arith.constant 0 : index
    %c109_93 = arith.constant 109 : index
    %157 = vector.load %arg9[%c2_91, %c0_92, %c109_93] : memref<4x8x448xf32, #tpu.memory_space<vmem>>, vector<1x8x288xf32>
    %158 = vector.shape_cast %157 : vector<1x8x288xf32> to vector<8x288xf32>
    %c0_94 = arith.constant 0 : index
    %c18 = arith.constant 18 : index
    %159 = vector.load %arg2[%c0_94, %c18] : memref<8x36xf32, #tpu.memory_space<vmem>>, vector<8x1xf32>
    %160 = vector.broadcast %159 : vector<8x1xf32> to vector<8x288xf32>
    %161 = arith.mulf %160, %158 : vector<8x288xf32>
    %162 = arith.addf %156, %161 : vector<8x288xf32>
    %c2_95 = arith.constant 2 : index
    %c0_96 = arith.constant 0 : index
    %c110_97 = arith.constant 110 : index
    %163 = vector.load %arg9[%c2_95, %c0_96, %c110_97] : memref<4x8x448xf32, #tpu.memory_space<vmem>>, vector<1x8x288xf32>
    %164 = vector.shape_cast %163 : vector<1x8x288xf32> to vector<8x288xf32>
    %c0_98 = arith.constant 0 : index
    %c19 = arith.constant 19 : index
    %165 = vector.load %arg2[%c0_98, %c19] : memref<8x36xf32, #tpu.memory_space<vmem>>, vector<8x1xf32>
    %166 = vector.broadcast %165 : vector<8x1xf32> to vector<8x288xf32>
    %167 = arith.mulf %166, %164 : vector<8x288xf32>
    %168 = arith.addf %162, %167 : vector<8x288xf32>
    %c2_99 = arith.constant 2 : index
    %c0_100 = arith.constant 0 : index
    %c111_101 = arith.constant 111 : index
    %169 = vector.load %arg9[%c2_99, %c0_100, %c111_101] : memref<4x8x448xf32, #tpu.memory_space<vmem>>, vector<1x8x288xf32>
    %170 = vector.shape_cast %169 : vector<1x8x288xf32> to vector<8x288xf32>
    %c0_102 = arith.constant 0 : index
    %c20 = arith.constant 20 : index
    %171 = vector.load %arg2[%c0_102, %c20] : memref<8x36xf32, #tpu.memory_space<vmem>>, vector<8x1xf32>
    %172 = vector.broadcast %171 : vector<8x1xf32> to vector<8x288xf32>
    %173 = arith.mulf %172, %170 : vector<8x288xf32>
    %174 = arith.addf %168, %173 : vector<8x288xf32>
    %c2_103 = arith.constant 2 : index
    %c0_104 = arith.constant 0 : index
    %c127_105 = arith.constant 127 : index
    %175 = vector.load %arg9[%c2_103, %c0_104, %c127_105] : memref<4x8x448xf32, #tpu.memory_space<vmem>>, vector<1x8x288xf32>
    %176 = vector.shape_cast %175 : vector<1x8x288xf32> to vector<8x288xf32>
    %c0_106 = arith.constant 0 : index
    %c21 = arith.constant 21 : index
    %177 = vector.load %arg2[%c0_106, %c21] : memref<8x36xf32, #tpu.memory_space<vmem>>, vector<8x1xf32>
    %178 = vector.broadcast %177 : vector<8x1xf32> to vector<8x288xf32>
    %179 = arith.mulf %178, %176 : vector<8x288xf32>
    %180 = arith.addf %174, %179 : vector<8x288xf32>
    %c2_107 = arith.constant 2 : index
    %c0_108 = arith.constant 0 : index
    %c128_109 = arith.constant 128 : index
    %181 = vector.load %arg9[%c2_107, %c0_108, %c128_109] : memref<4x8x448xf32, #tpu.memory_space<vmem>>, vector<1x8x288xf32>
    %182 = vector.shape_cast %181 : vector<1x8x288xf32> to vector<8x288xf32>
    %c0_110 = arith.constant 0 : index
    %c22 = arith.constant 22 : index
    %183 = vector.load %arg2[%c0_110, %c22] : memref<8x36xf32, #tpu.memory_space<vmem>>, vector<8x1xf32>
    %184 = vector.broadcast %183 : vector<8x1xf32> to vector<8x288xf32>
    %185 = arith.mulf %184, %182 : vector<8x288xf32>
    %186 = arith.addf %180, %185 : vector<8x288xf32>
    %c2_111 = arith.constant 2 : index
    %c0_112 = arith.constant 0 : index
    %c129_113 = arith.constant 129 : index
    %187 = vector.load %arg9[%c2_111, %c0_112, %c129_113] : memref<4x8x448xf32, #tpu.memory_space<vmem>>, vector<1x8x288xf32>
    %188 = vector.shape_cast %187 : vector<1x8x288xf32> to vector<8x288xf32>
    %c0_114 = arith.constant 0 : index
    %c23 = arith.constant 23 : index
    %189 = vector.load %arg2[%c0_114, %c23] : memref<8x36xf32, #tpu.memory_space<vmem>>, vector<8x1xf32>
    %190 = vector.broadcast %189 : vector<8x1xf32> to vector<8x288xf32>
    %191 = arith.mulf %190, %188 : vector<8x288xf32>
    %192 = arith.addf %186, %191 : vector<8x288xf32>
    %c2_115 = arith.constant 2 : index
    %c0_116 = arith.constant 0 : index
    %c145_117 = arith.constant 145 : index
    %193 = vector.load %arg9[%c2_115, %c0_116, %c145_117] : memref<4x8x448xf32, #tpu.memory_space<vmem>>, vector<1x8x288xf32>
    %194 = vector.shape_cast %193 : vector<1x8x288xf32> to vector<8x288xf32>
    %c0_118 = arith.constant 0 : index
    %c24 = arith.constant 24 : index
    %195 = vector.load %arg2[%c0_118, %c24] : memref<8x36xf32, #tpu.memory_space<vmem>>, vector<8x1xf32>
    %196 = vector.broadcast %195 : vector<8x1xf32> to vector<8x288xf32>
    %197 = arith.mulf %196, %194 : vector<8x288xf32>
    %198 = arith.addf %192, %197 : vector<8x288xf32>
    %c2_119 = arith.constant 2 : index
    %c0_120 = arith.constant 0 : index
    %c146_121 = arith.constant 146 : index
    %199 = vector.load %arg9[%c2_119, %c0_120, %c146_121] : memref<4x8x448xf32, #tpu.memory_space<vmem>>, vector<1x8x288xf32>
    %200 = vector.shape_cast %199 : vector<1x8x288xf32> to vector<8x288xf32>
    %c0_122 = arith.constant 0 : index
    %c25 = arith.constant 25 : index
    %201 = vector.load %arg2[%c0_122, %c25] : memref<8x36xf32, #tpu.memory_space<vmem>>, vector<8x1xf32>
    %202 = vector.broadcast %201 : vector<8x1xf32> to vector<8x288xf32>
    %203 = arith.mulf %202, %200 : vector<8x288xf32>
    %204 = arith.addf %198, %203 : vector<8x288xf32>
    %c2_123 = arith.constant 2 : index
    %c0_124 = arith.constant 0 : index
    %c147_125 = arith.constant 147 : index
    %205 = vector.load %arg9[%c2_123, %c0_124, %c147_125] : memref<4x8x448xf32, #tpu.memory_space<vmem>>, vector<1x8x288xf32>
    %206 = vector.shape_cast %205 : vector<1x8x288xf32> to vector<8x288xf32>
    %c0_126 = arith.constant 0 : index
    %c26 = arith.constant 26 : index
    %207 = vector.load %arg2[%c0_126, %c26] : memref<8x36xf32, #tpu.memory_space<vmem>>, vector<8x1xf32>
    %208 = vector.broadcast %207 : vector<8x1xf32> to vector<8x288xf32>
    %209 = arith.mulf %208, %206 : vector<8x288xf32>
    %210 = arith.addf %204, %209 : vector<8x288xf32>
    %c3_127 = arith.constant 3 : index
    %c0_128 = arith.constant 0 : index
    %c109_129 = arith.constant 109 : index
    %211 = vector.load %arg9[%c3_127, %c0_128, %c109_129] : memref<4x8x448xf32, #tpu.memory_space<vmem>>, vector<1x8x288xf32>
    %212 = vector.shape_cast %211 : vector<1x8x288xf32> to vector<8x288xf32>
    %c0_130 = arith.constant 0 : index
    %c27 = arith.constant 27 : index
    %213 = vector.load %arg2[%c0_130, %c27] : memref<8x36xf32, #tpu.memory_space<vmem>>, vector<8x1xf32>
    %214 = vector.broadcast %213 : vector<8x1xf32> to vector<8x288xf32>
    %215 = arith.mulf %214, %212 : vector<8x288xf32>
    %216 = arith.addf %210, %215 : vector<8x288xf32>
    %c3_131 = arith.constant 3 : index
    %c0_132 = arith.constant 0 : index
    %c110_133 = arith.constant 110 : index
    %217 = vector.load %arg9[%c3_131, %c0_132, %c110_133] : memref<4x8x448xf32, #tpu.memory_space<vmem>>, vector<1x8x288xf32>
    %218 = vector.shape_cast %217 : vector<1x8x288xf32> to vector<8x288xf32>
    %c0_134 = arith.constant 0 : index
    %c28 = arith.constant 28 : index
    %219 = vector.load %arg2[%c0_134, %c28] : memref<8x36xf32, #tpu.memory_space<vmem>>, vector<8x1xf32>
    %220 = vector.broadcast %219 : vector<8x1xf32> to vector<8x288xf32>
    %221 = arith.mulf %220, %218 : vector<8x288xf32>
    %222 = arith.addf %216, %221 : vector<8x288xf32>
    %c3_135 = arith.constant 3 : index
    %c0_136 = arith.constant 0 : index
    %c111_137 = arith.constant 111 : index
    %223 = vector.load %arg9[%c3_135, %c0_136, %c111_137] : memref<4x8x448xf32, #tpu.memory_space<vmem>>, vector<1x8x288xf32>
    %224 = vector.shape_cast %223 : vector<1x8x288xf32> to vector<8x288xf32>
    %c0_138 = arith.constant 0 : index
    %c29 = arith.constant 29 : index
    %225 = vector.load %arg2[%c0_138, %c29] : memref<8x36xf32, #tpu.memory_space<vmem>>, vector<8x1xf32>
    %226 = vector.broadcast %225 : vector<8x1xf32> to vector<8x288xf32>
    %227 = arith.mulf %226, %224 : vector<8x288xf32>
    %228 = arith.addf %222, %227 : vector<8x288xf32>
    %c3_139 = arith.constant 3 : index
    %c0_140 = arith.constant 0 : index
    %c127_141 = arith.constant 127 : index
    %229 = vector.load %arg9[%c3_139, %c0_140, %c127_141] : memref<4x8x448xf32, #tpu.memory_space<vmem>>, vector<1x8x288xf32>
    %230 = vector.shape_cast %229 : vector<1x8x288xf32> to vector<8x288xf32>
    %c0_142 = arith.constant 0 : index
    %c30 = arith.constant 30 : index
    %231 = vector.load %arg2[%c0_142, %c30] : memref<8x36xf32, #tpu.memory_space<vmem>>, vector<8x1xf32>
    %232 = vector.broadcast %231 : vector<8x1xf32> to vector<8x288xf32>
    %233 = arith.mulf %232, %230 : vector<8x288xf32>
    %234 = arith.addf %228, %233 : vector<8x288xf32>
    %c3_143 = arith.constant 3 : index
    %c0_144 = arith.constant 0 : index
    %c128_145 = arith.constant 128 : index
    %235 = vector.load %arg9[%c3_143, %c0_144, %c128_145] : memref<4x8x448xf32, #tpu.memory_space<vmem>>, vector<1x8x288xf32>
    %236 = vector.shape_cast %235 : vector<1x8x288xf32> to vector<8x288xf32>
    %c0_146 = arith.constant 0 : index
    %c31 = arith.constant 31 : index
    %237 = vector.load %arg2[%c0_146, %c31] : memref<8x36xf32, #tpu.memory_space<vmem>>, vector<8x1xf32>
    %238 = vector.broadcast %237 : vector<8x1xf32> to vector<8x288xf32>
    %239 = arith.mulf %238, %236 : vector<8x288xf32>
    %240 = arith.addf %234, %239 : vector<8x288xf32>
    %c3_147 = arith.constant 3 : index
    %c0_148 = arith.constant 0 : index
    %c129_149 = arith.constant 129 : index
    %241 = vector.load %arg9[%c3_147, %c0_148, %c129_149] : memref<4x8x448xf32, #tpu.memory_space<vmem>>, vector<1x8x288xf32>
    %242 = vector.shape_cast %241 : vector<1x8x288xf32> to vector<8x288xf32>
    %c0_150 = arith.constant 0 : index
    %c32 = arith.constant 32 : index
    %243 = vector.load %arg2[%c0_150, %c32] : memref<8x36xf32, #tpu.memory_space<vmem>>, vector<8x1xf32>
    %244 = vector.broadcast %243 : vector<8x1xf32> to vector<8x288xf32>
    %245 = arith.mulf %244, %242 : vector<8x288xf32>
    %246 = arith.addf %240, %245 : vector<8x288xf32>
    %c3_151 = arith.constant 3 : index
    %c0_152 = arith.constant 0 : index
    %c145_153 = arith.constant 145 : index
    %247 = vector.load %arg9[%c3_151, %c0_152, %c145_153] : memref<4x8x448xf32, #tpu.memory_space<vmem>>, vector<1x8x288xf32>
    %248 = vector.shape_cast %247 : vector<1x8x288xf32> to vector<8x288xf32>
    %c0_154 = arith.constant 0 : index
    %c33 = arith.constant 33 : index
    %249 = vector.load %arg2[%c0_154, %c33] : memref<8x36xf32, #tpu.memory_space<vmem>>, vector<8x1xf32>
    %250 = vector.broadcast %249 : vector<8x1xf32> to vector<8x288xf32>
    %251 = arith.mulf %250, %248 : vector<8x288xf32>
    %252 = arith.addf %246, %251 : vector<8x288xf32>
    %c3_155 = arith.constant 3 : index
    %c0_156 = arith.constant 0 : index
    %c146_157 = arith.constant 146 : index
    %253 = vector.load %arg9[%c3_155, %c0_156, %c146_157] : memref<4x8x448xf32, #tpu.memory_space<vmem>>, vector<1x8x288xf32>
    %254 = vector.shape_cast %253 : vector<1x8x288xf32> to vector<8x288xf32>
    %c0_158 = arith.constant 0 : index
    %c34 = arith.constant 34 : index
    %255 = vector.load %arg2[%c0_158, %c34] : memref<8x36xf32, #tpu.memory_space<vmem>>, vector<8x1xf32>
    %256 = vector.broadcast %255 : vector<8x1xf32> to vector<8x288xf32>
    %257 = arith.mulf %256, %254 : vector<8x288xf32>
    %258 = arith.addf %252, %257 : vector<8x288xf32>
    %c3_159 = arith.constant 3 : index
    %c0_160 = arith.constant 0 : index
    %c147_161 = arith.constant 147 : index
    %259 = vector.load %arg9[%c3_159, %c0_160, %c147_161] : memref<4x8x448xf32, #tpu.memory_space<vmem>>, vector<1x8x288xf32>
    %260 = vector.shape_cast %259 : vector<1x8x288xf32> to vector<8x288xf32>
    %c0_162 = arith.constant 0 : index
    %c35 = arith.constant 35 : index
    %261 = vector.load %arg2[%c0_162, %c35] : memref<8x36xf32, #tpu.memory_space<vmem>>, vector<8x1xf32>
    %262 = vector.broadcast %261 : vector<8x1xf32> to vector<8x288xf32>
    %263 = arith.mulf %262, %260 : vector<8x288xf32>
    %264 = arith.addf %258, %263 : vector<8x288xf32>
    %c0_163 = arith.constant 0 : index
    %c0_164 = arith.constant 0 : index
    %265 = vector.load %arg3[%c0_163, %c0_164] : memref<8x1xf32, #tpu.memory_space<vmem>>, vector<8x1xf32>
    %c0_165 = arith.constant 0 : index
    %c0_166 = arith.constant 0 : index
    %266 = vector.load %arg4[%c0_165, %c0_166] : memref<8x1xf32, #tpu.memory_space<vmem>>, vector<8x1xf32>
    %267 = arith.mulf %264, %0 : vector<8x288xf32>
    %cst = arith.constant dense<0.000000e+00> : vector<8xf32>
    %268 = vector.multi_reduction <add>, %267, %cst [1] : vector<8x288xf32> to vector<8xf32>
    %269 = vector.shape_cast %268 : vector<8xf32> to vector<8x1xf32>
    %c4_i32 = arith.constant 4 : i32
    %270 = tpu.dynamic_rotate %269 by %c4_i32 dim 0 : vector<8x1xf32>, i32 -> vector<8x1xf32>
    %271 = arith.addf %269, %270 : vector<8x1xf32>
    %cst_167 = arith.constant 0.001953125 : f32
    %272 = vector.broadcast %cst_167 : f32 to vector<8x1xf32>
    %273 = arith.mulf %271, %272 : vector<8x1xf32>
    %274 = vector.broadcast %273 : vector<8x1xf32> to vector<8x288xf32>
    %275 = arith.subf %264, %274 : vector<8x288xf32>
    %276 = arith.mulf %275, %0 : vector<8x288xf32>
    %277 = arith.mulf %276, %276 : vector<8x288xf32>
    %cst_168 = arith.constant dense<0.000000e+00> : vector<8xf32>
    %278 = vector.multi_reduction <add>, %277, %cst_168 [1] : vector<8x288xf32> to vector<8xf32>
    %279 = vector.shape_cast %278 : vector<8xf32> to vector<8x1xf32>
    %c4_i32_169 = arith.constant 4 : i32
    %280 = tpu.dynamic_rotate %279 by %c4_i32_169 dim 0 : vector<8x1xf32>, i32 -> vector<8x1xf32>
    %281 = arith.addf %279, %280 : vector<8x1xf32>
    %cst_170 = arith.constant 0.001953125 : f32
    %282 = vector.broadcast %cst_170 : f32 to vector<8x1xf32>
    %283 = arith.mulf %281, %282 : vector<8x1xf32>
    %cst_171 = arith.constant 9.99999974E-6 : f32
    %284 = vector.broadcast %cst_171 : f32 to vector<8x1xf32>
    %285 = arith.addf %283, %284 : vector<8x1xf32>
    %286 = math.rsqrt %285 : vector<8x1xf32>
    %287 = arith.mulf %286, %265 : vector<8x1xf32>
    %288 = vector.broadcast %287 : vector<8x1xf32> to vector<8x288xf32>
    %289 = arith.mulf %276, %288 : vector<8x288xf32>
    %290 = vector.broadcast %266 : vector<8x1xf32> to vector<8x288xf32>
    %291 = arith.addf %289, %290 : vector<8x288xf32>
    %292 = arith.negf %291 : vector<8x288xf32>
    %293 = math.exp %292 : vector<8x288xf32>
    %cst_172 = arith.constant 1.000000e+00 : f32
    %294 = vector.broadcast %cst_172 : f32 to vector<8x288xf32>
    %295 = arith.addf %294, %293 : vector<8x288xf32>
    %296 = arith.divf %294, %295 : vector<8x288xf32>
    %297 = arith.mulf %291, %296 : vector<8x288xf32>
    %298 = arith.mulf %297, %0 : vector<8x288xf32>
    %299 = vector.extract_strided_slice %298 {offsets = [0, 0], sizes = [1, 288], strides = [1, 1]} : vector<8x288xf32> to vector<1x288xf32>
    %300 = vector.shape_cast %299 : vector<1x288xf32> to vector<1x288xf32>
    %301 = vector.broadcast %300 : vector<1x288xf32> to vector<4x288xf32>
    %c0_173 = arith.constant 0 : index
    %c0_174 = arith.constant 0 : index
    %c128_175 = arith.constant 128 : index
    %302 = vector.load %arg9[%c0_173, %c0_174, %c128_175] : memref<4x8x448xf32, #tpu.memory_space<vmem>>, vector<1x4x288xf32>
    %303 = vector.shape_cast %302 : vector<1x4x288xf32> to vector<4x288xf32>
    %304 = vector.shape_cast %301 : vector<4x288xf32> to vector<1x4x288xf32>
    tpu.vector_store %arg9[%c0_173, %c0_174, %c128_175], %304 {strides = array<i32>} : memref<4x8x448xf32, #tpu.memory_space<vmem>>, vector<1x4x288xf32>,
    %305 = vector.extract_strided_slice %298 {offsets = [4, 0], sizes = [1, 288], strides = [1, 1]} : vector<8x288xf32> to vector<1x288xf32>
    %306 = vector.shape_cast %305 : vector<1x288xf32> to vector<1x288xf32>
    %307 = vector.broadcast %306 : vector<1x288xf32> to vector<4x288xf32>
    %c0_176 = arith.constant 0 : index
    %c4_177 = arith.constant 4 : index
    %c128_178 = arith.constant 128 : index
    %308 = vector.load %arg9[%c0_176, %c4_177, %c128_178] : memref<4x8x448xf32, #tpu.memory_space<vmem>>, vector<1x4x288xf32>
    %309 = vector.shape_cast %308 : vector<1x4x288xf32> to vector<4x288xf32>
    %310 = vector.shape_cast %307 : vector<4x288xf32> to vector<1x4x288xf32>
    tpu.vector_store %arg9[%c0_176, %c4_177, %c128_178], %310 {strides = array<i32>} : memref<4x8x448xf32, #tpu.memory_space<vmem>>, vector<1x4x288xf32>,
    %311 = vector.extract_strided_slice %298 {offsets = [1, 0], sizes = [1, 288], strides = [1, 1]} : vector<8x288xf32> to vector<1x288xf32>
    %312 = vector.shape_cast %311 : vector<1x288xf32> to vector<1x288xf32>
    %313 = vector.broadcast %312 : vector<1x288xf32> to vector<4x288xf32>
    %c1_179 = arith.constant 1 : index
    %c0_180 = arith.constant 0 : index
    %c128_181 = arith.constant 128 : index
    %314 = vector.load %arg9[%c1_179, %c0_180, %c128_181] : memref<4x8x448xf32, #tpu.memory_space<vmem>>, vector<1x4x288xf32>
    %315 = vector.shape_cast %314 : vector<1x4x288xf32> to vector<4x288xf32>
    %316 = vector.shape_cast %313 : vector<4x288xf32> to vector<1x4x288xf32>
    tpu.vector_store %arg9[%c1_179, %c0_180, %c128_181], %316 {strides = array<i32>} : memref<4x8x448xf32, #tpu.memory_space<vmem>>, vector<1x4x288xf32>,
    %317 = vector.extract_strided_slice %298 {offsets = [5, 0], sizes = [1, 288], strides = [1, 1]} : vector<8x288xf32> to vector<1x288xf32>
    %318 = vector.shape_cast %317 : vector<1x288xf32> to vector<1x288xf32>
    %319 = vector.broadcast %318 : vector<1x288xf32> to vector<4x288xf32>
    %c1_182 = arith.constant 1 : index
    %c4_183 = arith.constant 4 : index
    %c128_184 = arith.constant 128 : index
    %320 = vector.load %arg9[%c1_182, %c4_183, %c128_184] : memref<4x8x448xf32, #tpu.memory_space<vmem>>, vector<1x4x288xf32>
    %321 = vector.shape_cast %320 : vector<1x4x288xf32> to vector<4x288xf32>
    %322 = vector.shape_cast %319 : vector<4x288xf32> to vector<1x4x288xf32>
    tpu.vector_store %arg9[%c1_182, %c4_183, %c128_184], %322 {strides = array<i32>} : memref<4x8x448xf32, #tpu.memory_space<vmem>>, vector<1x4x288xf32>,
    %323 = vector.extract_strided_slice %298 {offsets = [2, 0], sizes = [1, 288], strides = [1, 1]} : vector<8x288xf32> to vector<1x288xf32>
    %324 = vector.shape_cast %323 : vector<1x288xf32> to vector<1x288xf32>
    %325 = vector.broadcast %324 : vector<1x288xf32> to vector<4x288xf32>
    %c2_185 = arith.constant 2 : index
    %c0_186 = arith.constant 0 : index
    %c128_187 = arith.constant 128 : index
    %326 = vector.load %arg9[%c2_185, %c0_186, %c128_187] : memref<4x8x448xf32, #tpu.memory_space<vmem>>, vector<1x4x288xf32>
    %327 = vector.shape_cast %326 : vector<1x4x288xf32> to vector<4x288xf32>
    %328 = vector.shape_cast %325 : vector<4x288xf32> to vector<1x4x288xf32>
    tpu.vector_store %arg9[%c2_185, %c0_186, %c128_187], %328 {strides = array<i32>} : memref<4x8x448xf32, #tpu.memory_space<vmem>>, vector<1x4x288xf32>,
    %329 = vector.extract_strided_slice %298 {offsets = [6, 0], sizes = [1, 288], strides = [1, 1]} : vector<8x288xf32> to vector<1x288xf32>
    %330 = vector.shape_cast %329 : vector<1x288xf32> to vector<1x288xf32>
    %331 = vector.broadcast %330 : vector<1x288xf32> to vector<4x288xf32>
    %c2_188 = arith.constant 2 : index
    %c4_189 = arith.constant 4 : index
    %c128_190 = arith.constant 128 : index
    %332 = vector.load %arg9[%c2_188, %c4_189, %c128_190] : memref<4x8x448xf32, #tpu.memory_space<vmem>>, vector<1x4x288xf32>
    %333 = vector.shape_cast %332 : vector<1x4x288xf32> to vector<4x288xf32>
    %334 = vector.shape_cast %331 : vector<4x288xf32> to vector<1x4x288xf32>
    tpu.vector_store %arg9[%c2_188, %c4_189, %c128_190], %334 {strides = array<i32>} : memref<4x8x448xf32, #tpu.memory_space<vmem>>, vector<1x4x288xf32>,
    %335 = vector.extract_strided_slice %298 {offsets = [3, 0], sizes = [1, 288], strides = [1, 1]} : vector<8x288xf32> to vector<1x288xf32>
    %336 = vector.shape_cast %335 : vector<1x288xf32> to vector<1x288xf32>
    %337 = vector.broadcast %336 : vector<1x288xf32> to vector<4x288xf32>
    %c3_191 = arith.constant 3 : index
    %c0_192 = arith.constant 0 : index
    %c128_193 = arith.constant 128 : index
    %338 = vector.load %arg9[%c3_191, %c0_192, %c128_193] : memref<4x8x448xf32, #tpu.memory_space<vmem>>, vector<1x4x288xf32>
    %339 = vector.shape_cast %338 : vector<1x4x288xf32> to vector<4x288xf32>
    %340 = vector.shape_cast %337 : vector<4x288xf32> to vector<1x4x288xf32>
    tpu.vector_store %arg9[%c3_191, %c0_192, %c128_193], %340 {strides = array<i32>} : memref<4x8x448xf32, #tpu.memory_space<vmem>>, vector<1x4x288xf32>,
    %341 = vector.extract_strided_slice %298 {offsets = [7, 0], sizes = [1, 288], strides = [1, 1]} : vector<8x288xf32> to vector<1x288xf32>
    %342 = vector.shape_cast %341 : vector<1x288xf32> to vector<1x288xf32>
    %343 = vector.broadcast %342 : vector<1x288xf32> to vector<4x288xf32>
    %c3_194 = arith.constant 3 : index
    %c4_195 = arith.constant 4 : index
    %c128_196 = arith.constant 128 : index
    %344 = vector.load %arg9[%c3_194, %c4_195, %c128_196] : memref<4x8x448xf32, #tpu.memory_space<vmem>>, vector<1x4x288xf32>
    %345 = vector.shape_cast %344 : vector<1x4x288xf32> to vector<4x288xf32>
    %346 = vector.shape_cast %343 : vector<4x288xf32> to vector<1x4x288xf32>
    tpu.vector_store %arg9[%c3_194, %c4_195, %c128_196], %346 {strides = array<i32>} : memref<4x8x448xf32, #tpu.memory_space<vmem>>, vector<1x4x288xf32>,
    %c0_197 = arith.constant 0 : index
    %c0_198 = arith.constant 0 : index
    %c109_199 = arith.constant 109 : index
    %347 = vector.load %arg9[%c0_197, %c0_198, %c109_199] : memref<4x8x448xf32, #tpu.memory_space<vmem>>, vector<1x8x288xf32>
    %348 = vector.shape_cast %347 : vector<1x8x288xf32> to vector<8x288xf32>
    %c0_200 = arith.constant 0 : index
    %c0_201 = arith.constant 0 : index
    %349 = vector.load %arg5[%c0_200, %c0_201] : memref<8x36xf32, #tpu.memory_space<vmem>>, vector<8x1xf32>
    %350 = vector.broadcast %349 : vector<8x1xf32> to vector<8x288xf32>
    %351 = arith.mulf %350, %348 : vector<8x288xf32>
    %c0_202 = arith.constant 0 : index
    %c0_203 = arith.constant 0 : index
    %c110_204 = arith.constant 110 : index
    %352 = vector.load %arg9[%c0_202, %c0_203, %c110_204] : memref<4x8x448xf32, #tpu.memory_space<vmem>>, vector<1x8x288xf32>
    %353 = vector.shape_cast %352 : vector<1x8x288xf32> to vector<8x288xf32>
    %c0_205 = arith.constant 0 : index
    %c1_206 = arith.constant 1 : index
    %354 = vector.load %arg5[%c0_205, %c1_206] : memref<8x36xf32, #tpu.memory_space<vmem>>, vector<8x1xf32>
    %355 = vector.broadcast %354 : vector<8x1xf32> to vector<8x288xf32>
    %356 = arith.mulf %355, %353 : vector<8x288xf32>
    %357 = arith.addf %351, %356 : vector<8x288xf32>
    %c0_207 = arith.constant 0 : index
    %c0_208 = arith.constant 0 : index
    %c111_209 = arith.constant 111 : index
    %358 = vector.load %arg9[%c0_207, %c0_208, %c111_209] : memref<4x8x448xf32, #tpu.memory_space<vmem>>, vector<1x8x288xf32>
    %359 = vector.shape_cast %358 : vector<1x8x288xf32> to vector<8x288xf32>
    %c0_210 = arith.constant 0 : index
    %c2_211 = arith.constant 2 : index
    %360 = vector.load %arg5[%c0_210, %c2_211] : memref<8x36xf32, #tpu.memory_space<vmem>>, vector<8x1xf32>
    %361 = vector.broadcast %360 : vector<8x1xf32> to vector<8x288xf32>
    %362 = arith.mulf %361, %359 : vector<8x288xf32>
    %363 = arith.addf %357, %362 : vector<8x288xf32>
    %c0_212 = arith.constant 0 : index
    %c0_213 = arith.constant 0 : index
    %c127_214 = arith.constant 127 : index
    %364 = vector.load %arg9[%c0_212, %c0_213, %c127_214] : memref<4x8x448xf32, #tpu.memory_space<vmem>>, vector<1x8x288xf32>
    %365 = vector.shape_cast %364 : vector<1x8x288xf32> to vector<8x288xf32>
    %c0_215 = arith.constant 0 : index
    %c3_216 = arith.constant 3 : index
    %366 = vector.load %arg5[%c0_215, %c3_216] : memref<8x36xf32, #tpu.memory_space<vmem>>, vector<8x1xf32>
    %367 = vector.broadcast %366 : vector<8x1xf32> to vector<8x288xf32>
    %368 = arith.mulf %367, %365 : vector<8x288xf32>
    %369 = arith.addf %363, %368 : vector<8x288xf32>
    %c0_217 = arith.constant 0 : index
    %c0_218 = arith.constant 0 : index
    %c128_219 = arith.constant 128 : index
    %370 = vector.load %arg9[%c0_217, %c0_218, %c128_219] : memref<4x8x448xf32, #tpu.memory_space<vmem>>, vector<1x8x288xf32>
    %371 = vector.shape_cast %370 : vector<1x8x288xf32> to vector<8x288xf32>
    %c0_220 = arith.constant 0 : index
    %c4_221 = arith.constant 4 : index
    %372 = vector.load %arg5[%c0_220, %c4_221] : memref<8x36xf32, #tpu.memory_space<vmem>>, vector<8x1xf32>
    %373 = vector.broadcast %372 : vector<8x1xf32> to vector<8x288xf32>
    %374 = arith.mulf %373, %371 : vector<8x288xf32>
    %375 = arith.addf %369, %374 : vector<8x288xf32>
    %c0_222 = arith.constant 0 : index
    %c0_223 = arith.constant 0 : index
    %c129_224 = arith.constant 129 : index
    %376 = vector.load %arg9[%c0_222, %c0_223, %c129_224] : memref<4x8x448xf32, #tpu.memory_space<vmem>>, vector<1x8x288xf32>
    %377 = vector.shape_cast %376 : vector<1x8x288xf32> to vector<8x288xf32>
    %c0_225 = arith.constant 0 : index
    %c5_226 = arith.constant 5 : index
    %378 = vector.load %arg5[%c0_225, %c5_226] : memref<8x36xf32, #tpu.memory_space<vmem>>, vector<8x1xf32>
    %379 = vector.broadcast %378 : vector<8x1xf32> to vector<8x288xf32>
    %380 = arith.mulf %379, %377 : vector<8x288xf32>
    %381 = arith.addf %375, %380 : vector<8x288xf32>
    %c0_227 = arith.constant 0 : index
    %c0_228 = arith.constant 0 : index
    %c145_229 = arith.constant 145 : index
    %382 = vector.load %arg9[%c0_227, %c0_228, %c145_229] : memref<4x8x448xf32, #tpu.memory_space<vmem>>, vector<1x8x288xf32>
    %383 = vector.shape_cast %382 : vector<1x8x288xf32> to vector<8x288xf32>
    %c0_230 = arith.constant 0 : index
    %c6_231 = arith.constant 6 : index
    %384 = vector.load %arg5[%c0_230, %c6_231] : memref<8x36xf32, #tpu.memory_space<vmem>>, vector<8x1xf32>
    %385 = vector.broadcast %384 : vector<8x1xf32> to vector<8x288xf32>
    %386 = arith.mulf %385, %383 : vector<8x288xf32>
    %387 = arith.addf %381, %386 : vector<8x288xf32>
    %c0_232 = arith.constant 0 : index
    %c0_233 = arith.constant 0 : index
    %c146_234 = arith.constant 146 : index
    %388 = vector.load %arg9[%c0_232, %c0_233, %c146_234] : memref<4x8x448xf32, #tpu.memory_space<vmem>>, vector<1x8x288xf32>
    %389 = vector.shape_cast %388 : vector<1x8x288xf32> to vector<8x288xf32>
    %c0_235 = arith.constant 0 : index
    %c7_236 = arith.constant 7 : index
    %390 = vector.load %arg5[%c0_235, %c7_236] : memref<8x36xf32, #tpu.memory_space<vmem>>, vector<8x1xf32>
    %391 = vector.broadcast %390 : vector<8x1xf32> to vector<8x288xf32>
    %392 = arith.mulf %391, %389 : vector<8x288xf32>
    %393 = arith.addf %387, %392 : vector<8x288xf32>
    %c0_237 = arith.constant 0 : index
    %c0_238 = arith.constant 0 : index
    %c147_239 = arith.constant 147 : index
    %394 = vector.load %arg9[%c0_237, %c0_238, %c147_239] : memref<4x8x448xf32, #tpu.memory_space<vmem>>, vector<1x8x288xf32>
    %395 = vector.shape_cast %394 : vector<1x8x288xf32> to vector<8x288xf32>
    %c0_240 = arith.constant 0 : index
    %c8_241 = arith.constant 8 : index
    %396 = vector.load %arg5[%c0_240, %c8_241] : memref<8x36xf32, #tpu.memory_space<vmem>>, vector<8x1xf32>
    %397 = vector.broadcast %396 : vector<8x1xf32> to vector<8x288xf32>
    %398 = arith.mulf %397, %395 : vector<8x288xf32>
    %399 = arith.addf %393, %398 : vector<8x288xf32>
    %c1_242 = arith.constant 1 : index
    %c0_243 = arith.constant 0 : index
    %c109_244 = arith.constant 109 : index
    %400 = vector.load %arg9[%c1_242, %c0_243, %c109_244] : memref<4x8x448xf32, #tpu.memory_space<vmem>>, vector<1x8x288xf32>
    %401 = vector.shape_cast %400 : vector<1x8x288xf32> to vector<8x288xf32>
    %c0_245 = arith.constant 0 : index
    %c9_246 = arith.constant 9 : index
    %402 = vector.load %arg5[%c0_245, %c9_246] : memref<8x36xf32, #tpu.memory_space<vmem>>, vector<8x1xf32>
    %403 = vector.broadcast %402 : vector<8x1xf32> to vector<8x288xf32>
    %404 = arith.mulf %403, %401 : vector<8x288xf32>
    %405 = arith.addf %399, %404 : vector<8x288xf32>
    %c1_247 = arith.constant 1 : index
    %c0_248 = arith.constant 0 : index
    %c110_249 = arith.constant 110 : index
    %406 = vector.load %arg9[%c1_247, %c0_248, %c110_249] : memref<4x8x448xf32, #tpu.memory_space<vmem>>, vector<1x8x288xf32>
    %407 = vector.shape_cast %406 : vector<1x8x288xf32> to vector<8x288xf32>
    %c0_250 = arith.constant 0 : index
    %c10_251 = arith.constant 10 : index
    %408 = vector.load %arg5[%c0_250, %c10_251] : memref<8x36xf32, #tpu.memory_space<vmem>>, vector<8x1xf32>
    %409 = vector.broadcast %408 : vector<8x1xf32> to vector<8x288xf32>
    %410 = arith.mulf %409, %407 : vector<8x288xf32>
    %411 = arith.addf %405, %410 : vector<8x288xf32>
    %c1_252 = arith.constant 1 : index
    %c0_253 = arith.constant 0 : index
    %c111_254 = arith.constant 111 : index
    %412 = vector.load %arg9[%c1_252, %c0_253, %c111_254] : memref<4x8x448xf32, #tpu.memory_space<vmem>>, vector<1x8x288xf32>
    %413 = vector.shape_cast %412 : vector<1x8x288xf32> to vector<8x288xf32>
    %c0_255 = arith.constant 0 : index
    %c11_256 = arith.constant 11 : index
    %414 = vector.load %arg5[%c0_255, %c11_256] : memref<8x36xf32, #tpu.memory_space<vmem>>, vector<8x1xf32>
    %415 = vector.broadcast %414 : vector<8x1xf32> to vector<8x288xf32>
    %416 = arith.mulf %415, %413 : vector<8x288xf32>
    %417 = arith.addf %411, %416 : vector<8x288xf32>
    %c1_257 = arith.constant 1 : index
    %c0_258 = arith.constant 0 : index
    %c127_259 = arith.constant 127 : index
    %418 = vector.load %arg9[%c1_257, %c0_258, %c127_259] : memref<4x8x448xf32, #tpu.memory_space<vmem>>, vector<1x8x288xf32>
    %419 = vector.shape_cast %418 : vector<1x8x288xf32> to vector<8x288xf32>
    %c0_260 = arith.constant 0 : index
    %c12_261 = arith.constant 12 : index
    %420 = vector.load %arg5[%c0_260, %c12_261] : memref<8x36xf32, #tpu.memory_space<vmem>>, vector<8x1xf32>
    %421 = vector.broadcast %420 : vector<8x1xf32> to vector<8x288xf32>
    %422 = arith.mulf %421, %419 : vector<8x288xf32>
    %423 = arith.addf %417, %422 : vector<8x288xf32>
    %c1_262 = arith.constant 1 : index
    %c0_263 = arith.constant 0 : index
    %c128_264 = arith.constant 128 : index
    %424 = vector.load %arg9[%c1_262, %c0_263, %c128_264] : memref<4x8x448xf32, #tpu.memory_space<vmem>>, vector<1x8x288xf32>
    %425 = vector.shape_cast %424 : vector<1x8x288xf32> to vector<8x288xf32>
    %c0_265 = arith.constant 0 : index
    %c13_266 = arith.constant 13 : index
    %426 = vector.load %arg5[%c0_265, %c13_266] : memref<8x36xf32, #tpu.memory_space<vmem>>, vector<8x1xf32>
    %427 = vector.broadcast %426 : vector<8x1xf32> to vector<8x288xf32>
    %428 = arith.mulf %427, %425 : vector<8x288xf32>
    %429 = arith.addf %423, %428 : vector<8x288xf32>
    %c1_267 = arith.constant 1 : index
    %c0_268 = arith.constant 0 : index
    %c129_269 = arith.constant 129 : index
    %430 = vector.load %arg9[%c1_267, %c0_268, %c129_269] : memref<4x8x448xf32, #tpu.memory_space<vmem>>, vector<1x8x288xf32>
    %431 = vector.shape_cast %430 : vector<1x8x288xf32> to vector<8x288xf32>
    %c0_270 = arith.constant 0 : index
    %c14_271 = arith.constant 14 : index
    %432 = vector.load %arg5[%c0_270, %c14_271] : memref<8x36xf32, #tpu.memory_space<vmem>>, vector<8x1xf32>
    %433 = vector.broadcast %432 : vector<8x1xf32> to vector<8x288xf32>
    %434 = arith.mulf %433, %431 : vector<8x288xf32>
    %435 = arith.addf %429, %434 : vector<8x288xf32>
    %c1_272 = arith.constant 1 : index
    %c0_273 = arith.constant 0 : index
    %c145_274 = arith.constant 145 : index
    %436 = vector.load %arg9[%c1_272, %c0_273, %c145_274] : memref<4x8x448xf32, #tpu.memory_space<vmem>>, vector<1x8x288xf32>
    %437 = vector.shape_cast %436 : vector<1x8x288xf32> to vector<8x288xf32>
    %c0_275 = arith.constant 0 : index
    %c15_276 = arith.constant 15 : index
    %438 = vector.load %arg5[%c0_275, %c15_276] : memref<8x36xf32, #tpu.memory_space<vmem>>, vector<8x1xf32>
    %439 = vector.broadcast %438 : vector<8x1xf32> to vector<8x288xf32>
    %440 = arith.mulf %439, %437 : vector<8x288xf32>
    %441 = arith.addf %435, %440 : vector<8x288xf32>
    %c1_277 = arith.constant 1 : index
    %c0_278 = arith.constant 0 : index
    %c146_279 = arith.constant 146 : index
    %442 = vector.load %arg9[%c1_277, %c0_278, %c146_279] : memref<4x8x448xf32, #tpu.memory_space<vmem>>, vector<1x8x288xf32>
    %443 = vector.shape_cast %442 : vector<1x8x288xf32> to vector<8x288xf32>
    %c0_280 = arith.constant 0 : index
    %c16_281 = arith.constant 16 : index
    %444 = vector.load %arg5[%c0_280, %c16_281] : memref<8x36xf32, #tpu.memory_space<vmem>>, vector<8x1xf32>
    %445 = vector.broadcast %444 : vector<8x1xf32> to vector<8x288xf32>
    %446 = arith.mulf %445, %443 : vector<8x288xf32>
    %447 = arith.addf %441, %446 : vector<8x288xf32>
    %c1_282 = arith.constant 1 : index
    %c0_283 = arith.constant 0 : index
    %c147_284 = arith.constant 147 : index
    %448 = vector.load %arg9[%c1_282, %c0_283, %c147_284] : memref<4x8x448xf32, #tpu.memory_space<vmem>>, vector<1x8x288xf32>
    %449 = vector.shape_cast %448 : vector<1x8x288xf32> to vector<8x288xf32>
    %c0_285 = arith.constant 0 : index
    %c17_286 = arith.constant 17 : index
    %450 = vector.load %arg5[%c0_285, %c17_286] : memref<8x36xf32, #tpu.memory_space<vmem>>, vector<8x1xf32>
    %451 = vector.broadcast %450 : vector<8x1xf32> to vector<8x288xf32>
    %452 = arith.mulf %451, %449 : vector<8x288xf32>
    %453 = arith.addf %447, %452 : vector<8x288xf32>
    %c2_287 = arith.constant 2 : index
    %c0_288 = arith.constant 0 : index
    %c109_289 = arith.constant 109 : index
    %454 = vector.load %arg9[%c2_287, %c0_288, %c109_289] : memref<4x8x448xf32, #tpu.memory_space<vmem>>, vector<1x8x288xf32>
    %455 = vector.shape_cast %454 : vector<1x8x288xf32> to vector<8x288xf32>
    %c0_290 = arith.constant 0 : index
    %c18_291 = arith.constant 18 : index
    %456 = vector.load %arg5[%c0_290, %c18_291] : memref<8x36xf32, #tpu.memory_space<vmem>>, vector<8x1xf32>
    %457 = vector.broadcast %456 : vector<8x1xf32> to vector<8x288xf32>
    %458 = arith.mulf %457, %455 : vector<8x288xf32>
    %459 = arith.addf %453, %458 : vector<8x288xf32>
    %c2_292 = arith.constant 2 : index
    %c0_293 = arith.constant 0 : index
    %c110_294 = arith.constant 110 : index
    %460 = vector.load %arg9[%c2_292, %c0_293, %c110_294] : memref<4x8x448xf32, #tpu.memory_space<vmem>>, vector<1x8x288xf32>
    %461 = vector.shape_cast %460 : vector<1x8x288xf32> to vector<8x288xf32>
    %c0_295 = arith.constant 0 : index
    %c19_296 = arith.constant 19 : index
    %462 = vector.load %arg5[%c0_295, %c19_296] : memref<8x36xf32, #tpu.memory_space<vmem>>, vector<8x1xf32>
    %463 = vector.broadcast %462 : vector<8x1xf32> to vector<8x288xf32>
    %464 = arith.mulf %463, %461 : vector<8x288xf32>
    %465 = arith.addf %459, %464 : vector<8x288xf32>
    %c2_297 = arith.constant 2 : index
    %c0_298 = arith.constant 0 : index
    %c111_299 = arith.constant 111 : index
    %466 = vector.load %arg9[%c2_297, %c0_298, %c111_299] : memref<4x8x448xf32, #tpu.memory_space<vmem>>, vector<1x8x288xf32>
    %467 = vector.shape_cast %466 : vector<1x8x288xf32> to vector<8x288xf32>
    %c0_300 = arith.constant 0 : index
    %c20_301 = arith.constant 20 : index
    %468 = vector.load %arg5[%c0_300, %c20_301] : memref<8x36xf32, #tpu.memory_space<vmem>>, vector<8x1xf32>
    %469 = vector.broadcast %468 : vector<8x1xf32> to vector<8x288xf32>
    %470 = arith.mulf %469, %467 : vector<8x288xf32>
    %471 = arith.addf %465, %470 : vector<8x288xf32>
    %c2_302 = arith.constant 2 : index
    %c0_303 = arith.constant 0 : index
    %c127_304 = arith.constant 127 : index
    %472 = vector.load %arg9[%c2_302, %c0_303, %c127_304] : memref<4x8x448xf32, #tpu.memory_space<vmem>>, vector<1x8x288xf32>
    %473 = vector.shape_cast %472 : vector<1x8x288xf32> to vector<8x288xf32>
    %c0_305 = arith.constant 0 : index
    %c21_306 = arith.constant 21 : index
    %474 = vector.load %arg5[%c0_305, %c21_306] : memref<8x36xf32, #tpu.memory_space<vmem>>, vector<8x1xf32>
    %475 = vector.broadcast %474 : vector<8x1xf32> to vector<8x288xf32>
    %476 = arith.mulf %475, %473 : vector<8x288xf32>
    %477 = arith.addf %471, %476 : vector<8x288xf32>
    %c2_307 = arith.constant 2 : index
    %c0_308 = arith.constant 0 : index
    %c128_309 = arith.constant 128 : index
    %478 = vector.load %arg9[%c2_307, %c0_308, %c128_309] : memref<4x8x448xf32, #tpu.memory_space<vmem>>, vector<1x8x288xf32>
    %479 = vector.shape_cast %478 : vector<1x8x288xf32> to vector<8x288xf32>
    %c0_310 = arith.constant 0 : index
    %c22_311 = arith.constant 22 : index
    %480 = vector.load %arg5[%c0_310, %c22_311] : memref<8x36xf32, #tpu.memory_space<vmem>>, vector<8x1xf32>
    %481 = vector.broadcast %480 : vector<8x1xf32> to vector<8x288xf32>
    %482 = arith.mulf %481, %479 : vector<8x288xf32>
    %483 = arith.addf %477, %482 : vector<8x288xf32>
    %c2_312 = arith.constant 2 : index
    %c0_313 = arith.constant 0 : index
    %c129_314 = arith.constant 129 : index
    %484 = vector.load %arg9[%c2_312, %c0_313, %c129_314] : memref<4x8x448xf32, #tpu.memory_space<vmem>>, vector<1x8x288xf32>
    %485 = vector.shape_cast %484 : vector<1x8x288xf32> to vector<8x288xf32>
    %c0_315 = arith.constant 0 : index
    %c23_316 = arith.constant 23 : index
    %486 = vector.load %arg5[%c0_315, %c23_316] : memref<8x36xf32, #tpu.memory_space<vmem>>, vector<8x1xf32>
    %487 = vector.broadcast %486 : vector<8x1xf32> to vector<8x288xf32>
    %488 = arith.mulf %487, %485 : vector<8x288xf32>
    %489 = arith.addf %483, %488 : vector<8x288xf32>
    %c2_317 = arith.constant 2 : index
    %c0_318 = arith.constant 0 : index
    %c145_319 = arith.constant 145 : index
    %490 = vector.load %arg9[%c2_317, %c0_318, %c145_319] : memref<4x8x448xf32, #tpu.memory_space<vmem>>, vector<1x8x288xf32>
    %491 = vector.shape_cast %490 : vector<1x8x288xf32> to vector<8x288xf32>
    %c0_320 = arith.constant 0 : index
    %c24_321 = arith.constant 24 : index
    %492 = vector.load %arg5[%c0_320, %c24_321] : memref<8x36xf32, #tpu.memory_space<vmem>>, vector<8x1xf32>
    %493 = vector.broadcast %492 : vector<8x1xf32> to vector<8x288xf32>
    %494 = arith.mulf %493, %491 : vector<8x288xf32>
    %495 = arith.addf %489, %494 : vector<8x288xf32>
    %c2_322 = arith.constant 2 : index
    %c0_323 = arith.constant 0 : index
    %c146_324 = arith.constant 146 : index
    %496 = vector.load %arg9[%c2_322, %c0_323, %c146_324] : memref<4x8x448xf32, #tpu.memory_space<vmem>>, vector<1x8x288xf32>
    %497 = vector.shape_cast %496 : vector<1x8x288xf32> to vector<8x288xf32>
    %c0_325 = arith.constant 0 : index
    %c25_326 = arith.constant 25 : index
    %498 = vector.load %arg5[%c0_325, %c25_326] : memref<8x36xf32, #tpu.memory_space<vmem>>, vector<8x1xf32>
    %499 = vector.broadcast %498 : vector<8x1xf32> to vector<8x288xf32>
    %500 = arith.mulf %499, %497 : vector<8x288xf32>
    %501 = arith.addf %495, %500 : vector<8x288xf32>
    %c2_327 = arith.constant 2 : index
    %c0_328 = arith.constant 0 : index
    %c147_329 = arith.constant 147 : index
    %502 = vector.load %arg9[%c2_327, %c0_328, %c147_329] : memref<4x8x448xf32, #tpu.memory_space<vmem>>, vector<1x8x288xf32>
    %503 = vector.shape_cast %502 : vector<1x8x288xf32> to vector<8x288xf32>
    %c0_330 = arith.constant 0 : index
    %c26_331 = arith.constant 26 : index
    %504 = vector.load %arg5[%c0_330, %c26_331] : memref<8x36xf32, #tpu.memory_space<vmem>>, vector<8x1xf32>
    %505 = vector.broadcast %504 : vector<8x1xf32> to vector<8x288xf32>
    %506 = arith.mulf %505, %503 : vector<8x288xf32>
    %507 = arith.addf %501, %506 : vector<8x288xf32>
    %c3_332 = arith.constant 3 : index
    %c0_333 = arith.constant 0 : index
    %c109_334 = arith.constant 109 : index
    %508 = vector.load %arg9[%c3_332, %c0_333, %c109_334] : memref<4x8x448xf32, #tpu.memory_space<vmem>>, vector<1x8x288xf32>
    %509 = vector.shape_cast %508 : vector<1x8x288xf32> to vector<8x288xf32>
    %c0_335 = arith.constant 0 : index
    %c27_336 = arith.constant 27 : index
    %510 = vector.load %arg5[%c0_335, %c27_336] : memref<8x36xf32, #tpu.memory_space<vmem>>, vector<8x1xf32>
    %511 = vector.broadcast %510 : vector<8x1xf32> to vector<8x288xf32>
    %512 = arith.mulf %511, %509 : vector<8x288xf32>
    %513 = arith.addf %507, %512 : vector<8x288xf32>
    %c3_337 = arith.constant 3 : index
    %c0_338 = arith.constant 0 : index
    %c110_339 = arith.constant 110 : index
    %514 = vector.load %arg9[%c3_337, %c0_338, %c110_339] : memref<4x8x448xf32, #tpu.memory_space<vmem>>, vector<1x8x288xf32>
    %515 = vector.shape_cast %514 : vector<1x8x288xf32> to vector<8x288xf32>
    %c0_340 = arith.constant 0 : index
    %c28_341 = arith.constant 28 : index
    %516 = vector.load %arg5[%c0_340, %c28_341] : memref<8x36xf32, #tpu.memory_space<vmem>>, vector<8x1xf32>
    %517 = vector.broadcast %516 : vector<8x1xf32> to vector<8x288xf32>
    %518 = arith.mulf %517, %515 : vector<8x288xf32>
    %519 = arith.addf %513, %518 : vector<8x288xf32>
    %c3_342 = arith.constant 3 : index
    %c0_343 = arith.constant 0 : index
    %c111_344 = arith.constant 111 : index
    %520 = vector.load %arg9[%c3_342, %c0_343, %c111_344] : memref<4x8x448xf32, #tpu.memory_space<vmem>>, vector<1x8x288xf32>
    %521 = vector.shape_cast %520 : vector<1x8x288xf32> to vector<8x288xf32>
    %c0_345 = arith.constant 0 : index
    %c29_346 = arith.constant 29 : index
    %522 = vector.load %arg5[%c0_345, %c29_346] : memref<8x36xf32, #tpu.memory_space<vmem>>, vector<8x1xf32>
    %523 = vector.broadcast %522 : vector<8x1xf32> to vector<8x288xf32>
    %524 = arith.mulf %523, %521 : vector<8x288xf32>
    %525 = arith.addf %519, %524 : vector<8x288xf32>
    %c3_347 = arith.constant 3 : index
    %c0_348 = arith.constant 0 : index
    %c127_349 = arith.constant 127 : index
    %526 = vector.load %arg9[%c3_347, %c0_348, %c127_349] : memref<4x8x448xf32, #tpu.memory_space<vmem>>, vector<1x8x288xf32>
    %527 = vector.shape_cast %526 : vector<1x8x288xf32> to vector<8x288xf32>
    %c0_350 = arith.constant 0 : index
    %c30_351 = arith.constant 30 : index
    %528 = vector.load %arg5[%c0_350, %c30_351] : memref<8x36xf32, #tpu.memory_space<vmem>>, vector<8x1xf32>
    %529 = vector.broadcast %528 : vector<8x1xf32> to vector<8x288xf32>
    %530 = arith.mulf %529, %527 : vector<8x288xf32>
    %531 = arith.addf %525, %530 : vector<8x288xf32>
    %c3_352 = arith.constant 3 : index
    %c0_353 = arith.constant 0 : index
    %c128_354 = arith.constant 128 : index
    %532 = vector.load %arg9[%c3_352, %c0_353, %c128_354] : memref<4x8x448xf32, #tpu.memory_space<vmem>>, vector<1x8x288xf32>
    %533 = vector.shape_cast %532 : vector<1x8x288xf32> to vector<8x288xf32>
    %c0_355 = arith.constant 0 : index
    %c31_356 = arith.constant 31 : index
    %534 = vector.load %arg5[%c0_355, %c31_356] : memref<8x36xf32, #tpu.memory_space<vmem>>, vector<8x1xf32>
    %535 = vector.broadcast %534 : vector<8x1xf32> to vector<8x288xf32>
    %536 = arith.mulf %535, %533 : vector<8x288xf32>
    %537 = arith.addf %531, %536 : vector<8x288xf32>
    %c3_357 = arith.constant 3 : index
    %c0_358 = arith.constant 0 : index
    %c129_359 = arith.constant 129 : index
    %538 = vector.load %arg9[%c3_357, %c0_358, %c129_359] : memref<4x8x448xf32, #tpu.memory_space<vmem>>, vector<1x8x288xf32>
    %539 = vector.shape_cast %538 : vector<1x8x288xf32> to vector<8x288xf32>
    %c0_360 = arith.constant 0 : index
    %c32_361 = arith.constant 32 : index
    %540 = vector.load %arg5[%c0_360, %c32_361] : memref<8x36xf32, #tpu.memory_space<vmem>>, vector<8x1xf32>
    %541 = vector.broadcast %540 : vector<8x1xf32> to vector<8x288xf32>
    %542 = arith.mulf %541, %539 : vector<8x288xf32>
    %543 = arith.addf %537, %542 : vector<8x288xf32>
    %c3_362 = arith.constant 3 : index
    %c0_363 = arith.constant 0 : index
    %c145_364 = arith.constant 145 : index
    %544 = vector.load %arg9[%c3_362, %c0_363, %c145_364] : memref<4x8x448xf32, #tpu.memory_space<vmem>>, vector<1x8x288xf32>
    %545 = vector.shape_cast %544 : vector<1x8x288xf32> to vector<8x288xf32>
    %c0_365 = arith.constant 0 : index
    %c33_366 = arith.constant 33 : index
    %546 = vector.load %arg5[%c0_365, %c33_366] : memref<8x36xf32, #tpu.memory_space<vmem>>, vector<8x1xf32>
    %547 = vector.broadcast %546 : vector<8x1xf32> to vector<8x288xf32>
    %548 = arith.mulf %547, %545 : vector<8x288xf32>
    %549 = arith.addf %543, %548 : vector<8x288xf32>
    %c3_367 = arith.constant 3 : index
    %c0_368 = arith.constant 0 : index
    %c146_369 = arith.constant 146 : index
    %550 = vector.load %arg9[%c3_367, %c0_368, %c146_369] : memref<4x8x448xf32, #tpu.memory_space<vmem>>, vector<1x8x288xf32>
    %551 = vector.shape_cast %550 : vector<1x8x288xf32> to vector<8x288xf32>
    %c0_370 = arith.constant 0 : index
    %c34_371 = arith.constant 34 : index
    %552 = vector.load %arg5[%c0_370, %c34_371] : memref<8x36xf32, #tpu.memory_space<vmem>>, vector<8x1xf32>
    %553 = vector.broadcast %552 : vector<8x1xf32> to vector<8x288xf32>
    %554 = arith.mulf %553, %551 : vector<8x288xf32>
    %555 = arith.addf %549, %554 : vector<8x288xf32>
    %c3_372 = arith.constant 3 : index
    %c0_373 = arith.constant 0 : index
    %c147_374 = arith.constant 147 : index
    %556 = vector.load %arg9[%c3_372, %c0_373, %c147_374] : memref<4x8x448xf32, #tpu.memory_space<vmem>>, vector<1x8x288xf32>
    %557 = vector.shape_cast %556 : vector<1x8x288xf32> to vector<8x288xf32>
    %c0_375 = arith.constant 0 : index
    %c35_376 = arith.constant 35 : index
    %558 = vector.load %arg5[%c0_375, %c35_376] : memref<8x36xf32, #tpu.memory_space<vmem>>, vector<8x1xf32>
    %559 = vector.broadcast %558 : vector<8x1xf32> to vector<8x288xf32>
    %560 = arith.mulf %559, %557 : vector<8x288xf32>
    %561 = arith.addf %555, %560 : vector<8x288xf32>
    %c0_377 = arith.constant 0 : index
    %c0_378 = arith.constant 0 : index
    %562 = vector.load %arg6[%c0_377, %c0_378] : memref<8x1xf32, #tpu.memory_space<vmem>>, vector<8x1xf32>
    %c0_379 = arith.constant 0 : index
    %c0_380 = arith.constant 0 : index
    %563 = vector.load %arg7[%c0_379, %c0_380] : memref<8x1xf32, #tpu.memory_space<vmem>>, vector<8x1xf32>
    %564 = arith.mulf %561, %0 : vector<8x288xf32>
    %cst_381 = arith.constant dense<0.000000e+00> : vector<8xf32>
    %565 = vector.multi_reduction <add>, %564, %cst_381 [1] : vector<8x288xf32> to vector<8xf32>
    %566 = vector.shape_cast %565 : vector<8xf32> to vector<8x1xf32>
    %c4_i32_382 = arith.constant 4 : i32
    %567 = tpu.dynamic_rotate %566 by %c4_i32_382 dim 0 : vector<8x1xf32>, i32 -> vector<8x1xf32>
    %568 = arith.addf %566, %567 : vector<8x1xf32>
    %cst_383 = arith.constant 0.001953125 : f32
    %569 = vector.broadcast %cst_383 : f32 to vector<8x1xf32>
    %570 = arith.mulf %568, %569 : vector<8x1xf32>
    %571 = vector.broadcast %570 : vector<8x1xf32> to vector<8x288xf32>
    %572 = arith.subf %561, %571 : vector<8x288xf32>
    %573 = arith.mulf %572, %0 : vector<8x288xf32>
    %574 = arith.mulf %573, %573 : vector<8x288xf32>
    %cst_384 = arith.constant dense<0.000000e+00> : vector<8xf32>
    %575 = vector.multi_reduction <add>, %574, %cst_384 [1] : vector<8x288xf32> to vector<8xf32>
    %576 = vector.shape_cast %575 : vector<8xf32> to vector<8x1xf32>
    %c4_i32_385 = arith.constant 4 : i32
    %577 = tpu.dynamic_rotate %576 by %c4_i32_385 dim 0 : vector<8x1xf32>, i32 -> vector<8x1xf32>
    %578 = arith.addf %576, %577 : vector<8x1xf32>
    %cst_386 = arith.constant 0.001953125 : f32
    %579 = vector.broadcast %cst_386 : f32 to vector<8x1xf32>
    %580 = arith.mulf %578, %579 : vector<8x1xf32>
    %cst_387 = arith.constant 9.99999974E-6 : f32
    %581 = vector.broadcast %cst_387 : f32 to vector<8x1xf32>
    %582 = arith.addf %580, %581 : vector<8x1xf32>
    %583 = math.rsqrt %582 : vector<8x1xf32>
    %584 = arith.mulf %583, %562 : vector<8x1xf32>
    %585 = vector.broadcast %584 : vector<8x1xf32> to vector<8x288xf32>
    %586 = arith.mulf %573, %585 : vector<8x288xf32>
    %587 = vector.broadcast %563 : vector<8x1xf32> to vector<8x288xf32>
    %588 = arith.addf %586, %587 : vector<8x288xf32>
    %589 = vector.extract_strided_slice %1 {offsets = [0, 128], sizes = [8, 288], strides = [1, 1]} : vector<8x448xf32> to vector<8x288xf32>
    %590 = arith.addf %589, %588 : vector<8x288xf32>
    %c0_388 = arith.constant 0 : index
    %c0_389 = arith.constant 0 : index
    %591 = vector.load %arg8[%c0_388, %c0_389] : memref<8x288xf32, #tpu.memory_space<vmem>>, vector<8x288xf32>
    tpu.vector_store %arg8[%c0_388, %c0_389], %590 {strides = array<i32>} : memref<8x288xf32, #tpu.memory_space<vmem>>, vector<8x288xf32>,
    return
  }
}

</mosaic_0001>

<llo_original>
// kernel: tpu_custom_call.1
$region0: #{tpu_custom_call.1}
  #allocation0 [shape = 'u32[]', space=smem, size = 0x4, offset = 0x4, fixed_abs, tag = 'smem constant byte address 0x4 - core index']
  #allocation1 [shape = 'u32[144,128]{1,0:T(1,128)}', space=vmem, size = 0x12000, scoped, tag = 'internal scratch']
  #allocation2 [shape = 'f32[4,8,448]{2,1,0:T(8,128)}', space=vmem, size = 0x10000, scoped, tag = 'scratch operand']
  %s0 = inlined_call_operand.vmem [shape: f32[8,448], index: 0, kind: input, shape index: {}]
  %s1 = inlined_call_operand.hbm [shape: f32[8,288], index: 1, kind: input, shape index: {}]
  %s2 = inlined_call_operand.vmem [shape: f32[8,36], index: 2, kind: input, shape index: {}]
  %s3 = inlined_call_operand.vmem [shape: f32[8,1], index: 3, kind: input, shape index: {}]
  %s4 = inlined_call_operand.vmem [shape: f32[8,1], index: 4, kind: input, shape index: {}]
  %s5 = inlined_call_operand.vmem [shape: f32[8,36], index: 5, kind: input, shape index: {}]
  %s6 = inlined_call_operand.vmem [shape: f32[8,1], index: 6, kind: input, shape index: {}]
  %s7 = inlined_call_operand.vmem [shape: f32[8,1], index: 7, kind: input, shape index: {}]
  %s8 = inlined_call_operand.hbm [shape: f32[8,288], index: 8, kind: output, shape index: {}]
  %s9 = sld [smem:[#allocation0]]
  $region46: #{tpu_custom_call.1} parent=0
    _
  %s11 = ssub.s32 1, %s9
  %s12 = scalar_select 0, %s11, %s9
  $region1: #{tpu_custom_call.1} parent=0
    #allocation3 [shape = 'u8[12288]{0}', space=vmem, size = 0x3000, scoped, tag = 'input window, operand 1, single buffered']
    #allocation4 [shape = 's32[1]{0}', space=sflag, size = 0x4, scoped, tag = 'scoped memory for tpu_custom_call.1']
    #allocation5 [shape = 's32[1]{0}', space=sflag, size = 0x4, scoped, tag = 'scoped memory for tpu_custom_call.1']
    #allocation6 [shape = 'u8[12288]{0}', space=vmem, size = 0x3000, scoped, tag = 'output window, operand 0, single buffered']
    %13 = vsyncpa [#allocation4], 0
    %14 = vsyncpa [#allocation5], 0
    // Predicated region
    $region2: #{tpu_custom_call.1} parent=1 // pred_check
      _
    $region3: #{tpu_custom_call.1} parent=1 // pred_check_branch
      %16 = sbr.rel (0) target = $region5
    $region4: #{tpu_custom_call.1} parent=1 // pred_region
      _
    $region5: #{tpu_custom_call.1} parent=1 // pred_fallthru
      _
    // Predicated region
    $region6: #{tpu_custom_call.1} parent=1 // pred_check
      _
    $region7: #{tpu_custom_call.1} parent=1 // pred_check_branch
      %18 = sbr.rel (0) target = $region9
    $region8: #{tpu_custom_call.1} parent=1 // pred_region
      %s20 = ssub.s32 384, 384
      %21 = vsyncadd [#allocation4], %s20
      %s23 = sshll.u32 [#allocation3], 4
      %s24 = int_to_ptr.vmem [resolvable:$true] %s23
      %26 = dma.hbm_to_vmem [thread:$0]  %s1, 384, %s24, [#allocation4]
    $region9: #{tpu_custom_call.1} parent=1 // pred_fallthru
      _
    // Predicated region
    $region10: #{tpu_custom_call.1} parent=1 // pred_check
      _
    $region11: #{tpu_custom_call.1} parent=1 // pred_check_branch
      %28 = sbr.rel (0) target = $region13
    $region12: #{tpu_custom_call.1} parent=1 // pred_region
      _
    $region13: #{tpu_custom_call.1} parent=1 // pred_fallthru
      _
    // Predicated region
    $region14: #{tpu_custom_call.1} parent=1 // pred_check
      _
    $region15: #{tpu_custom_call.1} parent=1 // pred_check_branch
      %30 = sbr.rel (0) target = $region17
    $region16: #{tpu_custom_call.1} parent=1 // pred_region
      _
    $region17: #{tpu_custom_call.1} parent=1 // pred_fallthru
      _
    // Predicated region
    $region18: #{tpu_custom_call.1} parent=1 // pred_check
      _
    $region19: #{tpu_custom_call.1} parent=1 // pred_check_branch
      %32 = sbr.rel (0) target = $region21
    $region20: #{tpu_custom_call.1} parent=1 // pred_region
      _
    $region21: #{tpu_custom_call.1} parent=1 // pred_fallthru
      _
    // Predicated region
    $region22: #{tpu_custom_call.1} parent=1 // pred_check
      _
    $region23: #{tpu_custom_call.1} parent=1 // pred_check_branch
      %34 = sbr.rel (0) target = $region25
    $region24: #{tpu_custom_call.1} parent=1 // pred_region
      _
    $region25: #{tpu_custom_call.1} parent=1 // pred_fallthru
      _
    // Predicated region
    $region26: #{tpu_custom_call.1} parent=1 // pred_check
      _
    $region27: #{tpu_custom_call.1} parent=1 // pred_check_branch
      %36 = sbr.rel (0) target = $region29
    $region28: #{tpu_custom_call.1} parent=1 // pred_region
      _
    $region29: #{tpu_custom_call.1} parent=1 // pred_fallthru
      _
    // Predicated region
    $region30: #{tpu_custom_call.1} parent=1 // pred_check
      _
    $region31: #{tpu_custom_call.1} parent=1 // pred_check_branch
      %38 = sbr.rel (0) target = $region33
    $region32: #{tpu_custom_call.1} parent=1 // pred_region
      _
    $region33: #{tpu_custom_call.1} parent=1 // pred_fallthru
      _
    // Predicated region
    $region34: #{tpu_custom_call.1} parent=1 // pred_check
      _
    $region35: #{tpu_custom_call.1} parent=1 // pred_check_branch
      %40 = sbr.rel (0) target = $region37
    $region36: #{tpu_custom_call.1} parent=1 // pred_region
      %41 = dma.done [#allocation4], 384
    $region37: #{tpu_custom_call.1} parent=1 // pred_fallthru
      _
    %v42 = vld [vmem:[#allocation3] sm:$0xff]
    %v43 = vld [vmem:[#allocation3 + $0x8] sm:$0xff]
    %v44 = vld [vmem:[#allocation3 + $0x10] sm:$0xff]
    %v45 = vld [vmem:[%s0] sm:$0xff]
    %v46 = vld [vmem:[%s0 + $0x8] sm:$0xff]
    %v47 = vld [vmem:[%s0 + $0x10] sm:$0xff]
    %v48 = vld [vmem:[%s0 + $0x18] sm:$0xff]
    %v49 = vlaneseq
    %v50 = vshrl.u32 %v49, 7
    %v51 = vsub.s32 0, %v50
    %v52 = vrot.slane %v45, %v51
    %v53 = vlaneseq
    %v54 = vshrl.u32 %v53, 7
    %v55 = vsub.s32 0, %v54
    %v56 = vrot.slane %v46, %v55
    %v57 = vlaneseq
    %v58 = vshrl.u32 %v57, 7
    %v59 = vsub.s32 0, %v58
    %v60 = vrot.slane %v47, %v59
    %v61 = vlaneseq
    %v62 = vshrl.u32 %v61, 7
    %v63 = vsub.s32 0, %v62
    %v64 = vrot.slane %v48, %v63
    %65 = vst [vmem:[#allocation2] sm:$0xf] %v52
    %66 = vst [vmem:[#allocation2 + $0x8] sm:$0xf] %v56
    %67 = vst [vmem:[#allocation2 + $0x10] sm:$0xf] %v60
    %vm68 = vcmask 519168
    %69 = vst.msk [vmem:[#allocation2 + $0x18] sm:$0xf] %vm68, %v64
    %v70 = vlaneseq
    %v71 = vshrl.u32 %v70, 7
    %v72 = vsub.s32 4, %v71
    %v73 = vrot.slane %v45, %v72
    %v74 = vlaneseq
    %v75 = vshrl.u32 %v74, 7
    %v76 = vsub.s32 4, %v75
    %v77 = vrot.slane %v46, %v76
    %v78 = vlaneseq
    %v79 = vshrl.u32 %v78, 7
    %v80 = vsub.s32 4, %v79
    %v81 = vrot.slane %v47, %v80
    %v82 = vlaneseq
    %v83 = vshrl.u32 %v82, 7
    %v84 = vsub.s32 4, %v83
    %v85 = vrot.slane %v48, %v84
    %86 = vst [vmem:[#allocation2] sm:$0xf0] %v73
    %87 = vst [vmem:[#allocation2 + $0x8] sm:$0xf0] %v77
    %88 = vst [vmem:[#allocation2 + $0x10] sm:$0xf0] %v81
    %vm89 = vcmask 523268
    %90 = vst.msk [vmem:[#allocation2 + $0x18] sm:$0xf0] %vm89, %v85
    %v91 = vlaneseq
    %v92 = vshrl.u32 %v91, 7
    %v93 = vsub.s32 1, %v92
    %v94 = vrot.slane %v45, %v93
    %v95 = vlaneseq
    %v96 = vshrl.u32 %v95, 7
    %v97 = vsub.s32 1, %v96
    %v98 = vrot.slane %v46, %v97
    %v99 = vlaneseq
    %v100 = vshrl.u32 %v99, 7
    %v101 = vsub.s32 1, %v100
    %v102 = vrot.slane %v47, %v101
    %v103 = vlaneseq
    %v104 = vshrl.u32 %v103, 7
    %v105 = vsub.s32 1, %v104
    %v106 = vrot.slane %v48, %v105
    %s107 = scalar_lea.vmem [#allocation2], 32
    %108 = vst [vmem:[%s107] sm:$0xf] %v94
    %109 = vst [vmem:[%s107 + $0x8] sm:$0xf] %v98
    %110 = vst [vmem:[%s107 + $0x10] sm:$0xf] %v102
    %111 = vst.msk [vmem:[%s107 + $0x18] sm:$0xf] %vm68, %v106
    %v112 = vlaneseq
    %v113 = vshrl.u32 %v112, 7
    %v114 = vsub.s32 5, %v113
    %v115 = vrot.slane %v45, %v114
    %v116 = vlaneseq
    %v117 = vshrl.u32 %v116, 7
    %v118 = vsub.s32 5, %v117
    %v119 = vrot.slane %v46, %v118
    %v120 = vlaneseq
    %v121 = vshrl.u32 %v120, 7
    %v122 = vsub.s32 5, %v121
    %v123 = vrot.slane %v47, %v122
    %v124 = vlaneseq
    %v125 = vshrl.u32 %v124, 7
    %v126 = vsub.s32 5, %v125
    %v127 = vrot.slane %v48, %v126
    %128 = vst [vmem:[%s107] sm:$0xf0] %v115
    %129 = vst [vmem:[%s107 + $0x8] sm:$0xf0] %v119
    %130 = vst [vmem:[%s107 + $0x10] sm:$0xf0] %v123
    %131 = vst.msk [vmem:[%s107 + $0x18] sm:$0xf0] %vm89, %v127
    %v132 = vlaneseq
    %v133 = vshrl.u32 %v132, 7
    %v134 = vsub.s32 2, %v133
    %v135 = vrot.slane %v45, %v134
    %v136 = vlaneseq
    %v137 = vshrl.u32 %v136, 7
    %v138 = vsub.s32 2, %v137
    %v139 = vrot.slane %v46, %v138
    %v140 = vlaneseq
    %v141 = vshrl.u32 %v140, 7
    %v142 = vsub.s32 2, %v141
    %v143 = vrot.slane %v47, %v142
    %v144 = vlaneseq
    %v145 = vshrl.u32 %v144, 7
    %v146 = vsub.s32 2, %v145
    %v147 = vrot.slane %v48, %v146
    %s148 = scalar_lea.vmem [#allocation2], 64
    %149 = vst [vmem:[%s148] sm:$0xf] %v135
    %150 = vst [vmem:[%s148 + $0x8] sm:$0xf] %v139
    %151 = vst [vmem:[%s148 + $0x10] sm:$0xf] %v143
    %152 = vst.msk [vmem:[%s148 + $0x18] sm:$0xf] %vm68, %v147
    %v153 = vlaneseq
    %v154 = vshrl.u32 %v153, 7
    %v155 = vsub.s32 6, %v154
    %v156 = vrot.slane %v45, %v155
    %v157 = vlaneseq
    %v158 = vshrl.u32 %v157, 7
    %v159 = vsub.s32 6, %v158
    %v160 = vrot.slane %v46, %v159
    %v161 = vlaneseq
    %v162 = vshrl.u32 %v161, 7
    %v163 = vsub.s32 6, %v162
    %v164 = vrot.slane %v47, %v163
    %v165 = vlaneseq
    %v166 = vshrl.u32 %v165, 7
    %v167 = vsub.s32 6, %v166
    %v168 = vrot.slane %v48, %v167
    %169 = vst [vmem:[%s148] sm:$0xf0] %v156
    %170 = vst [vmem:[%s148 + $0x8] sm:$0xf0] %v160
    %171 = vst [vmem:[%s148 + $0x10] sm:$0xf0] %v164
    %172 = vst.msk [vmem:[%s148 + $0x18] sm:$0xf0] %vm89, %v168
    %v173 = vlaneseq
    %v174 = vshrl.u32 %v173, 7
    %v175 = vsub.s32 3, %v174
    %v176 = vrot.slane %v45, %v175
    %v177 = vlaneseq
    %v178 = vshrl.u32 %v177, 7
    %v179 = vsub.s32 3, %v178
    %v180 = vrot.slane %v46, %v179
    %v181 = vlaneseq
    %v182 = vshrl.u32 %v181, 7
    %v183 = vsub.s32 3, %v182
    %v184 = vrot.slane %v47, %v183
    %v185 = vlaneseq
    %v186 = vshrl.u32 %v185, 7
    %v187 = vsub.s32 3, %v186
    %v188 = vrot.slane %v48, %v187
    %s189 = scalar_lea.vmem [#allocation2], 96
    %190 = vst [vmem:[%s189] sm:$0xf] %v176
    %191 = vst [vmem:[%s189 + $0x8] sm:$0xf] %v180
    %192 = vst [vmem:[%s189 + $0x10] sm:$0xf] %v184
    %193 = vst.msk [vmem:[%s189 + $0x18] sm:$0xf] %vm68, %v188
    %v194 = vlaneseq
    %v195 = vshrl.u32 %v194, 7
    %v196 = vsub.s32 7, %v195
    %v197 = vrot.slane %v45, %v196
    %v198 = vlaneseq
    %v199 = vshrl.u32 %v198, 7
    %v200 = vsub.s32 7, %v199
    %v201 = vrot.slane %v46, %v200
    %v202 = vlaneseq
    %v203 = vshrl.u32 %v202, 7
    %v204 = vsub.s32 7, %v203
    %v205 = vrot.slane %v47, %v204
    %v206 = vlaneseq
    %v207 = vshrl.u32 %v206, 7
    %v208 = vsub.s32 7, %v207
    %v209 = vrot.slane %v48, %v208
    %210 = vst [vmem:[%s189] sm:$0xf0] %v197
    %211 = vst [vmem:[%s189 + $0x8] sm:$0xf0] %v201
    %212 = vst [vmem:[%s189 + $0x10] sm:$0xf0] %v205
    %213 = vst.msk [vmem:[%s189 + $0x18] sm:$0xf0] %vm89, %v209
    %v214 = vld [vmem:[#allocation2] sm:$0xff]
    %v215 = vld [vmem:[#allocation2 + $0x8] sm:$0xff]
    %v216 = vld [vmem:[#allocation2 + $0x10] sm:$0xff]
    %v217 = vld [vmem:[#allocation2 + $0x18] sm:$0xff]
    %v218 = vld [vmem:[%s2] sm:$0xff]
    %220 = vset.pattern.permute.xlu0 0
    %221 = vperm.xlu0 %220, %v218
    %v222 = vpop.permute.xlu0 %221
    %v224 = vmul.f32 %v222, %v214
    %v225 = vmul.f32 %v222, %v215
    %v226 = vmul.f32 %v222, %v216
    %v227 = vmul.f32 %v222, %v217
    %228 = vset.pattern.permute.xlu0 1
    %229 = vperm.xlu0 %228, %v218
    %v230 = vpop.permute.xlu0 %229
    %v232 = vmul.f32 %v230, %v214
    %v233 = vmul.f32 %v230, %v215
    %v234 = vmul.f32 %v230, %v216
    %v235 = vmul.f32 %v230, %v217
    %240 = vrot.lane.b32.xlu0 %v232, 127
    %v241 = vpop.permute.xlu0 %240
    %242 = vrot.lane.b32.xlu0 %v233, 127
    %v243 = vpop.permute.xlu0 %242
    %244 = vrot.lane.b32.xlu0 %v234, 127
    %v245 = vpop.permute.xlu0 %244
    %246 = vrot.lane.b32.xlu0 %v235, 127
    %v247 = vpop.permute.xlu0 %246
    %vm248 = vcmask 1039360
    %v249 = vsel %vm248, %v241, %v243
    %v250 = vsel %vm248, %v243, %v245
    %v251 = vsel %vm248, %v245, %v247
    %v256 = vadd.f32 %v224, %v249
    %v257 = vadd.f32 %v225, %v250
    %v258 = vadd.f32 %v226, %v251
    %v259 = vadd.f32 %v227, %v247
    %260 = vset.pattern.permute.xlu0 2
    %261 = vperm.xlu0 %260, %v218
    %v262 = vpop.permute.xlu0 %261
    %v264 = vmul.f32 %v262, %v214
    %v265 = vmul.f32 %v262, %v215
    %v266 = vmul.f32 %v262, %v216
    %v267 = vmul.f32 %v262, %v217
    %272 = vrot.lane.b32.xlu0 %v264, 126
    %v273 = vpop.permute.xlu0 %272
    %274 = vrot.lane.b32.xlu0 %v265, 126
    %v275 = vpop.permute.xlu0 %274
    %276 = vrot.lane.b32.xlu0 %v266, 126
    %v277 = vpop.permute.xlu0 %276
    %278 = vrot.lane.b32.xlu0 %v267, 126
    %v279 = vpop.permute.xlu0 %278
    %vm280 = vcmask 1031168
    %v281 = vsel %vm280, %v273, %v275
    %v282 = vsel %vm280, %v275, %v277
    %v283 = vsel %vm280, %v277, %v279
    %v288 = vadd.f32 %v256, %v281
    %v289 = vadd.f32 %v257, %v282
    %v290 = vadd.f32 %v258, %v283
    %v291 = vadd.f32 %v259, %v279
    %292 = vset.pattern.permute.xlu0 3
    %293 = vperm.xlu0 %292, %v218
    %v294 = vpop.permute.xlu0 %293
    %v296 = vmul.f32 %v294, %v214
    %v297 = vmul.f32 %v294, %v215
    %v298 = vmul.f32 %v294, %v216
    %v299 = vmul.f32 %v294, %v217
    %304 = vrot.lane.b32.xlu0 %v296, 110
    %v305 = vpop.permute.xlu0 %304
    %306 = vrot.lane.b32.xlu0 %v297, 110
    %v307 = vpop.permute.xlu0 %306
    %308 = vrot.lane.b32.xlu0 %v298, 110
    %v309 = vpop.permute.xlu0 %308
    %310 = vrot.lane.b32.xlu0 %v299, 110
    %v311 = vpop.permute.xlu0 %310
    %vm312 = vcmask 900096
    %v313 = vsel %vm312, %v305, %v307
    %v314 = vsel %vm312, %v307, %v309
    %v315 = vsel %vm312, %v309, %v311
    %v320 = vadd.f32 %v288, %v313
    %v321 = vadd.f32 %v289, %v314
    %v322 = vadd.f32 %v290, %v315
    %v323 = vadd.f32 %v291, %v311
    %324 = vset.pattern.permute.xlu0 4
    %325 = vperm.xlu0 %324, %v218
    %v326 = vpop.permute.xlu0 %325
    %v328 = vmul.f32 %v326, %v215
    %v329 = vmul.f32 %v326, %v216
    %v330 = vmul.f32 %v326, %v217
    %334 = vrot.lane.b32.xlu0 %v328, 109
    %v335 = vpop.permute.xlu0 %334
    %336 = vrot.lane.b32.xlu0 %v329, 109
    %v337 = vpop.permute.xlu0 %336
    %338 = vrot.lane.b32.xlu0 %v330, 109
    %v339 = vpop.permute.xlu0 %338
    %vm340 = vcmask 891904
    %v341 = vsel %vm340, %v335, %v337
    %v342 = vsel %vm340, %v337, %v339
    %v347 = vadd.f32 %v320, %v335
    %v348 = vadd.f32 %v321, %v341
    %v349 = vadd.f32 %v322, %v342
    %v350 = vadd.f32 %v323, %v339
    %351 = vset.pattern.permute.xlu0 5
    %352 = vperm.xlu0 %351, %v218
    %v353 = vpop.permute.xlu0 %352
    %v355 = vmul.f32 %v353, %v215
    %v356 = vmul.f32 %v353, %v216
    %v357 = vmul.f32 %v353, %v217
    %361 = vrot.lane.b32.xlu0 %v355, 108
    %v362 = vpop.permute.xlu0 %361
    %363 = vrot.lane.b32.xlu0 %v356, 108
    %v364 = vpop.permute.xlu0 %363
    %365 = vrot.lane.b32.xlu0 %v357, 108
    %v366 = vpop.permute.xlu0 %365
    %vm367 = vcmask 883712
    %v368 = vsel %vm367, %v362, %v364
    %v369 = vsel %vm367, %v364, %v366
    %v374 = vadd.f32 %v347, %v362
    %v375 = vadd.f32 %v348, %v368
    %v376 = vadd.f32 %v349, %v369
    %v377 = vadd.f32 %v350, %v366
    %378 = vset.pattern.permute.xlu0 6
    %379 = vperm.xlu0 %378, %v218
    %v380 = vpop.permute.xlu0 %379
    %v382 = vmul.f32 %v380, %v215
    %v383 = vmul.f32 %v380, %v216
    %v384 = vmul.f32 %v380, %v217
    %388 = vrot.lane.b32.xlu0 %v382, 92
    %v389 = vpop.permute.xlu0 %388
    %390 = vrot.lane.b32.xlu0 %v383, 92
    %v391 = vpop.permute.xlu0 %390
    %392 = vrot.lane.b32.xlu0 %v384, 92
    %v393 = vpop.permute.xlu0 %392
    %vm394 = vcmask 752640
    %v395 = vsel %vm394, %v389, %v391
    %v396 = vsel %vm394, %v391, %v393
    %v401 = vadd.f32 %v374, %v389
    %v402 = vadd.f32 %v375, %v395
    %v403 = vadd.f32 %v376, %v396
    %v404 = vadd.f32 %v377, %v393
    %405 = vset.pattern.permute.xlu0 7
    %406 = vperm.xlu0 %405, %v218
    %v407 = vpop.permute.xlu0 %406
    %v409 = vmul.f32 %v407, %v215
    %v410 = vmul.f32 %v407, %v216
    %v411 = vmul.f32 %v407, %v217
    %415 = vrot.lane.b32.xlu0 %v409, 91
    %v416 = vpop.permute.xlu0 %415
    %417 = vrot.lane.b32.xlu0 %v410, 91
    %v418 = vpop.permute.xlu0 %417
    %419 = vrot.lane.b32.xlu0 %v411, 91
    %v420 = vpop.permute.xlu0 %419
    %vm421 = vcmask 744448
    %v422 = vsel %vm421, %v416, %v418
    %v423 = vsel %vm421, %v418, %v420
    %v428 = vadd.f32 %v401, %v416
    %v429 = vadd.f32 %v402, %v422
    %v430 = vadd.f32 %v403, %v423
    %v431 = vadd.f32 %v404, %v420
    %432 = vset.pattern.permute.xlu0 8
    %433 = vperm.xlu0 %432, %v218
    %v434 = vpop.permute.xlu0 %433
    %v436 = vmul.f32 %v434, %v215
    %v437 = vmul.f32 %v434, %v216
    %v438 = vmul.f32 %v434, %v217
    %442 = vrot.lane.b32.xlu0 %v436, 90
    %v443 = vpop.permute.xlu0 %442
    %444 = vrot.lane.b32.xlu0 %v437, 90
    %v445 = vpop.permute.xlu0 %444
    %446 = vrot.lane.b32.xlu0 %v438, 90
    %v447 = vpop.permute.xlu0 %446
    %vm448 = vcmask 736256
    %v449 = vsel %vm448, %v443, %v445
    %v450 = vsel %vm448, %v445, %v447
    %v455 = vadd.f32 %v428, %v443
    %v456 = vadd.f32 %v429, %v449
    %v457 = vadd.f32 %v430, %v450
    %v458 = vadd.f32 %v431, %v447
    %v459 = vld [vmem:[%s107] sm:$0xff]
    %v460 = vld [vmem:[%s107 + $0x8] sm:$0xff]
    %v461 = vld [vmem:[%s107 + $0x10] sm:$0xff]
    %v462 = vld [vmem:[%s107 + $0x18] sm:$0xff]
    %463 = vset.pattern.permute.xlu0 9
    %464 = vperm.xlu0 %463, %v218
    %v465 = vpop.permute.xlu0 %464
    %v467 = vmul.f32 %v465, %v459
    %v468 = vmul.f32 %v465, %v460
    %v469 = vmul.f32 %v465, %v461
    %v470 = vmul.f32 %v465, %v462
    %v471 = vadd.f32 %v455, %v467
    %v472 = vadd.f32 %v456, %v468
    %v473 = vadd.f32 %v457, %v469
    %v474 = vadd.f32 %v458, %v470
    %475 = vset.pattern.permute.xlu0 10
    %476 = vperm.xlu0 %475, %v218
    %v477 = vpop.permute.xlu0 %476
    %v479 = vmul.f32 %v477, %v459
    %v480 = vmul.f32 %v477, %v460
    %v481 = vmul.f32 %v477, %v461
    %v482 = vmul.f32 %v477, %v462
    %487 = vrot.lane.b32.xlu0 %v479, 127
    %v488 = vpop.permute.xlu0 %487
    %489 = vrot.lane.b32.xlu0 %v480, 127
    %v490 = vpop.permute.xlu0 %489
    %491 = vrot.lane.b32.xlu0 %v481, 127
    %v492 = vpop.permute.xlu0 %491
    %493 = vrot.lane.b32.xlu0 %v482, 127
    %v494 = vpop.permute.xlu0 %493
    %v495 = vsel %vm248, %v488, %v490
    %v496 = vsel %vm248, %v490, %v492
    %v497 = vsel %vm248, %v492, %v494
    %v502 = vadd.f32 %v471, %v495
    %v503 = vadd.f32 %v472, %v496
    %v504 = vadd.f32 %v473, %v497
    %v505 = vadd.f32 %v474, %v494
    %506 = vset.pattern.permute.xlu0 11
    %507 = vperm.xlu0 %506, %v218
    %v508 = vpop.permute.xlu0 %507
    %v510 = vmul.f32 %v508, %v459
    %v511 = vmul.f32 %v508, %v460
    %v512 = vmul.f32 %v508, %v461
    %v513 = vmul.f32 %v508, %v462
    %518 = vrot.lane.b32.xlu0 %v510, 126
    %v519 = vpop.permute.xlu0 %518
    %520 = vrot.lane.b32.xlu0 %v511, 126
    %v521 = vpop.permute.xlu0 %520
    %522 = vrot.lane.b32.xlu0 %v512, 126
    %v523 = vpop.permute.xlu0 %522
    %524 = vrot.lane.b32.xlu0 %v513, 126
    %v525 = vpop.permute.xlu0 %524
    %v526 = vsel %vm280, %v519, %v521
    %v527 = vsel %vm280, %v521, %v523
    %v528 = vsel %vm280, %v523, %v525
    %v533 = vadd.f32 %v502, %v526
    %v534 = vadd.f32 %v503, %v527
    %v535 = vadd.f32 %v504, %v528
    %v536 = vadd.f32 %v505, %v525
    %537 = vset.pattern.permute.xlu0 12
    %538 = vperm.xlu0 %537, %v218
    %v539 = vpop.permute.xlu0 %538
    %v541 = vmul.f32 %v539, %v459
    %v542 = vmul.f32 %v539, %v460
    %v543 = vmul.f32 %v539, %v461
    %v544 = vmul.f32 %v539, %v462
    %549 = vrot.lane.b32.xlu0 %v541, 110
    %v550 = vpop.permute.xlu0 %549
    %551 = vrot.lane.b32.xlu0 %v542, 110
    %v552 = vpop.permute.xlu0 %551
    %553 = vrot.lane.b32.xlu0 %v543, 110
    %v554 = vpop.permute.xlu0 %553
    %555 = vrot.lane.b32.xlu0 %v544, 110
    %v556 = vpop.permute.xlu0 %555
    %v557 = vsel %vm312, %v550, %v552
    %v558 = vsel %vm312, %v552, %v554
    %v559 = vsel %vm312, %v554, %v556
    %v564 = vadd.f32 %v533, %v557
    %v565 = vadd.f32 %v534, %v558
    %v566 = vadd.f32 %v535, %v559
    %v567 = vadd.f32 %v536, %v556
    %568 = vset.pattern.permute.xlu0 13
    %569 = vperm.xlu0 %568, %v218
    %v570 = vpop.permute.xlu0 %569
    %v572 = vmul.f32 %v570, %v460
    %v573 = vmul.f32 %v570, %v461
    %v574 = vmul.f32 %v570, %v462
    %578 = vrot.lane.b32.xlu0 %v572, 109
    %v579 = vpop.permute.xlu0 %578
    %580 = vrot.lane.b32.xlu0 %v573, 109
    %v581 = vpop.permute.xlu0 %580
    %582 = vrot.lane.b32.xlu0 %v574, 109
    %v583 = vpop.permute.xlu0 %582
    %v584 = vsel %vm340, %v579, %v581
    %v585 = vsel %vm340, %v581, %v583
    %v590 = vadd.f32 %v564, %v579
    %v591 = vadd.f32 %v565, %v584
    %v592 = vadd.f32 %v566, %v585
    %v593 = vadd.f32 %v567, %v583
    %594 = vset.pattern.permute.xlu0 14
    %595 = vperm.xlu0 %594, %v218
    %v596 = vpop.permute.xlu0 %595
    %v598 = vmul.f32 %v596, %v460
    %v599 = vmul.f32 %v596, %v461
    %v600 = vmul.f32 %v596, %v462
    %604 = vrot.lane.b32.xlu0 %v598, 108
    %v605 = vpop.permute.xlu0 %604
    %606 = vrot.lane.b32.xlu0 %v599, 108
    %v607 = vpop.permute.xlu0 %606
    %608 = vrot.lane.b32.xlu0 %v600, 108
    %v609 = vpop.permute.xlu0 %608
    %v610 = vsel %vm367, %v605, %v607
    %v611 = vsel %vm367, %v607, %v609
    %v616 = vadd.f32 %v590, %v605
    %v617 = vadd.f32 %v591, %v610
    %v618 = vadd.f32 %v592, %v611
    %v619 = vadd.f32 %v593, %v609
    %620 = vset.pattern.permute.xlu0 15
    %621 = vperm.xlu0 %620, %v218
    %v622 = vpop.permute.xlu0 %621
    %v624 = vmul.f32 %v622, %v460
    %v625 = vmul.f32 %v622, %v461
    %v626 = vmul.f32 %v622, %v462
    %630 = vrot.lane.b32.xlu0 %v624, 92
    %v631 = vpop.permute.xlu0 %630
    %632 = vrot.lane.b32.xlu0 %v625, 92
    %v633 = vpop.permute.xlu0 %632
    %634 = vrot.lane.b32.xlu0 %v626, 92
    %v635 = vpop.permute.xlu0 %634
    %v636 = vsel %vm394, %v631, %v633
    %v637 = vsel %vm394, %v633, %v635
    %v642 = vadd.f32 %v616, %v631
    %v643 = vadd.f32 %v617, %v636
    %v644 = vadd.f32 %v618, %v637
    %v645 = vadd.f32 %v619, %v635
    %646 = vset.pattern.permute.xlu0 16
    %647 = vperm.xlu0 %646, %v218
    %v648 = vpop.permute.xlu0 %647
    %v650 = vmul.f32 %v648, %v460
    %v651 = vmul.f32 %v648, %v461
    %v652 = vmul.f32 %v648, %v462
    %656 = vrot.lane.b32.xlu0 %v650, 91
    %v657 = vpop.permute.xlu0 %656
    %658 = vrot.lane.b32.xlu0 %v651, 91
    %v659 = vpop.permute.xlu0 %658
    %660 = vrot.lane.b32.xlu0 %v652, 91
    %v661 = vpop.permute.xlu0 %660
    %v662 = vsel %vm421, %v657, %v659
    %v663 = vsel %vm421, %v659, %v661
    %v668 = vadd.f32 %v642, %v657
    %v669 = vadd.f32 %v643, %v662
    %v670 = vadd.f32 %v644, %v663
    %v671 = vadd.f32 %v645, %v661
    %672 = vset.pattern.permute.xlu0 17
    %673 = vperm.xlu0 %672, %v218
    %v674 = vpop.permute.xlu0 %673
    %v676 = vmul.f32 %v674, %v460
    %v677 = vmul.f32 %v674, %v461
    %v678 = vmul.f32 %v674, %v462
    %682 = vrot.lane.b32.xlu0 %v676, 90
    %v683 = vpop.permute.xlu0 %682
    %684 = vrot.lane.b32.xlu0 %v677, 90
    %v685 = vpop.permute.xlu0 %684
    %686 = vrot.lane.b32.xlu0 %v678, 90
    %v687 = vpop.permute.xlu0 %686
    %v688 = vsel %vm448, %v683, %v685
    %v689 = vsel %vm448, %v685, %v687
    %v694 = vadd.f32 %v668, %v683
    %v695 = vadd.f32 %v669, %v688
    %v696 = vadd.f32 %v670, %v689
    %v697 = vadd.f32 %v671, %v687
    %v698 = vld [vmem:[%s148] sm:$0xff]
    %v699 = vld [vmem:[%s148 + $0x8] sm:$0xff]
    %v700 = vld [vmem:[%s148 + $0x10] sm:$0xff]
    %v701 = vld [vmem:[%s148 + $0x18] sm:$0xff]
    %702 = vset.pattern.permute.xlu0 18
    %703 = vperm.xlu0 %702, %v218
    %v704 = vpop.permute.xlu0 %703
    %v706 = vmul.f32 %v704, %v698
    %v707 = vmul.f32 %v704, %v699
    %v708 = vmul.f32 %v704, %v700
    %v709 = vmul.f32 %v704, %v701
    %v710 = vadd.f32 %v694, %v706
    %v711 = vadd.f32 %v695, %v707
    %v712 = vadd.f32 %v696, %v708
    %v713 = vadd.f32 %v697, %v709
    %714 = vset.pattern.permute.xlu0 19
    %715 = vperm.xlu0 %714, %v218
    %v716 = vpop.permute.xlu0 %715
    %v718 = vmul.f32 %v716, %v698
    %v719 = vmul.f32 %v716, %v699
    %v720 = vmul.f32 %v716, %v700
    %v721 = vmul.f32 %v716, %v701
    %726 = vrot.lane.b32.xlu0 %v718, 127
    %v727 = vpop.permute.xlu0 %726
    %728 = vrot.lane.b32.xlu0 %v719, 127
    %v729 = vpop.permute.xlu0 %728
    %730 = vrot.lane.b32.xlu0 %v720, 127
    %v731 = vpop.permute.xlu0 %730
    %732 = vrot.lane.b32.xlu0 %v721, 127
    %v733 = vpop.permute.xlu0 %732
    %v734 = vsel %vm248, %v727, %v729
    %v735 = vsel %vm248, %v729, %v731
    %v736 = vsel %vm248, %v731, %v733
    %v741 = vadd.f32 %v710, %v734
    %v742 = vadd.f32 %v711, %v735
    %v743 = vadd.f32 %v712, %v736
    %v744 = vadd.f32 %v713, %v733
    %745 = vset.pattern.permute.xlu0 20
    %746 = vperm.xlu0 %745, %v218
    %v747 = vpop.permute.xlu0 %746
    %v749 = vmul.f32 %v747, %v698
    %v750 = vmul.f32 %v747, %v699
    %v751 = vmul.f32 %v747, %v700
    %v752 = vmul.f32 %v747, %v701
    %757 = vrot.lane.b32.xlu0 %v749, 126
    %v758 = vpop.permute.xlu0 %757
    %759 = vrot.lane.b32.xlu0 %v750, 126
    %v760 = vpop.permute.xlu0 %759
    %761 = vrot.lane.b32.xlu0 %v751, 126
    %v762 = vpop.permute.xlu0 %761
    %763 = vrot.lane.b32.xlu0 %v752, 126
    %v764 = vpop.permute.xlu0 %763
    %v765 = vsel %vm280, %v758, %v760
    %v766 = vsel %vm280, %v760, %v762
    %v767 = vsel %vm280, %v762, %v764
    %v772 = vadd.f32 %v741, %v765
    %v773 = vadd.f32 %v742, %v766
    %v774 = vadd.f32 %v743, %v767
    %v775 = vadd.f32 %v744, %v764
    %776 = vset.pattern.permute.xlu0 21
    %777 = vperm.xlu0 %776, %v218
    %v778 = vpop.permute.xlu0 %777
    %v780 = vmul.f32 %v778, %v698
    %v781 = vmul.f32 %v778, %v699
    %v782 = vmul.f32 %v778, %v700
    %v783 = vmul.f32 %v778, %v701
    %788 = vrot.lane.b32.xlu0 %v780, 110
    %v789 = vpop.permute.xlu0 %788
    %790 = vrot.lane.b32.xlu0 %v781, 110
    %v791 = vpop.permute.xlu0 %790
    %792 = vrot.lane.b32.xlu0 %v782, 110
    %v793 = vpop.permute.xlu0 %792
    %794 = vrot.lane.b32.xlu0 %v783, 110
    %v795 = vpop.permute.xlu0 %794
    %v796 = vsel %vm312, %v789, %v791
    %v797 = vsel %vm312, %v791, %v793
    %v798 = vsel %vm312, %v793, %v795
    %v803 = vadd.f32 %v772, %v796
    %v804 = vadd.f32 %v773, %v797
    %v805 = vadd.f32 %v774, %v798
    %v806 = vadd.f32 %v775, %v795
    %807 = vset.pattern.permute.xlu0 22
    %808 = vperm.xlu0 %807, %v218
    %v809 = vpop.permute.xlu0 %808
    %v811 = vmul.f32 %v809, %v699
    %v812 = vmul.f32 %v809, %v700
    %v813 = vmul.f32 %v809, %v701
    %817 = vrot.lane.b32.xlu0 %v811, 109
    %v818 = vpop.permute.xlu0 %817
    %819 = vrot.lane.b32.xlu0 %v812, 109
    %v820 = vpop.permute.xlu0 %819
    %821 = vrot.lane.b32.xlu0 %v813, 109
    %v822 = vpop.permute.xlu0 %821
    %v823 = vsel %vm340, %v818, %v820
    %v824 = vsel %vm340, %v820, %v822
    %v829 = vadd.f32 %v803, %v818
    %v830 = vadd.f32 %v804, %v823
    %v831 = vadd.f32 %v805, %v824
    %v832 = vadd.f32 %v806, %v822
    %833 = vset.pattern.permute.xlu0 23
    %834 = vperm.xlu0 %833, %v218
    %v835 = vpop.permute.xlu0 %834
    %v837 = vmul.f32 %v835, %v699
    %v838 = vmul.f32 %v835, %v700
    %v839 = vmul.f32 %v835, %v701
    %843 = vrot.lane.b32.xlu0 %v837, 108
    %v844 = vpop.permute.xlu0 %843
    %845 = vrot.lane.b32.xlu0 %v838, 108
    %v846 = vpop.permute.xlu0 %845
    %847 = vrot.lane.b32.xlu0 %v839, 108
    %v848 = vpop.permute.xlu0 %847
    %v849 = vsel %vm367, %v844, %v846
    %v850 = vsel %vm367, %v846, %v848
    %v855 = vadd.f32 %v829, %v844
    %v856 = vadd.f32 %v830, %v849
    %v857 = vadd.f32 %v831, %v850
    %v858 = vadd.f32 %v832, %v848
    %859 = vset.pattern.permute.xlu0 24
    %860 = vperm.xlu0 %859, %v218
    %v861 = vpop.permute.xlu0 %860
    %v863 = vmul.f32 %v861, %v699
    %v864 = vmul.f32 %v861, %v700
    %v865 = vmul.f32 %v861, %v701
    %869 = vrot.lane.b32.xlu0 %v863, 92
    %v870 = vpop.permute.xlu0 %869
    %871 = vrot.lane.b32.xlu0 %v864, 92
    %v872 = vpop.permute.xlu0 %871
    %873 = vrot.lane.b32.xlu0 %v865, 92
    %v874 = vpop.permute.xlu0 %873
    %v875 = vsel %vm394, %v870, %v872
    %v876 = vsel %vm394, %v872, %v874
    %v881 = vadd.f32 %v855, %v870
    %v882 = vadd.f32 %v856, %v875
    %v883 = vadd.f32 %v857, %v876
    %v884 = vadd.f32 %v858, %v874
    %885 = vset.pattern.permute.xlu0 25
    %886 = vperm.xlu0 %885, %v218
    %v887 = vpop.permute.xlu0 %886
    %v889 = vmul.f32 %v887, %v699
    %v890 = vmul.f32 %v887, %v700
    %v891 = vmul.f32 %v887, %v701
    %895 = vrot.lane.b32.xlu0 %v889, 91
    %v896 = vpop.permute.xlu0 %895
    %897 = vrot.lane.b32.xlu0 %v890, 91
    %v898 = vpop.permute.xlu0 %897
    %899 = vrot.lane.b32.xlu0 %v891, 91
    %v900 = vpop.permute.xlu0 %899
    %v901 = vsel %vm421, %v896, %v898
    %v902 = vsel %vm421, %v898, %v900
    %v907 = vadd.f32 %v881, %v896
    %v908 = vadd.f32 %v882, %v901
    %v909 = vadd.f32 %v883, %v902
    %v910 = vadd.f32 %v884, %v900
    %911 = vset.pattern.permute.xlu0 26
    %912 = vperm.xlu0 %911, %v218
    %v913 = vpop.permute.xlu0 %912
    %v915 = vmul.f32 %v913, %v699
    %v916 = vmul.f32 %v913, %v700
    %v917 = vmul.f32 %v913, %v701
    %921 = vrot.lane.b32.xlu0 %v915, 90
    %v922 = vpop.permute.xlu0 %921
    %923 = vrot.lane.b32.xlu0 %v916, 90
    %v924 = vpop.permute.xlu0 %923
    %925 = vrot.lane.b32.xlu0 %v917, 90
    %v926 = vpop.permute.xlu0 %925
    %v927 = vsel %vm448, %v922, %v924
    %v928 = vsel %vm448, %v924, %v926
    %v933 = vadd.f32 %v907, %v922
    %v934 = vadd.f32 %v908, %v927
    %v935 = vadd.f32 %v909, %v928
    %v936 = vadd.f32 %v910, %v926
    %v937 = vld [vmem:[%s189] sm:$0xff]
    %v938 = vld [vmem:[%s189 + $0x8] sm:$0xff]
    %v939 = vld [vmem:[%s189 + $0x10] sm:$0xff]
    %v940 = vld [vmem:[%s189 + $0x18] sm:$0xff]
    %941 = vset.pattern.permute.xlu0 27
    %942 = vperm.xlu0 %941, %v218
    %v943 = vpop.permute.xlu0 %942
    %v945 = vmul.f32 %v943, %v937
    %v946 = vmul.f32 %v943, %v938
    %v947 = vmul.f32 %v943, %v939
    %v948 = vmul.f32 %v943, %v940
    %v949 = vadd.f32 %v933, %v945
    %v950 = vadd.f32 %v934, %v946
    %v951 = vadd.f32 %v935, %v947
    %v952 = vadd.f32 %v936, %v948
    %953 = vset.pattern.permute.xlu0 28
    %954 = vperm.xlu0 %953, %v218
    %v955 = vpop.permute.xlu0 %954
    %v957 = vmul.f32 %v955, %v937
    %v958 = vmul.f32 %v955, %v938
    %v959 = vmul.f32 %v955, %v939
    %v960 = vmul.f32 %v955, %v940
    %965 = vrot.lane.b32.xlu0 %v957, 127
    %v966 = vpop.permute.xlu0 %965
    %967 = vrot.lane.b32.xlu0 %v958, 127
    %v968 = vpop.permute.xlu0 %967
    %969 = vrot.lane.b32.xlu0 %v959, 127
    %v970 = vpop.permute.xlu0 %969
    %971 = vrot.lane.b32.xlu0 %v960, 127
    %v972 = vpop.permute.xlu0 %971
    %v973 = vsel %vm248, %v966, %v968
    %v974 = vsel %vm248, %v968, %v970
    %v975 = vsel %vm248, %v970, %v972
    %v980 = vadd.f32 %v949, %v973
    %v981 = vadd.f32 %v950, %v974
    %v982 = vadd.f32 %v951, %v975
    %v983 = vadd.f32 %v952, %v972
    %984 = vset.pattern.permute.xlu0 29
    %985 = vperm.xlu0 %984, %v218
    %v986 = vpop.permute.xlu0 %985
    %v988 = vmul.f32 %v986, %v937
    %v989 = vmul.f32 %v986, %v938
    %v990 = vmul.f32 %v986, %v939
    %v991 = vmul.f32 %v986, %v940
    %996 = vrot.lane.b32.xlu0 %v988, 126
    %v997 = vpop.permute.xlu0 %996
    %998 = vrot.lane.b32.xlu0 %v989, 126
    %v999 = vpop.permute.xlu0 %998
    %1000 = vrot.lane.b32.xlu0 %v990, 126
    %v1001 = vpop.permute.xlu0 %1000
    %1002 = vrot.lane.b32.xlu0 %v991, 126
    %v1003 = vpop.permute.xlu0 %1002
    %v1004 = vsel %vm280, %v997, %v999
    %v1005 = vsel %vm280, %v999, %v1001
    %v1006 = vsel %vm280, %v1001, %v1003
    %v1011 = vadd.f32 %v980, %v1004
    %v1012 = vadd.f32 %v981, %v1005
    %v1013 = vadd.f32 %v982, %v1006
    %v1014 = vadd.f32 %v983, %v1003
    %1015 = vset.pattern.permute.xlu0 30
    %1016 = vperm.xlu0 %1015, %v218
    %v1017 = vpop.permute.xlu0 %1016
    %v1019 = vmul.f32 %v1017, %v937
    %v1020 = vmul.f32 %v1017, %v938
    %v1021 = vmul.f32 %v1017, %v939
    %v1022 = vmul.f32 %v1017, %v940
    %1027 = vrot.lane.b32.xlu0 %v1019, 110
    %v1028 = vpop.permute.xlu0 %1027
    %1029 = vrot.lane.b32.xlu0 %v1020, 110
    %v1030 = vpop.permute.xlu0 %1029
    %1031 = vrot.lane.b32.xlu0 %v1021, 110
    %v1032 = vpop.permute.xlu0 %1031
    %1033 = vrot.lane.b32.xlu0 %v1022, 110
    %v1034 = vpop.permute.xlu0 %1033
    %v1035 = vsel %vm312, %v1028, %v1030
    %v1036 = vsel %vm312, %v1030, %v1032
    %v1037 = vsel %vm312, %v1032, %v1034
    %v1042 = vadd.f32 %v1011, %v1035
    %v1043 = vadd.f32 %v1012, %v1036
    %v1044 = vadd.f32 %v1013, %v1037
    %v1045 = vadd.f32 %v1014, %v1034
    %1046 = vset.pattern.permute.xlu0 31
    %1047 = vperm.xlu0 %1046, %v218
    %v1048 = vpop.permute.xlu0 %1047
    %v1050 = vmul.f32 %v1048, %v938
    %v1051 = vmul.f32 %v1048, %v939
    %v1052 = vmul.f32 %v1048, %v940
    %1056 = vrot.lane.b32.xlu0 %v1050, 109
    %v1057 = vpop.permute.xlu0 %1056
    %1058 = vrot.lane.b32.xlu0 %v1051, 109
    %v1059 = vpop.permute.xlu0 %1058
    %1060 = vrot.lane.b32.xlu0 %v1052, 109
    %v1061 = vpop.permute.xlu0 %1060
    %v1062 = vsel %vm340, %v1057, %v1059
    %v1063 = vsel %vm340, %v1059, %v1061
    %v1068 = vadd.f32 %v1042, %v1057
    %v1069 = vadd.f32 %v1043, %v1062
    %v1070 = vadd.f32 %v1044, %v1063
    %v1071 = vadd.f32 %v1045, %v1061
    %1072 = vset.pattern.permute.xlu0 32
    %1073 = vperm.xlu0 %1072, %v218
    %v1074 = vpop.permute.xlu0 %1073
    %v1076 = vmul.f32 %v1074, %v938
    %v1077 = vmul.f32 %v1074, %v939
    %v1078 = vmul.f32 %v1074, %v940
    %1082 = vrot.lane.b32.xlu0 %v1076, 108
    %v1083 = vpop.permute.xlu0 %1082
    %1084 = vrot.lane.b32.xlu0 %v1077, 108
    %v1085 = vpop.permute.xlu0 %1084
    %1086 = vrot.lane.b32.xlu0 %v1078, 108
    %v1087 = vpop.permute.xlu0 %1086
    %v1088 = vsel %vm367, %v1083, %v1085
    %v1089 = vsel %vm367, %v1085, %v1087
    %v1094 = vadd.f32 %v1068, %v1083
    %v1095 = vadd.f32 %v1069, %v1088
    %v1096 = vadd.f32 %v1070, %v1089
    %v1097 = vadd.f32 %v1071, %v1087
    %1098 = vset.pattern.permute.xlu0 33
    %1099 = vperm.xlu0 %1098, %v218
    %v1100 = vpop.permute.xlu0 %1099
    %v1102 = vmul.f32 %v1100, %v938
    %v1103 = vmul.f32 %v1100, %v939
    %v1104 = vmul.f32 %v1100, %v940
    %1108 = vrot.lane.b32.xlu0 %v1102, 92
    %v1109 = vpop.permute.xlu0 %1108
    %1110 = vrot.lane.b32.xlu0 %v1103, 92
    %v1111 = vpop.permute.xlu0 %1110
    %1112 = vrot.lane.b32.xlu0 %v1104, 92
    %v1113 = vpop.permute.xlu0 %1112
    %v1114 = vsel %vm394, %v1109, %v1111
    %v1115 = vsel %vm394, %v1111, %v1113
    %v1120 = vadd.f32 %v1094, %v1109
    %v1121 = vadd.f32 %v1095, %v1114
    %v1122 = vadd.f32 %v1096, %v1115
    %v1123 = vadd.f32 %v1097, %v1113
    %1124 = vset.pattern.permute.xlu0 34
    %1125 = vperm.xlu0 %1124, %v218
    %v1126 = vpop.permute.xlu0 %1125
    %v1128 = vmul.f32 %v1126, %v938
    %v1129 = vmul.f32 %v1126, %v939
    %v1130 = vmul.f32 %v1126, %v940
    %1134 = vrot.lane.b32.xlu0 %v1128, 91
    %v1135 = vpop.permute.xlu0 %1134
    %1136 = vrot.lane.b32.xlu0 %v1129, 91
    %v1137 = vpop.permute.xlu0 %1136
    %1138 = vrot.lane.b32.xlu0 %v1130, 91
    %v1139 = vpop.permute.xlu0 %1138
    %v1140 = vsel %vm421, %v1135, %v1137
    %v1141 = vsel %vm421, %v1137, %v1139
    %v1146 = vadd.f32 %v1120, %v1135
    %v1147 = vadd.f32 %v1121, %v1140
    %v1148 = vadd.f32 %v1122, %v1141
    %v1149 = vadd.f32 %v1123, %v1139
    %1150 = vset.pattern.permute.xlu0 35
    %1151 = vperm.xlu0 %1150, %v218
    %v1152 = vpop.permute.xlu0 %1151
    %v1154 = vmul.f32 %v1152, %v938
    %v1155 = vmul.f32 %v1152, %v939
    %v1156 = vmul.f32 %v1152, %v940
    %1160 = vrot.lane.b32.xlu0 %v1154, 90
    %v1161 = vpop.permute.xlu0 %1160
    %1162 = vrot.lane.b32.xlu0 %v1155, 90
    %v1163 = vpop.permute.xlu0 %1162
    %1164 = vrot.lane.b32.xlu0 %v1156, 90
    %v1165 = vpop.permute.xlu0 %1164
    %v1166 = vsel %vm448, %v1161, %v1163
    %v1167 = vsel %vm448, %v1163, %v1165
    %v1172 = vadd.f32 %v1146, %v1161
    %v1173 = vadd.f32 %v1147, %v1166
    %v1174 = vadd.f32 %v1148, %v1167
    %v1175 = vadd.f32 %v1149, %v1165
    %v1176 = vld [vmem:[%s3] sm:$0xff]
    %v1177 = vld [vmem:[%s4] sm:$0xff]
    %1181 = vrot.lane.b32.xlu0 %v42, 109
    %v1182 = vpop.permute.xlu0 %1181
    %1183 = vrot.lane.b32.xlu0 %v43, 109
    %v1184 = vpop.permute.xlu0 %1183
    %1185 = vrot.lane.b32.xlu0 %v44, 109
    %v1186 = vpop.permute.xlu0 %1185
    %v1187 = vsel %vm340, %v1182, %v1184
    %v1188 = vsel %vm340, %v1184, %v1186
    %v1193 = vmul.f32 %v1172, %v1182
    %v1194 = vmul.f32 %v1173, %v1187
    %v1195 = vmul.f32 %v1174, %v1188
    %v1196 = vmul.f32 %v1175, %v1186
    %1201 = vrot.lane.b32.xlu0 %v1193, 19
    %v1202 = vpop.permute.xlu0 %1201
    %1203 = vrot.lane.b32.xlu0 %v1194, 19
    %v1204 = vpop.permute.xlu0 %1203
    %1205 = vrot.lane.b32.xlu0 %v1195, 19
    %v1206 = vpop.permute.xlu0 %1205
    %1207 = vrot.lane.b32.xlu0 %v1196, 19
    %v1208 = vpop.permute.xlu0 %1207
    %vm1209 = vcmask 154624
    %v1210 = vsel %vm1209, %v1202, %v1204
    %v1211 = vsel %vm1209, %v1204, %v1206
    %v1212 = vsel %vm1209, %v1206, %v1208
    %v1216 = vadd.f32 %v1210, %v1211
    %vm1217 = vcmask 261120
    %v1218 = vsel %vm1217, %v1212, 0.0
    %v1219 = vadd.f32 %v1216, %v1218
    %1220 = vadd.xlane.f32.xlu0 %v1219
    %v1221 = vpop.xlane.xlu0 %1220
    %v1222 = vrot.slane %v1221, 4
    %v1223 = vadd.f32 %v1221, %v1222
    %v1224 = vmul.f32 %v1223, 0.001953125
    %1226 = vset.pattern.permute.xlu0 0
    %1227 = vperm.xlu0 %1226, %v1224
    %v1228 = vpop.permute.xlu0 %1227
    %v1230 = vsub.f32 %v1172, %v1228
    %v1231 = vsub.f32 %v1173, %v1228
    %v1232 = vsub.f32 %v1174, %v1228
    %v1233 = vsub.f32 %v1175, %v1228
    %v1234 = vmul.f32 %v1230, %v1182
    %v1235 = vmul.f32 %v1231, %v1187
    %v1236 = vmul.f32 %v1232, %v1188
    %v1237 = vmul.f32 %v1233, %v1186
    %v1238 = vmul.f32 %v1234, %v1234
    %v1239 = vmul.f32 %v1235, %v1235
    %v1240 = vmul.f32 %v1236, %v1236
    %v1241 = vmul.f32 %v1237, %v1237
    %1246 = vrot.lane.b32.xlu0 %v1238, 19
    %v1247 = vpop.permute.xlu0 %1246
    %1248 = vrot.lane.b32.xlu0 %v1239, 19
    %v1249 = vpop.permute.xlu0 %1248
    %1250 = vrot.lane.b32.xlu0 %v1240, 19
    %v1251 = vpop.permute.xlu0 %1250
    %1252 = vrot.lane.b32.xlu0 %v1241, 19
    %v1253 = vpop.permute.xlu0 %1252
    %v1254 = vsel %vm1209, %v1247, %v1249
    %v1255 = vsel %vm1209, %v1249, %v1251
    %v1256 = vsel %vm1209, %v1251, %v1253
    %v1260 = vadd.f32 %v1254, %v1255
    %v1261 = vsel %vm1217, %v1256, 0.0
    %v1262 = vadd.f32 %v1260, %v1261
    %1263 = vadd.xlane.f32.xlu0 %v1262
    %v1264 = vpop.xlane.xlu0 %1263
    %v1265 = vrot.slane %v1264, 4
    %v1266 = vadd.f32 %v1264, %v1265
    %v1267 = vmul.f32 %v1266, 0.001953125
    %v1268 = vadd.f32 %v1267, 1e-05
    %v1269 = vrsqrt.pop %v1268
    %v1270 = vmul.f32 %v1269, %v1176
    %1272 = vset.pattern.permute.xlu0 0
    %1273 = vperm.xlu0 %1272, %v1270
    %v1274 = vpop.permute.xlu0 %1273
    %v1276 = vmul.f32 %v1234, %v1274
    %v1277 = vmul.f32 %v1235, %v1274
    %v1278 = vmul.f32 %v1236, %v1274
    %v1279 = vmul.f32 %v1237, %v1274
    %1281 = vset.pattern.permute.xlu0 0
    %1282 = vperm.xlu0 %1281, %v1177
    %v1283 = vpop.permute.xlu0 %1282
    %v1285 = vadd.f32 %v1276, %v1283
    %v1286 = vadd.f32 %v1277, %v1283
    %v1287 = vadd.f32 %v1278, %v1283
    %v1288 = vadd.f32 %v1279, %v1283
    %v1289 = vxor.u32 %v1285, 2147483648
    %v1290 = vxor.u32 %v1286, 2147483648
    %v1291 = vxor.u32 %v1287, 2147483648
    %v1292 = vxor.u32 %v1288, 2147483648
    %v1293 = vmul.f32 %v1289, 1.442695
    %v1294 = vpow.pop %v1293
    %v1295 = vmul.f32 %v1290, 1.442695
    %v1296 = vpow.pop %v1295
    %v1297 = vmul.f32 %v1291, 1.442695
    %v1298 = vpow.pop %v1297
    %v1299 = vmul.f32 %v1292, 1.442695
    %v1300 = vpow.pop %v1299
    %v1301 = vadd.f32 %v1294, 1.0
    %v1302 = vadd.f32 %v1296, 1.0
    %v1303 = vadd.f32 %v1298, 1.0
    %v1304 = vadd.f32 %v1300, 1.0
    %v1305 = vrcp.pop %v1301
    %v1306 = vmul.f32 1.0, %v1305
    %v1307 = vrcp.pop %v1302
    %v1308 = vmul.f32 1.0, %v1307
    %v1309 = vrcp.pop %v1303
    %v1310 = vmul.f32 1.0, %v1309
    %v1311 = vrcp.pop %v1304
    %v1312 = vmul.f32 1.0, %v1311
    %v1313 = vmul.f32 %v1285, %v1306
    %v1314 = vmul.f32 %v1286, %v1308
    %v1315 = vmul.f32 %v1287, %v1310
    %v1316 = vmul.f32 %v1288, %v1312
    %v1317 = vmul.f32 %v1313, %v1182
    %v1318 = vmul.f32 %v1314, %v1187
    %v1319 = vmul.f32 %v1315, %v1188
    %v1320 = vmul.f32 %v1316, %v1186
    %v1321 = vlaneseq
    %v1322 = vshrl.u32 %v1321, 7
    %v1323 = vsub.s32 0, %v1322
    %v1324 = vrot.slane %v1317, %v1323
    %v1325 = vlaneseq
    %v1326 = vshrl.u32 %v1325, 7
    %v1327 = vsub.s32 0, %v1326
    %v1328 = vrot.slane %v1318, %v1327
    %v1329 = vlaneseq
    %v1330 = vshrl.u32 %v1329, 7
    %v1331 = vsub.s32 0, %v1330
    %v1332 = vrot.slane %v1319, %v1331
    %v1333 = vlaneseq
    %v1334 = vshrl.u32 %v1333, 7
    %v1335 = vsub.s32 0, %v1334
    %v1336 = vrot.slane %v1320, %v1335
    %1341 = vrot.lane.b32.xlu0 %v1324, 19
    %v1342 = vpop.permute.xlu0 %1341
    %1343 = vrot.lane.b32.xlu0 %v1328, 19
    %v1344 = vpop.permute.xlu0 %1343
    %1345 = vrot.lane.b32.xlu0 %v1332, 19
    %v1346 = vpop.permute.xlu0 %1345
    %1347 = vrot.lane.b32.xlu0 %v1336, 19
    %v1348 = vpop.permute.xlu0 %1347
    %v1349 = vsel %vm1209, %v1342, %v1344
    %v1350 = vsel %vm1209, %v1344, %v1346
    %v1351 = vsel %vm1209, %v1346, %v1348
    %1355 = vst [vmem:[#allocation2 + $0x8] sm:$0xf] %v1349
    %1356 = vst [vmem:[#allocation2 + $0x10] sm:$0xf] %v1350
    %vm1357 = vcmask 257024
    %1358 = vst.msk [vmem:[#allocation2 + $0x18] sm:$0xf] %vm1357, %v1351
    %v1359 = vlaneseq
    %v1360 = vshrl.u32 %v1359, 7
    %v1361 = vsub.s32 4, %v1360
    %v1362 = vrot.slane %v1317, %v1361
    %v1363 = vlaneseq
    %v1364 = vshrl.u32 %v1363, 7
    %v1365 = vsub.s32 4, %v1364
    %v1366 = vrot.slane %v1318, %v1365
    %v1367 = vlaneseq
    %v1368 = vshrl.u32 %v1367, 7
    %v1369 = vsub.s32 4, %v1368
    %v1370 = vrot.slane %v1319, %v1369
    %v1371 = vlaneseq
    %v1372 = vshrl.u32 %v1371, 7
    %v1373 = vsub.s32 4, %v1372
    %v1374 = vrot.slane %v1320, %v1373
    %1379 = vrot.lane.b32.xlu0 %v1362, 19
    %v1380 = vpop.permute.xlu0 %1379
    %1381 = vrot.lane.b32.xlu0 %v1366, 19
    %v1382 = vpop.permute.xlu0 %1381
    %1383 = vrot.lane.b32.xlu0 %v1370, 19
    %v1384 = vpop.permute.xlu0 %1383
    %1385 = vrot.lane.b32.xlu0 %v1374, 19
    %v1386 = vpop.permute.xlu0 %1385
    %v1387 = vsel %vm1209, %v1380, %v1382
    %v1388 = vsel %vm1209, %v1382, %v1384
    %v1389 = vsel %vm1209, %v1384, %v1386
    %1393 = vst [vmem:[#allocation2 + $0x8] sm:$0xf0] %v1387
    %1394 = vst [vmem:[#allocation2 + $0x10] sm:$0xf0] %v1388
    %vm1395 = vcmask 261124
    %1396 = vst.msk [vmem:[#allocation2 + $0x18] sm:$0xf0] %vm1395, %v1389
    %v1397 = vlaneseq
    %v1398 = vshrl.u32 %v1397, 7
    %v1399 = vsub.s32 1, %v1398
    %v1400 = vrot.slane %v1317, %v1399
    %v1401 = vlaneseq
    %v1402 = vshrl.u32 %v1401, 7
    %v1403 = vsub.s32 1, %v1402
    %v1404 = vrot.slane %v1318, %v1403
    %v1405 = vlaneseq
    %v1406 = vshrl.u32 %v1405, 7
    %v1407 = vsub.s32 1, %v1406
    %v1408 = vrot.slane %v1319, %v1407
    %v1409 = vlaneseq
    %v1410 = vshrl.u32 %v1409, 7
    %v1411 = vsub.s32 1, %v1410
    %v1412 = vrot.slane %v1320, %v1411
    %1417 = vrot.lane.b32.xlu0 %v1400, 19
    %v1418 = vpop.permute.xlu0 %1417
    %1419 = vrot.lane.b32.xlu0 %v1404, 19
    %v1420 = vpop.permute.xlu0 %1419
    %1421 = vrot.lane.b32.xlu0 %v1408, 19
    %v1422 = vpop.permute.xlu0 %1421
    %1423 = vrot.lane.b32.xlu0 %v1412, 19
    %v1424 = vpop.permute.xlu0 %1423
    %v1425 = vsel %vm1209, %v1418, %v1420
    %v1426 = vsel %vm1209, %v1420, %v1422
    %v1427 = vsel %vm1209, %v1422, %v1424
    %1431 = vst [vmem:[%s107 + $0x8] sm:$0xf] %v1425
    %1432 = vst [vmem:[%s107 + $0x10] sm:$0xf] %v1426
    %1433 = vst.msk [vmem:[%s107 + $0x18] sm:$0xf] %vm1357, %v1427
    %v1434 = vlaneseq
    %v1435 = vshrl.u32 %v1434, 7
    %v1436 = vsub.s32 5, %v1435
    %v1437 = vrot.slane %v1317, %v1436
    %v1438 = vlaneseq
    %v1439 = vshrl.u32 %v1438, 7
    %v1440 = vsub.s32 5, %v1439
    %v1441 = vrot.slane %v1318, %v1440
    %v1442 = vlaneseq
    %v1443 = vshrl.u32 %v1442, 7
    %v1444 = vsub.s32 5, %v1443
    %v1445 = vrot.slane %v1319, %v1444
    %v1446 = vlaneseq
    %v1447 = vshrl.u32 %v1446, 7
    %v1448 = vsub.s32 5, %v1447
    %v1449 = vrot.slane %v1320, %v1448
    %1454 = vrot.lane.b32.xlu0 %v1437, 19
    %v1455 = vpop.permute.xlu0 %1454
    %1456 = vrot.lane.b32.xlu0 %v1441, 19
    %v1457 = vpop.permute.xlu0 %1456
    %1458 = vrot.lane.b32.xlu0 %v1445, 19
    %v1459 = vpop.permute.xlu0 %1458
    %1460 = vrot.lane.b32.xlu0 %v1449, 19
    %v1461 = vpop.permute.xlu0 %1460
    %v1462 = vsel %vm1209, %v1455, %v1457
    %v1463 = vsel %vm1209, %v1457, %v1459
    %v1464 = vsel %vm1209, %v1459, %v1461
    %1468 = vst [vmem:[%s107 + $0x8] sm:$0xf0] %v1462
    %1469 = vst [vmem:[%s107 + $0x10] sm:$0xf0] %v1463
    %1470 = vst.msk [vmem:[%s107 + $0x18] sm:$0xf0] %vm1395, %v1464
    %v1471 = vlaneseq
    %v1472 = vshrl.u32 %v1471, 7
    %v1473 = vsub.s32 2, %v1472
    %v1474 = vrot.slane %v1317, %v1473
    %v1475 = vlaneseq
    %v1476 = vshrl.u32 %v1475, 7
    %v1477 = vsub.s32 2, %v1476
    %v1478 = vrot.slane %v1318, %v1477
    %v1479 = vlaneseq
    %v1480 = vshrl.u32 %v1479, 7
    %v1481 = vsub.s32 2, %v1480
    %v1482 = vrot.slane %v1319, %v1481
    %v1483 = vlaneseq
    %v1484 = vshrl.u32 %v1483, 7
    %v1485 = vsub.s32 2, %v1484
    %v1486 = vrot.slane %v1320, %v1485
    %1491 = vrot.lane.b32.xlu0 %v1474, 19
    %v1492 = vpop.permute.xlu0 %1491
    %1493 = vrot.lane.b32.xlu0 %v1478, 19
    %v1494 = vpop.permute.xlu0 %1493
    %1495 = vrot.lane.b32.xlu0 %v1482, 19
    %v1496 = vpop.permute.xlu0 %1495
    %1497 = vrot.lane.b32.xlu0 %v1486, 19
    %v1498 = vpop.permute.xlu0 %1497
    %v1499 = vsel %vm1209, %v1492, %v1494
    %v1500 = vsel %vm1209, %v1494, %v1496
    %v1501 = vsel %vm1209, %v1496, %v1498
    %1505 = vst [vmem:[%s148 + $0x8] sm:$0xf] %v1499
    %1506 = vst [vmem:[%s148 + $0x10] sm:$0xf] %v1500
    %1507 = vst.msk [vmem:[%s148 + $0x18] sm:$0xf] %vm1357, %v1501
    %v1508 = vlaneseq
    %v1509 = vshrl.u32 %v1508, 7
    %v1510 = vsub.s32 6, %v1509
    %v1511 = vrot.slane %v1317, %v1510
    %v1512 = vlaneseq
    %v1513 = vshrl.u32 %v1512, 7
    %v1514 = vsub.s32 6, %v1513
    %v1515 = vrot.slane %v1318, %v1514
    %v1516 = vlaneseq
    %v1517 = vshrl.u32 %v1516, 7
    %v1518 = vsub.s32 6, %v1517
    %v1519 = vrot.slane %v1319, %v1518
    %v1520 = vlaneseq
    %v1521 = vshrl.u32 %v1520, 7
    %v1522 = vsub.s32 6, %v1521
    %v1523 = vrot.slane %v1320, %v1522
    %1528 = vrot.lane.b32.xlu0 %v1511, 19
    %v1529 = vpop.permute.xlu0 %1528
    %1530 = vrot.lane.b32.xlu0 %v1515, 19
    %v1531 = vpop.permute.xlu0 %1530
    %1532 = vrot.lane.b32.xlu0 %v1519, 19
    %v1533 = vpop.permute.xlu0 %1532
    %1534 = vrot.lane.b32.xlu0 %v1523, 19
    %v1535 = vpop.permute.xlu0 %1534
    %v1536 = vsel %vm1209, %v1529, %v1531
    %v1537 = vsel %vm1209, %v1531, %v1533
    %v1538 = vsel %vm1209, %v1533, %v1535
    %1542 = vst [vmem:[%s148 + $0x8] sm:$0xf0] %v1536
    %1543 = vst [vmem:[%s148 + $0x10] sm:$0xf0] %v1537
    %1544 = vst.msk [vmem:[%s148 + $0x18] sm:$0xf0] %vm1395, %v1538
    %v1545 = vlaneseq
    %v1546 = vshrl.u32 %v1545, 7
    %v1547 = vsub.s32 3, %v1546
    %v1548 = vrot.slane %v1317, %v1547
    %v1549 = vlaneseq
    %v1550 = vshrl.u32 %v1549, 7
    %v1551 = vsub.s32 3, %v1550
    %v1552 = vrot.slane %v1318, %v1551
    %v1553 = vlaneseq
    %v1554 = vshrl.u32 %v1553, 7
    %v1555 = vsub.s32 3, %v1554
    %v1556 = vrot.slane %v1319, %v1555
    %v1557 = vlaneseq
    %v1558 = vshrl.u32 %v1557, 7
    %v1559 = vsub.s32 3, %v1558
    %v1560 = vrot.slane %v1320, %v1559
    %1565 = vrot.lane.b32.xlu0 %v1548, 19
    %v1566 = vpop.permute.xlu0 %1565
    %1567 = vrot.lane.b32.xlu0 %v1552, 19
    %v1568 = vpop.permute.xlu0 %1567
    %1569 = vrot.lane.b32.xlu0 %v1556, 19
    %v1570 = vpop.permute.xlu0 %1569
    %1571 = vrot.lane.b32.xlu0 %v1560, 19
    %v1572 = vpop.permute.xlu0 %1571
    %v1573 = vsel %vm1209, %v1566, %v1568
    %v1574 = vsel %vm1209, %v1568, %v1570
    %v1575 = vsel %vm1209, %v1570, %v1572
    %1579 = vst [vmem:[%s189 + $0x8] sm:$0xf] %v1573
    %1580 = vst [vmem:[%s189 + $0x10] sm:$0xf] %v1574
    %1581 = vst.msk [vmem:[%s189 + $0x18] sm:$0xf] %vm1357, %v1575
    %v1582 = vlaneseq
    %v1583 = vshrl.u32 %v1582, 7
    %v1584 = vsub.s32 7, %v1583
    %v1585 = vrot.slane %v1317, %v1584
    %v1586 = vlaneseq
    %v1587 = vshrl.u32 %v1586, 7
    %v1588 = vsub.s32 7, %v1587
    %v1589 = vrot.slane %v1318, %v1588
    %v1590 = vlaneseq
    %v1591 = vshrl.u32 %v1590, 7
    %v1592 = vsub.s32 7, %v1591
    %v1593 = vrot.slane %v1319, %v1592
    %v1594 = vlaneseq
    %v1595 = vshrl.u32 %v1594, 7
    %v1596 = vsub.s32 7, %v1595
    %v1597 = vrot.slane %v1320, %v1596
    %1602 = vrot.lane.b32.xlu0 %v1585, 19
    %v1603 = vpop.permute.xlu0 %1602
    %1604 = vrot.lane.b32.xlu0 %v1589, 19
    %v1605 = vpop.permute.xlu0 %1604
    %1606 = vrot.lane.b32.xlu0 %v1593, 19
    %v1607 = vpop.permute.xlu0 %1606
    %1608 = vrot.lane.b32.xlu0 %v1597, 19
    %v1609 = vpop.permute.xlu0 %1608
    %v1610 = vsel %vm1209, %v1603, %v1605
    %v1611 = vsel %vm1209, %v1605, %v1607
    %v1612 = vsel %vm1209, %v1607, %v1609
    %1616 = vst [vmem:[%s189 + $0x8] sm:$0xf0] %v1610
    %1617 = vst [vmem:[%s189 + $0x10] sm:$0xf0] %v1611
    %1618 = vst.msk [vmem:[%s189 + $0x18] sm:$0xf0] %vm1395, %v1612
    %v1619 = vld [vmem:[#allocation2] sm:$0xff]
    %v1620 = vld [vmem:[#allocation2 + $0x8] sm:$0xff]
    %v1621 = vld [vmem:[#allocation2 + $0x10] sm:$0xff]
    %v1622 = vld [vmem:[#allocation2 + $0x18] sm:$0xff]
    %v1623 = vld [vmem:[%s5] sm:$0xff]
    %1625 = vset.pattern.permute.xlu0 0
    %1626 = vperm.xlu0 %1625, %v1623
    %v1627 = vpop.permute.xlu0 %1626
    %v1629 = vmul.f32 %v1627, %v1619
    %v1630 = vmul.f32 %v1627, %v1620
    %v1631 = vmul.f32 %v1627, %v1621
    %v1632 = vmul.f32 %v1627, %v1622
    %1633 = vset.pattern.permute.xlu0 1
    %1634 = vperm.xlu0 %1633, %v1623
    %v1635 = vpop.permute.xlu0 %1634
    %v1637 = vmul.f32 %v1635, %v1619
    %v1638 = vmul.f32 %v1635, %v1620
    %v1639 = vmul.f32 %v1635, %v1621
    %v1640 = vmul.f32 %v1635, %v1622
    %1645 = vrot.lane.b32.xlu0 %v1637, 127
    %v1646 = vpop.permute.xlu0 %1645
    %1647 = vrot.lane.b32.xlu0 %v1638, 127
    %v1648 = vpop.permute.xlu0 %1647
    %1649 = vrot.lane.b32.xlu0 %v1639, 127
    %v1650 = vpop.permute.xlu0 %1649
    %1651 = vrot.lane.b32.xlu0 %v1640, 127
    %v1652 = vpop.permute.xlu0 %1651
    %v1653 = vsel %vm248, %v1646, %v1648
    %v1654 = vsel %vm248, %v1648, %v1650
    %v1655 = vsel %vm248, %v1650, %v1652
    %v1660 = vadd.f32 %v1629, %v1653
    %v1661 = vadd.f32 %v1630, %v1654
    %v1662 = vadd.f32 %v1631, %v1655
    %v1663 = vadd.f32 %v1632, %v1652
    %1664 = vset.pattern.permute.xlu0 2
    %1665 = vperm.xlu0 %1664, %v1623
    %v1666 = vpop.permute.xlu0 %1665
    %v1668 = vmul.f32 %v1666, %v1619
    %v1669 = vmul.f32 %v1666, %v1620
    %v1670 = vmul.f32 %v1666, %v1621
    %v1671 = vmul.f32 %v1666, %v1622
    %1676 = vrot.lane.b32.xlu0 %v1668, 126
    %v1677 = vpop.permute.xlu0 %1676
    %1678 = vrot.lane.b32.xlu0 %v1669, 126
    %v1679 = vpop.permute.xlu0 %1678
    %1680 = vrot.lane.b32.xlu0 %v1670, 126
    %v1681 = vpop.permute.xlu0 %1680
    %1682 = vrot.lane.b32.xlu0 %v1671, 126
    %v1683 = vpop.permute.xlu0 %1682
    %v1684 = vsel %vm280, %v1677, %v1679
    %v1685 = vsel %vm280, %v1679, %v1681
    %v1686 = vsel %vm280, %v1681, %v1683
    %v1691 = vadd.f32 %v1660, %v1684
    %v1692 = vadd.f32 %v1661, %v1685
    %v1693 = vadd.f32 %v1662, %v1686
    %v1694 = vadd.f32 %v1663, %v1683
    %1695 = vset.pattern.permute.xlu0 3
    %1696 = vperm.xlu0 %1695, %v1623
    %v1697 = vpop.permute.xlu0 %1696
    %v1699 = vmul.f32 %v1697, %v1619
    %v1700 = vmul.f32 %v1697, %v1620
    %v1701 = vmul.f32 %v1697, %v1621
    %v1702 = vmul.f32 %v1697, %v1622
    %1707 = vrot.lane.b32.xlu0 %v1699, 110
    %v1708 = vpop.permute.xlu0 %1707
    %1709 = vrot.lane.b32.xlu0 %v1700, 110
    %v1710 = vpop.permute.xlu0 %1709
    %1711 = vrot.lane.b32.xlu0 %v1701, 110
    %v1712 = vpop.permute.xlu0 %1711
    %1713 = vrot.lane.b32.xlu0 %v1702, 110
    %v1714 = vpop.permute.xlu0 %1713
    %v1715 = vsel %vm312, %v1708, %v1710
    %v1716 = vsel %vm312, %v1710, %v1712
    %v1717 = vsel %vm312, %v1712, %v1714
    %v1722 = vadd.f32 %v1691, %v1715
    %v1723 = vadd.f32 %v1692, %v1716
    %v1724 = vadd.f32 %v1693, %v1717
    %v1725 = vadd.f32 %v1694, %v1714
    %1726 = vset.pattern.permute.xlu0 4
    %1727 = vperm.xlu0 %1726, %v1623
    %v1728 = vpop.permute.xlu0 %1727
    %v1730 = vmul.f32 %v1728, %v1620
    %v1731 = vmul.f32 %v1728, %v1621
    %v1732 = vmul.f32 %v1728, %v1622
    %1736 = vrot.lane.b32.xlu0 %v1730, 109
    %v1737 = vpop.permute.xlu0 %1736
    %1738 = vrot.lane.b32.xlu0 %v1731, 109
    %v1739 = vpop.permute.xlu0 %1738
    %1740 = vrot.lane.b32.xlu0 %v1732, 109
    %v1741 = vpop.permute.xlu0 %1740
    %v1742 = vsel %vm340, %v1737, %v1739
    %v1743 = vsel %vm340, %v1739, %v1741
    %v1748 = vadd.f32 %v1722, %v1737
    %v1749 = vadd.f32 %v1723, %v1742
    %v1750 = vadd.f32 %v1724, %v1743
    %v1751 = vadd.f32 %v1725, %v1741
    %1752 = vset.pattern.permute.xlu0 5
    %1753 = vperm.xlu0 %1752, %v1623
    %v1754 = vpop.permute.xlu0 %1753
    %v1756 = vmul.f32 %v1754, %v1620
    %v1757 = vmul.f32 %v1754, %v1621
    %v1758 = vmul.f32 %v1754, %v1622
    %1762 = vrot.lane.b32.xlu0 %v1756, 108
    %v1763 = vpop.permute.xlu0 %1762
    %1764 = vrot.lane.b32.xlu0 %v1757, 108
    %v1765 = vpop.permute.xlu0 %1764
    %1766 = vrot.lane.b32.xlu0 %v1758, 108
    %v1767 = vpop.permute.xlu0 %1766
    %v1768 = vsel %vm367, %v1763, %v1765
    %v1769 = vsel %vm367, %v1765, %v1767
    %v1774 = vadd.f32 %v1748, %v1763
    %v1775 = vadd.f32 %v1749, %v1768
    %v1776 = vadd.f32 %v1750, %v1769
    %v1777 = vadd.f32 %v1751, %v1767
    %1778 = vset.pattern.permute.xlu0 6
    %1779 = vperm.xlu0 %1778, %v1623
    %v1780 = vpop.permute.xlu0 %1779
    %v1782 = vmul.f32 %v1780, %v1620
    %v1783 = vmul.f32 %v1780, %v1621
    %v1784 = vmul.f32 %v1780, %v1622
    %1788 = vrot.lane.b32.xlu0 %v1782, 92
    %v1789 = vpop.permute.xlu0 %1788
    %1790 = vrot.lane.b32.xlu0 %v1783, 92
    %v1791 = vpop.permute.xlu0 %1790
    %1792 = vrot.lane.b32.xlu0 %v1784, 92
    %v1793 = vpop.permute.xlu0 %1792
    %v1794 = vsel %vm394, %v1789, %v1791
    %v1795 = vsel %vm394, %v1791, %v1793
    %v1800 = vadd.f32 %v1774, %v1789
    %v1801 = vadd.f32 %v1775, %v1794
    %v1802 = vadd.f32 %v1776, %v1795
    %v1803 = vadd.f32 %v1777, %v1793
    %1804 = vset.pattern.permute.xlu0 7
    %1805 = vperm.xlu0 %1804, %v1623
    %v1806 = vpop.permute.xlu0 %1805
    %v1808 = vmul.f32 %v1806, %v1620
    %v1809 = vmul.f32 %v1806, %v1621
    %v1810 = vmul.f32 %v1806, %v1622
    %1814 = vrot.lane.b32.xlu0 %v1808, 91
    %v1815 = vpop.permute.xlu0 %1814
    %1816 = vrot.lane.b32.xlu0 %v1809, 91
    %v1817 = vpop.permute.xlu0 %1816
    %1818 = vrot.lane.b32.xlu0 %v1810, 91
    %v1819 = vpop.permute.xlu0 %1818
    %v1820 = vsel %vm421, %v1815, %v1817
    %v1821 = vsel %vm421, %v1817, %v1819
    %v1826 = vadd.f32 %v1800, %v1815
    %v1827 = vadd.f32 %v1801, %v1820
    %v1828 = vadd.f32 %v1802, %v1821
    %v1829 = vadd.f32 %v1803, %v1819
    %1830 = vset.pattern.permute.xlu0 8
    %1831 = vperm.xlu0 %1830, %v1623
    %v1832 = vpop.permute.xlu0 %1831
    %v1834 = vmul.f32 %v1832, %v1620
    %v1835 = vmul.f32 %v1832, %v1621
    %v1836 = vmul.f32 %v1832, %v1622
    %1840 = vrot.lane.b32.xlu0 %v1834, 90
    %v1841 = vpop.permute.xlu0 %1840
    %1842 = vrot.lane.b32.xlu0 %v1835, 90
    %v1843 = vpop.permute.xlu0 %1842
    %1844 = vrot.lane.b32.xlu0 %v1836, 90
    %v1845 = vpop.permute.xlu0 %1844
    %v1846 = vsel %vm448, %v1841, %v1843
    %v1847 = vsel %vm448, %v1843, %v1845
    %v1852 = vadd.f32 %v1826, %v1841
    %v1853 = vadd.f32 %v1827, %v1846
    %v1854 = vadd.f32 %v1828, %v1847
    %v1855 = vadd.f32 %v1829, %v1845
    %v1856 = vld [vmem:[%s107] sm:$0xff]
    %v1857 = vld [vmem:[%s107 + $0x8] sm:$0xff]
    %v1858 = vld [vmem:[%s107 + $0x10] sm:$0xff]
    %v1859 = vld [vmem:[%s107 + $0x18] sm:$0xff]
    %1860 = vset.pattern.permute.xlu0 9
    %1861 = vperm.xlu0 %1860, %v1623
    %v1862 = vpop.permute.xlu0 %1861
    %v1864 = vmul.f32 %v1862, %v1856
    %v1865 = vmul.f32 %v1862, %v1857
    %v1866 = vmul.f32 %v1862, %v1858
    %v1867 = vmul.f32 %v1862, %v1859
    %v1868 = vadd.f32 %v1852, %v1864
    %v1869 = vadd.f32 %v1853, %v1865
    %v1870 = vadd.f32 %v1854, %v1866
    %v1871 = vadd.f32 %v1855, %v1867
    %1872 = vset.pattern.permute.xlu0 10
    %1873 = vperm.xlu0 %1872, %v1623
    %v1874 = vpop.permute.xlu0 %1873
    %v1876 = vmul.f32 %v1874, %v1856
    %v1877 = vmul.f32 %v1874, %v1857
    %v1878 = vmul.f32 %v1874, %v1858
    %v1879 = vmul.f32 %v1874, %v1859
    %1884 = vrot.lane.b32.xlu0 %v1876, 127
    %v1885 = vpop.permute.xlu0 %1884
    %1886 = vrot.lane.b32.xlu0 %v1877, 127
    %v1887 = vpop.permute.xlu0 %1886
    %1888 = vrot.lane.b32.xlu0 %v1878, 127
    %v1889 = vpop.permute.xlu0 %1888
    %1890 = vrot.lane.b32.xlu0 %v1879, 127
    %v1891 = vpop.permute.xlu0 %1890
    %v1892 = vsel %vm248, %v1885, %v1887
    %v1893 = vsel %vm248, %v1887, %v1889
    %v1894 = vsel %vm248, %v1889, %v1891
    %v1899 = vadd.f32 %v1868, %v1892
    %v1900 = vadd.f32 %v1869, %v1893
    %v1901 = vadd.f32 %v1870, %v1894
    %v1902 = vadd.f32 %v1871, %v1891
    %1903 = vset.pattern.permute.xlu0 11
    %1904 = vperm.xlu0 %1903, %v1623
    %v1905 = vpop.permute.xlu0 %1904
    %v1907 = vmul.f32 %v1905, %v1856
    %v1908 = vmul.f32 %v1905, %v1857
    %v1909 = vmul.f32 %v1905, %v1858
    %v1910 = vmul.f32 %v1905, %v1859
    %1915 = vrot.lane.b32.xlu0 %v1907, 126
    %v1916 = vpop.permute.xlu0 %1915
    %1917 = vrot.lane.b32.xlu0 %v1908, 126
    %v1918 = vpop.permute.xlu0 %1917
    %1919 = vrot.lane.b32.xlu0 %v1909, 126
    %v1920 = vpop.permute.xlu0 %1919
    %1921 = vrot.lane.b32.xlu0 %v1910, 126
    %v1922 = vpop.permute.xlu0 %1921
    %v1923 = vsel %vm280, %v1916, %v1918
    %v1924 = vsel %vm280, %v1918, %v1920
    %v1925 = vsel %vm280, %v1920, %v1922
    %v1930 = vadd.f32 %v1899, %v1923
    %v1931 = vadd.f32 %v1900, %v1924
    %v1932 = vadd.f32 %v1901, %v1925
    %v1933 = vadd.f32 %v1902, %v1922
    %1934 = vset.pattern.permute.xlu0 12
    %1935 = vperm.xlu0 %1934, %v1623
    %v1936 = vpop.permute.xlu0 %1935
    %v1938 = vmul.f32 %v1936, %v1856
    %v1939 = vmul.f32 %v1936, %v1857
    %v1940 = vmul.f32 %v1936, %v1858
    %v1941 = vmul.f32 %v1936, %v1859
    %1946 = vrot.lane.b32.xlu0 %v1938, 110
    %v1947 = vpop.permute.xlu0 %1946
    %1948 = vrot.lane.b32.xlu0 %v1939, 110
    %v1949 = vpop.permute.xlu0 %1948
    %1950 = vrot.lane.b32.xlu0 %v1940, 110
    %v1951 = vpop.permute.xlu0 %1950
    %1952 = vrot.lane.b32.xlu0 %v1941, 110
    %v1953 = vpop.permute.xlu0 %1952
    %v1954 = vsel %vm312, %v1947, %v1949
    %v1955 = vsel %vm312, %v1949, %v1951
    %v1956 = vsel %vm312, %v1951, %v1953
    %v1961 = vadd.f32 %v1930, %v1954
    %v1962 = vadd.f32 %v1931, %v1955
    %v1963 = vadd.f32 %v1932, %v1956
    %v1964 = vadd.f32 %v1933, %v1953
    %1965 = vset.pattern.permute.xlu0 13
    %1966 = vperm.xlu0 %1965, %v1623
    %v1967 = vpop.permute.xlu0 %1966
    %v1969 = vmul.f32 %v1967, %v1857
    %v1970 = vmul.f32 %v1967, %v1858
    %v1971 = vmul.f32 %v1967, %v1859
    %1975 = vrot.lane.b32.xlu0 %v1969, 109
    %v1976 = vpop.permute.xlu0 %1975
    %1977 = vrot.lane.b32.xlu0 %v1970, 109
    %v1978 = vpop.permute.xlu0 %1977
    %1979 = vrot.lane.b32.xlu0 %v1971, 109
    %v1980 = vpop.permute.xlu0 %1979
    %v1981 = vsel %vm340, %v1976, %v1978
    %v1982 = vsel %vm340, %v1978, %v1980
    %v1987 = vadd.f32 %v1961, %v1976
    %v1988 = vadd.f32 %v1962, %v1981
    %v1989 = vadd.f32 %v1963, %v1982
    %v1990 = vadd.f32 %v1964, %v1980
    %1991 = vset.pattern.permute.xlu0 14
    %1992 = vperm.xlu0 %1991, %v1623
    %v1993 = vpop.permute.xlu0 %1992
    %v1995 = vmul.f32 %v1993, %v1857
    %v1996 = vmul.f32 %v1993, %v1858
    %v1997 = vmul.f32 %v1993, %v1859
    %2001 = vrot.lane.b32.xlu0 %v1995, 108
    %v2002 = vpop.permute.xlu0 %2001
    %2003 = vrot.lane.b32.xlu0 %v1996, 108
    %v2004 = vpop.permute.xlu0 %2003
    %2005 = vrot.lane.b32.xlu0 %v1997, 108
    %v2006 = vpop.permute.xlu0 %2005
    %v2007 = vsel %vm367, %v2002, %v2004
    %v2008 = vsel %vm367, %v2004, %v2006
    %v2013 = vadd.f32 %v1987, %v2002
    %v2014 = vadd.f32 %v1988, %v2007
    %v2015 = vadd.f32 %v1989, %v2008
    %v2016 = vadd.f32 %v1990, %v2006
    %2017 = vset.pattern.permute.xlu0 15
    %2018 = vperm.xlu0 %2017, %v1623
    %v2019 = vpop.permute.xlu0 %2018
    %v2021 = vmul.f32 %v2019, %v1857
    %v2022 = vmul.f32 %v2019, %v1858
    %v2023 = vmul.f32 %v2019, %v1859
    %2027 = vrot.lane.b32.xlu0 %v2021, 92
    %v2028 = vpop.permute.xlu0 %2027
    %2029 = vrot.lane.b32.xlu0 %v2022, 92
    %v2030 = vpop.permute.xlu0 %2029
    %2031 = vrot.lane.b32.xlu0 %v2023, 92
    %v2032 = vpop.permute.xlu0 %2031
    %v2033 = vsel %vm394, %v2028, %v2030
    %v2034 = vsel %vm394, %v2030, %v2032
    %v2039 = vadd.f32 %v2013, %v2028
    %v2040 = vadd.f32 %v2014, %v2033
    %v2041 = vadd.f32 %v2015, %v2034
    %v2042 = vadd.f32 %v2016, %v2032
    %2043 = vset.pattern.permute.xlu0 16
    %2044 = vperm.xlu0 %2043, %v1623
    %v2045 = vpop.permute.xlu0 %2044
    %v2047 = vmul.f32 %v2045, %v1857
    %v2048 = vmul.f32 %v2045, %v1858
    %v2049 = vmul.f32 %v2045, %v1859
    %2053 = vrot.lane.b32.xlu0 %v2047, 91
    %v2054 = vpop.permute.xlu0 %2053
    %2055 = vrot.lane.b32.xlu0 %v2048, 91
    %v2056 = vpop.permute.xlu0 %2055
    %2057 = vrot.lane.b32.xlu0 %v2049, 91
    %v2058 = vpop.permute.xlu0 %2057
    %v2059 = vsel %vm421, %v2054, %v2056
    %v2060 = vsel %vm421, %v2056, %v2058
    %v2065 = vadd.f32 %v2039, %v2054
    %v2066 = vadd.f32 %v2040, %v2059
    %v2067 = vadd.f32 %v2041, %v2060
    %v2068 = vadd.f32 %v2042, %v2058
    %2069 = vset.pattern.permute.xlu0 17
    %2070 = vperm.xlu0 %2069, %v1623
    %v2071 = vpop.permute.xlu0 %2070
    %v2073 = vmul.f32 %v2071, %v1857
    %v2074 = vmul.f32 %v2071, %v1858
    %v2075 = vmul.f32 %v2071, %v1859
    %2079 = vrot.lane.b32.xlu0 %v2073, 90
    %v2080 = vpop.permute.xlu0 %2079
    %2081 = vrot.lane.b32.xlu0 %v2074, 90
    %v2082 = vpop.permute.xlu0 %2081
    %2083 = vrot.lane.b32.xlu0 %v2075, 90
    %v2084 = vpop.permute.xlu0 %2083
    %v2085 = vsel %vm448, %v2080, %v2082
    %v2086 = vsel %vm448, %v2082, %v2084
    %v2091 = vadd.f32 %v2065, %v2080
    %v2092 = vadd.f32 %v2066, %v2085
    %v2093 = vadd.f32 %v2067, %v2086
    %v2094 = vadd.f32 %v2068, %v2084
    %v2095 = vld [vmem:[%s148] sm:$0xff]
    %v2096 = vld [vmem:[%s148 + $0x8] sm:$0xff]
    %v2097 = vld [vmem:[%s148 + $0x10] sm:$0xff]
    %v2098 = vld [vmem:[%s148 + $0x18] sm:$0xff]
    %2099 = vset.pattern.permute.xlu0 18
    %2100 = vperm.xlu0 %2099, %v1623
    %v2101 = vpop.permute.xlu0 %2100
    %v2103 = vmul.f32 %v2101, %v2095
    %v2104 = vmul.f32 %v2101, %v2096
    %v2105 = vmul.f32 %v2101, %v2097
    %v2106 = vmul.f32 %v2101, %v2098
    %v2107 = vadd.f32 %v2091, %v2103
    %v2108 = vadd.f32 %v2092, %v2104
    %v2109 = vadd.f32 %v2093, %v2105
    %v2110 = vadd.f32 %v2094, %v2106
    %2111 = vset.pattern.permute.xlu0 19
    %2112 = vperm.xlu0 %2111, %v1623
    %v2113 = vpop.permute.xlu0 %2112
    %v2115 = vmul.f32 %v2113, %v2095
    %v2116 = vmul.f32 %v2113, %v2096
    %v2117 = vmul.f32 %v2113, %v2097
    %v2118 = vmul.f32 %v2113, %v2098
    %2123 = vrot.lane.b32.xlu0 %v2115, 127
    %v2124 = vpop.permute.xlu0 %2123
    %2125 = vrot.lane.b32.xlu0 %v2116, 127
    %v2126 = vpop.permute.xlu0 %2125
    %2127 = vrot.lane.b32.xlu0 %v2117, 127
    %v2128 = vpop.permute.xlu0 %2127
    %2129 = vrot.lane.b32.xlu0 %v2118, 127
    %v2130 = vpop.permute.xlu0 %2129
    %v2131 = vsel %vm248, %v2124, %v2126
    %v2132 = vsel %vm248, %v2126, %v2128
    %v2133 = vsel %vm248, %v2128, %v2130
    %v2138 = vadd.f32 %v2107, %v2131
    %v2139 = vadd.f32 %v2108, %v2132
    %v2140 = vadd.f32 %v2109, %v2133
    %v2141 = vadd.f32 %v2110, %v2130
    %2142 = vset.pattern.permute.xlu0 20
    %2143 = vperm.xlu0 %2142, %v1623
    %v2144 = vpop.permute.xlu0 %2143
    %v2146 = vmul.f32 %v2144, %v2095
    %v2147 = vmul.f32 %v2144, %v2096
    %v2148 = vmul.f32 %v2144, %v2097
    %v2149 = vmul.f32 %v2144, %v2098
    %2154 = vrot.lane.b32.xlu0 %v2146, 126
    %v2155 = vpop.permute.xlu0 %2154
    %2156 = vrot.lane.b32.xlu0 %v2147, 126
    %v2157 = vpop.permute.xlu0 %2156
    %2158 = vrot.lane.b32.xlu0 %v2148, 126
    %v2159 = vpop.permute.xlu0 %2158
    %2160 = vrot.lane.b32.xlu0 %v2149, 126
    %v2161 = vpop.permute.xlu0 %2160
    %v2162 = vsel %vm280, %v2155, %v2157
    %v2163 = vsel %vm280, %v2157, %v2159
    %v2164 = vsel %vm280, %v2159, %v2161
    %v2169 = vadd.f32 %v2138, %v2162
    %v2170 = vadd.f32 %v2139, %v2163
    %v2171 = vadd.f32 %v2140, %v2164
    %v2172 = vadd.f32 %v2141, %v2161
    %2173 = vset.pattern.permute.xlu0 21
    %2174 = vperm.xlu0 %2173, %v1623
    %v2175 = vpop.permute.xlu0 %2174
    %v2177 = vmul.f32 %v2175, %v2095
    %v2178 = vmul.f32 %v2175, %v2096
    %v2179 = vmul.f32 %v2175, %v2097
    %v2180 = vmul.f32 %v2175, %v2098
    %2185 = vrot.lane.b32.xlu0 %v2177, 110
    %v2186 = vpop.permute.xlu0 %2185
    %2187 = vrot.lane.b32.xlu0 %v2178, 110
    %v2188 = vpop.permute.xlu0 %2187
    %2189 = vrot.lane.b32.xlu0 %v2179, 110
    %v2190 = vpop.permute.xlu0 %2189
    %2191 = vrot.lane.b32.xlu0 %v2180, 110
    %v2192 = vpop.permute.xlu0 %2191
    %v2193 = vsel %vm312, %v2186, %v2188
    %v2194 = vsel %vm312, %v2188, %v2190
    %v2195 = vsel %vm312, %v2190, %v2192
    %v2200 = vadd.f32 %v2169, %v2193
    %v2201 = vadd.f32 %v2170, %v2194
    %v2202 = vadd.f32 %v2171, %v2195
    %v2203 = vadd.f32 %v2172, %v2192
    %2204 = vset.pattern.permute.xlu0 22
    %2205 = vperm.xlu0 %2204, %v1623
    %v2206 = vpop.permute.xlu0 %2205
    %v2208 = vmul.f32 %v2206, %v2096
    %v2209 = vmul.f32 %v2206, %v2097
    %v2210 = vmul.f32 %v2206, %v2098
    %2214 = vrot.lane.b32.xlu0 %v2208, 109
    %v2215 = vpop.permute.xlu0 %2214
    %2216 = vrot.lane.b32.xlu0 %v2209, 109
    %v2217 = vpop.permute.xlu0 %2216
    %2218 = vrot.lane.b32.xlu0 %v2210, 109
    %v2219 = vpop.permute.xlu0 %2218
    %v2220 = vsel %vm340, %v2215, %v2217
    %v2221 = vsel %vm340, %v2217, %v2219
    %v2226 = vadd.f32 %v2200, %v2215
    %v2227 = vadd.f32 %v2201, %v2220
    %v2228 = vadd.f32 %v2202, %v2221
    %v2229 = vadd.f32 %v2203, %v2219
    %2230 = vset.pattern.permute.xlu0 23
    %2231 = vperm.xlu0 %2230, %v1623
    %v2232 = vpop.permute.xlu0 %2231
    %v2234 = vmul.f32 %v2232, %v2096
    %v2235 = vmul.f32 %v2232, %v2097
    %v2236 = vmul.f32 %v2232, %v2098
    %2240 = vrot.lane.b32.xlu0 %v2234, 108
    %v2241 = vpop.permute.xlu0 %2240
    %2242 = vrot.lane.b32.xlu0 %v2235, 108
    %v2243 = vpop.permute.xlu0 %2242
    %2244 = vrot.lane.b32.xlu0 %v2236, 108
    %v2245 = vpop.permute.xlu0 %2244
    %v2246 = vsel %vm367, %v2241, %v2243
    %v2247 = vsel %vm367, %v2243, %v2245
    %v2252 = vadd.f32 %v2226, %v2241
    %v2253 = vadd.f32 %v2227, %v2246
    %v2254 = vadd.f32 %v2228, %v2247
    %v2255 = vadd.f32 %v2229, %v2245
    %2256 = vset.pattern.permute.xlu0 24
    %2257 = vperm.xlu0 %2256, %v1623
    %v2258 = vpop.permute.xlu0 %2257
    %v2260 = vmul.f32 %v2258, %v2096
    %v2261 = vmul.f32 %v2258, %v2097
    %v2262 = vmul.f32 %v2258, %v2098
    %2266 = vrot.lane.b32.xlu0 %v2260, 92
    %v2267 = vpop.permute.xlu0 %2266
    %2268 = vrot.lane.b32.xlu0 %v2261, 92
    %v2269 = vpop.permute.xlu0 %2268
    %2270 = vrot.lane.b32.xlu0 %v2262, 92
    %v2271 = vpop.permute.xlu0 %2270
    %v2272 = vsel %vm394, %v2267, %v2269
    %v2273 = vsel %vm394, %v2269, %v2271
    %v2278 = vadd.f32 %v2252, %v2267
    %v2279 = vadd.f32 %v2253, %v2272
    %v2280 = vadd.f32 %v2254, %v2273
    %v2281 = vadd.f32 %v2255, %v2271
    %2282 = vset.pattern.permute.xlu0 25
    %2283 = vperm.xlu0 %2282, %v1623
    %v2284 = vpop.permute.xlu0 %2283
    %v2286 = vmul.f32 %v2284, %v2096
    %v2287 = vmul.f32 %v2284, %v2097
    %v2288 = vmul.f32 %v2284, %v2098
    %2292 = vrot.lane.b32.xlu0 %v2286, 91
    %v2293 = vpop.permute.xlu0 %2292
    %2294 = vrot.lane.b32.xlu0 %v2287, 91
    %v2295 = vpop.permute.xlu0 %2294
    %2296 = vrot.lane.b32.xlu0 %v2288, 91
    %v2297 = vpop.permute.xlu0 %2296
    %v2298 = vsel %vm421, %v2293, %v2295
    %v2299 = vsel %vm421, %v2295, %v2297
    %v2304 = vadd.f32 %v2278, %v2293
    %v2305 = vadd.f32 %v2279, %v2298
    %v2306 = vadd.f32 %v2280, %v2299
    %v2307 = vadd.f32 %v2281, %v2297
    %2308 = vset.pattern.permute.xlu0 26
    %2309 = vperm.xlu0 %2308, %v1623
    %v2310 = vpop.permute.xlu0 %2309
    %v2312 = vmul.f32 %v2310, %v2096
    %v2313 = vmul.f32 %v2310, %v2097
    %v2314 = vmul.f32 %v2310, %v2098
    %2318 = vrot.lane.b32.xlu0 %v2312, 90
    %v2319 = vpop.permute.xlu0 %2318
    %2320 = vrot.lane.b32.xlu0 %v2313, 90
    %v2321 = vpop.permute.xlu0 %2320
    %2322 = vrot.lane.b32.xlu0 %v2314, 90
    %v2323 = vpop.permute.xlu0 %2322
    %v2324 = vsel %vm448, %v2319, %v2321
    %v2325 = vsel %vm448, %v2321, %v2323
    %v2330 = vadd.f32 %v2304, %v2319
    %v2331 = vadd.f32 %v2305, %v2324
    %v2332 = vadd.f32 %v2306, %v2325
    %v2333 = vadd.f32 %v2307, %v2323
    %v2334 = vld [vmem:[%s189] sm:$0xff]
    %v2335 = vld [vmem:[%s189 + $0x8] sm:$0xff]
    %v2336 = vld [vmem:[%s189 + $0x10] sm:$0xff]
    %v2337 = vld [vmem:[%s189 + $0x18] sm:$0xff]
    %2338 = vset.pattern.permute.xlu0 27
    %2339 = vperm.xlu0 %2338, %v1623
    %v2340 = vpop.permute.xlu0 %2339
    %v2342 = vmul.f32 %v2340, %v2334
    %v2343 = vmul.f32 %v2340, %v2335
    %v2344 = vmul.f32 %v2340, %v2336
    %v2345 = vmul.f32 %v2340, %v2337
    %v2346 = vadd.f32 %v2330, %v2342
    %v2347 = vadd.f32 %v2331, %v2343
    %v2348 = vadd.f32 %v2332, %v2344
    %v2349 = vadd.f32 %v2333, %v2345
    %2350 = vset.pattern.permute.xlu0 28
    %2351 = vperm.xlu0 %2350, %v1623
    %v2352 = vpop.permute.xlu0 %2351
    %v2354 = vmul.f32 %v2352, %v2334
    %v2355 = vmul.f32 %v2352, %v2335
    %v2356 = vmul.f32 %v2352, %v2336
    %v2357 = vmul.f32 %v2352, %v2337
    %2362 = vrot.lane.b32.xlu0 %v2354, 127
    %v2363 = vpop.permute.xlu0 %2362
    %2364 = vrot.lane.b32.xlu0 %v2355, 127
    %v2365 = vpop.permute.xlu0 %2364
    %2366 = vrot.lane.b32.xlu0 %v2356, 127
    %v2367 = vpop.permute.xlu0 %2366
    %2368 = vrot.lane.b32.xlu0 %v2357, 127
    %v2369 = vpop.permute.xlu0 %2368
    %v2370 = vsel %vm248, %v2363, %v2365
    %v2371 = vsel %vm248, %v2365, %v2367
    %v2372 = vsel %vm248, %v2367, %v2369
    %v2377 = vadd.f32 %v2346, %v2370
    %v2378 = vadd.f32 %v2347, %v2371
    %v2379 = vadd.f32 %v2348, %v2372
    %v2380 = vadd.f32 %v2349, %v2369
    %2381 = vset.pattern.permute.xlu0 29
    %2382 = vperm.xlu0 %2381, %v1623
    %v2383 = vpop.permute.xlu0 %2382
    %v2385 = vmul.f32 %v2383, %v2334
    %v2386 = vmul.f32 %v2383, %v2335
    %v2387 = vmul.f32 %v2383, %v2336
    %v2388 = vmul.f32 %v2383, %v2337
    %2393 = vrot.lane.b32.xlu0 %v2385, 126
    %v2394 = vpop.permute.xlu0 %2393
    %2395 = vrot.lane.b32.xlu0 %v2386, 126
    %v2396 = vpop.permute.xlu0 %2395
    %2397 = vrot.lane.b32.xlu0 %v2387, 126
    %v2398 = vpop.permute.xlu0 %2397
    %2399 = vrot.lane.b32.xlu0 %v2388, 126
    %v2400 = vpop.permute.xlu0 %2399
    %v2401 = vsel %vm280, %v2394, %v2396
    %v2402 = vsel %vm280, %v2396, %v2398
    %v2403 = vsel %vm280, %v2398, %v2400
    %v2408 = vadd.f32 %v2377, %v2401
    %v2409 = vadd.f32 %v2378, %v2402
    %v2410 = vadd.f32 %v2379, %v2403
    %v2411 = vadd.f32 %v2380, %v2400
    %2412 = vset.pattern.permute.xlu0 30
    %2413 = vperm.xlu0 %2412, %v1623
    %v2414 = vpop.permute.xlu0 %2413
    %v2416 = vmul.f32 %v2414, %v2334
    %v2417 = vmul.f32 %v2414, %v2335
    %v2418 = vmul.f32 %v2414, %v2336
    %v2419 = vmul.f32 %v2414, %v2337
    %2424 = vrot.lane.b32.xlu0 %v2416, 110
    %v2425 = vpop.permute.xlu0 %2424
    %2426 = vrot.lane.b32.xlu0 %v2417, 110
    %v2427 = vpop.permute.xlu0 %2426
    %2428 = vrot.lane.b32.xlu0 %v2418, 110
    %v2429 = vpop.permute.xlu0 %2428
    %2430 = vrot.lane.b32.xlu0 %v2419, 110
    %v2431 = vpop.permute.xlu0 %2430
    %v2432 = vsel %vm312, %v2425, %v2427
    %v2433 = vsel %vm312, %v2427, %v2429
    %v2434 = vsel %vm312, %v2429, %v2431
    %v2439 = vadd.f32 %v2408, %v2432
    %v2440 = vadd.f32 %v2409, %v2433
    %v2441 = vadd.f32 %v2410, %v2434
    %v2442 = vadd.f32 %v2411, %v2431
    %2443 = vset.pattern.permute.xlu0 31
    %2444 = vperm.xlu0 %2443, %v1623
    %v2445 = vpop.permute.xlu0 %2444
    %v2447 = vmul.f32 %v2445, %v2335
    %v2448 = vmul.f32 %v2445, %v2336
    %v2449 = vmul.f32 %v2445, %v2337
    %2453 = vrot.lane.b32.xlu0 %v2447, 109
    %v2454 = vpop.permute.xlu0 %2453
    %2455 = vrot.lane.b32.xlu0 %v2448, 109
    %v2456 = vpop.permute.xlu0 %2455
    %2457 = vrot.lane.b32.xlu0 %v2449, 109
    %v2458 = vpop.permute.xlu0 %2457
    %v2459 = vsel %vm340, %v2454, %v2456
    %v2460 = vsel %vm340, %v2456, %v2458
    %v2465 = vadd.f32 %v2439, %v2454
    %v2466 = vadd.f32 %v2440, %v2459
    %v2467 = vadd.f32 %v2441, %v2460
    %v2468 = vadd.f32 %v2442, %v2458
    %2469 = vset.pattern.permute.xlu0 32
    %2470 = vperm.xlu0 %2469, %v1623
    %v2471 = vpop.permute.xlu0 %2470
    %v2473 = vmul.f32 %v2471, %v2335
    %v2474 = vmul.f32 %v2471, %v2336
    %v2475 = vmul.f32 %v2471, %v2337
    %2479 = vrot.lane.b32.xlu0 %v2473, 108
    %v2480 = vpop.permute.xlu0 %2479
    %2481 = vrot.lane.b32.xlu0 %v2474, 108
    %v2482 = vpop.permute.xlu0 %2481
    %2483 = vrot.lane.b32.xlu0 %v2475, 108
    %v2484 = vpop.permute.xlu0 %2483
    %v2485 = vsel %vm367, %v2480, %v2482
    %v2486 = vsel %vm367, %v2482, %v2484
    %v2491 = vadd.f32 %v2465, %v2480
    %v2492 = vadd.f32 %v2466, %v2485
    %v2493 = vadd.f32 %v2467, %v2486
    %v2494 = vadd.f32 %v2468, %v2484
    %2495 = vset.pattern.permute.xlu0 33
    %2496 = vperm.xlu0 %2495, %v1623
    %v2497 = vpop.permute.xlu0 %2496
    %v2499 = vmul.f32 %v2497, %v2335
    %v2500 = vmul.f32 %v2497, %v2336
    %v2501 = vmul.f32 %v2497, %v2337
    %2505 = vrot.lane.b32.xlu0 %v2499, 92
    %v2506 = vpop.permute.xlu0 %2505
    %2507 = vrot.lane.b32.xlu0 %v2500, 92
    %v2508 = vpop.permute.xlu0 %2507
    %2509 = vrot.lane.b32.xlu0 %v2501, 92
    %v2510 = vpop.permute.xlu0 %2509
    %v2511 = vsel %vm394, %v2506, %v2508
    %v2512 = vsel %vm394, %v2508, %v2510
    %v2517 = vadd.f32 %v2491, %v2506
    %v2518 = vadd.f32 %v2492, %v2511
    %v2519 = vadd.f32 %v2493, %v2512
    %v2520 = vadd.f32 %v2494, %v2510
    %2521 = vset.pattern.permute.xlu0 34
    %2522 = vperm.xlu0 %2521, %v1623
    %v2523 = vpop.permute.xlu0 %2522
    %v2525 = vmul.f32 %v2523, %v2335
    %v2526 = vmul.f32 %v2523, %v2336
    %v2527 = vmul.f32 %v2523, %v2337
    %2531 = vrot.lane.b32.xlu0 %v2525, 91
    %v2532 = vpop.permute.xlu0 %2531
    %2533 = vrot.lane.b32.xlu0 %v2526, 91
    %v2534 = vpop.permute.xlu0 %2533
    %2535 = vrot.lane.b32.xlu0 %v2527, 91
    %v2536 = vpop.permute.xlu0 %2535
    %v2537 = vsel %vm421, %v2532, %v2534
    %v2538 = vsel %vm421, %v2534, %v2536
    %v2543 = vadd.f32 %v2517, %v2532
    %v2544 = vadd.f32 %v2518, %v2537
    %v2545 = vadd.f32 %v2519, %v2538
    %v2546 = vadd.f32 %v2520, %v2536
    %2547 = vset.pattern.permute.xlu0 35
    %2548 = vperm.xlu0 %2547, %v1623
    %v2549 = vpop.permute.xlu0 %2548
    %v2551 = vmul.f32 %v2549, %v2335
    %v2552 = vmul.f32 %v2549, %v2336
    %v2553 = vmul.f32 %v2549, %v2337
    %2557 = vrot.lane.b32.xlu0 %v2551, 90
    %v2558 = vpop.permute.xlu0 %2557
    %2559 = vrot.lane.b32.xlu0 %v2552, 90
    %v2560 = vpop.permute.xlu0 %2559
    %2561 = vrot.lane.b32.xlu0 %v2553, 90
    %v2562 = vpop.permute.xlu0 %2561
    %v2563 = vsel %vm448, %v2558, %v2560
    %v2564 = vsel %vm448, %v2560, %v2562
    %v2569 = vadd.f32 %v2543, %v2558
    %v2570 = vadd.f32 %v2544, %v2563
    %v2571 = vadd.f32 %v2545, %v2564
    %v2572 = vadd.f32 %v2546, %v2562
    %v2573 = vld [vmem:[%s6] sm:$0xff]
    %v2574 = vld [vmem:[%s7] sm:$0xff]
    %v2575 = vmul.f32 %v2569, %v1182
    %v2576 = vmul.f32 %v2570, %v1187
    %v2577 = vmul.f32 %v2571, %v1188
    %v2578 = vmul.f32 %v2572, %v1186
    %2583 = vrot.lane.b32.xlu0 %v2575, 19
    %v2584 = vpop.permute.xlu0 %2583
    %2585 = vrot.lane.b32.xlu0 %v2576, 19
    %v2586 = vpop.permute.xlu0 %2585
    %2587 = vrot.lane.b32.xlu0 %v2577, 19
    %v2588 = vpop.permute.xlu0 %2587
    %2589 = vrot.lane.b32.xlu0 %v2578, 19
    %v2590 = vpop.permute.xlu0 %2589
    %v2591 = vsel %vm1209, %v2584, %v2586
    %v2592 = vsel %vm1209, %v2586, %v2588
    %v2593 = vsel %vm1209, %v2588, %v2590
    %v2597 = vadd.f32 %v2591, %v2592
    %v2598 = vsel %vm1217, %v2593, 0.0
    %v2599 = vadd.f32 %v2597, %v2598
    %2600 = vadd.xlane.f32.xlu0 %v2599
    %v2601 = vpop.xlane.xlu0 %2600
    %v2602 = vrot.slane %v2601, 4
    %v2603 = vadd.f32 %v2601, %v2602
    %v2604 = vmul.f32 %v2603, 0.001953125
    %2606 = vset.pattern.permute.xlu0 0
    %2607 = vperm.xlu0 %2606, %v2604
    %v2608 = vpop.permute.xlu0 %2607
    %v2610 = vsub.f32 %v2569, %v2608
    %v2611 = vsub.f32 %v2570, %v2608
    %v2612 = vsub.f32 %v2571, %v2608
    %v2613 = vsub.f32 %v2572, %v2608
    %v2614 = vmul.f32 %v2610, %v1182
    %v2615 = vmul.f32 %v2611, %v1187
    %v2616 = vmul.f32 %v2612, %v1188
    %v2617 = vmul.f32 %v2613, %v1186
    %v2618 = vmul.f32 %v2614, %v2614
    %v2619 = vmul.f32 %v2615, %v2615
    %v2620 = vmul.f32 %v2616, %v2616
    %v2621 = vmul.f32 %v2617, %v2617
    %2626 = vrot.lane.b32.xlu0 %v2618, 19
    %v2627 = vpop.permute.xlu0 %2626
    %2628 = vrot.lane.b32.xlu0 %v2619, 19
    %v2629 = vpop.permute.xlu0 %2628
    %2630 = vrot.lane.b32.xlu0 %v2620, 19
    %v2631 = vpop.permute.xlu0 %2630
    %2632 = vrot.lane.b32.xlu0 %v2621, 19
    %v2633 = vpop.permute.xlu0 %2632
    %v2634 = vsel %vm1209, %v2627, %v2629
    %v2635 = vsel %vm1209, %v2629, %v2631
    %v2636 = vsel %vm1209, %v2631, %v2633
    %v2640 = vadd.f32 %v2634, %v2635
    %v2641 = vsel %vm1217, %v2636, 0.0
    %v2642 = vadd.f32 %v2640, %v2641
    %2643 = vadd.xlane.f32.xlu0 %v2642
    %v2644 = vpop.xlane.xlu0 %2643
    %v2645 = vrot.slane %v2644, 4
    %v2646 = vadd.f32 %v2644, %v2645
    %v2647 = vmul.f32 %v2646, 0.001953125
    %v2648 = vadd.f32 %v2647, 1e-05
    %v2649 = vrsqrt.pop %v2648
    %v2650 = vmul.f32 %v2649, %v2573
    %2652 = vset.pattern.permute.xlu0 0
    %2653 = vperm.xlu0 %2652, %v2650
    %v2654 = vpop.permute.xlu0 %2653
    %v2656 = vmul.f32 %v2614, %v2654
    %v2657 = vmul.f32 %v2615, %v2654
    %v2658 = vmul.f32 %v2616, %v2654
    %v2659 = vmul.f32 %v2617, %v2654
    %2661 = vset.pattern.permute.xlu0 0
    %2662 = vperm.xlu0 %2661, %v2574
    %v2663 = vpop.permute.xlu0 %2662
    %v2665 = vadd.f32 %v2656, %v2663
    %v2666 = vadd.f32 %v2657, %v2663
    %v2667 = vadd.f32 %v2658, %v2663
    %v2668 = vadd.f32 %v2659, %v2663
    %2673 = vrot.lane.b32.xlu0 %v2665, 19
    %v2674 = vpop.permute.xlu0 %2673
    %2675 = vrot.lane.b32.xlu0 %v2666, 19
    %v2676 = vpop.permute.xlu0 %2675
    %2677 = vrot.lane.b32.xlu0 %v2667, 19
    %v2678 = vpop.permute.xlu0 %2677
    %2679 = vrot.lane.b32.xlu0 %v2668, 19
    %v2680 = vpop.permute.xlu0 %2679
    %v2681 = vsel %vm1209, %v2674, %v2676
    %v2682 = vsel %vm1209, %v2676, %v2678
    %v2683 = vsel %vm1209, %v2678, %v2680
    %v2687 = vadd.f32 %v46, %v2681
    %v2688 = vadd.f32 %v47, %v2682
    %v2689 = vadd.f32 %v48, %v2683
    %2690 = vst [vmem:[#allocation6] sm:$0xff] %v2687
    %2691 = vst [vmem:[#allocation6 + $0x8] sm:$0xff] %v2688
    %2692 = vst.msk [vmem:[#allocation6 + $0x10] sm:$0xff] %vm1217, %v2689
    // Predicated region
    $region38: #{tpu_custom_call.1} parent=1 // pred_check
      _
    $region39: #{tpu_custom_call.1} parent=1 // pred_check_branch
      %2694 = sbr.rel (0) target = $region41
    $region40: #{tpu_custom_call.1} parent=1 // pred_region
      %s2696 = ssub.s32 384, 384
      %2697 = vsyncadd [#allocation5], %s2696
      %s2699 = sshll.u32 [#allocation6], 4
      %s2700 = int_to_ptr.vmem [resolvable:$true] %s2699
      %2702 = dma.vmem_to_hbm [thread:$0]  %s2700, 384, %s8, [#allocation5]
    $region41: #{tpu_custom_call.1} parent=1 // pred_fallthru
      _
    // Predicated region
    $region42: #{tpu_custom_call.1} parent=1 // pred_check
      _
    $region43: #{tpu_custom_call.1} parent=1 // pred_check_branch
      %2704 = sbr.rel (0) target = $region45
    $region44: #{tpu_custom_call.1} parent=1 // pred_region
      %2705 = dma.done [#allocation5], 384
    $region45: #{tpu_custom_call.1} parent=1 // pred_fallthru
      _
    %2706 = vsyncpa [#allocation4], 1
    %2707 = vsyncpa [#allocation5], 1

</llo_original>
